<compile_context>
chip_gen: v6e
topology: v6e:2x2x1
jax: 0.10.0
libtpu: 0.0.40
codegen_flags: <defaults>
</compile_context>

<pallas_src>
import functools

import jax
import jax.numpy as jnp
from jax.experimental import pallas as pl
from jax.experimental.pallas import tpu as pltpu


def _round_up(x, m):
    return ((x + m - 1) // m) * m


# ------------------- conv as lane-dense transposed GEMM ----------------------

def _conv_gemm_kernel(w_ref, p_ref, b_ref, o_ref):
    # w_ref: (Cp, Kp) bf16, p_ref: (Kp, tn) bf16, b_ref: (Cp, 1) f32
    acc = jnp.dot(w_ref[...], p_ref[...], preferred_element_type=jnp.float32)
    o_ref[...] = (acc + b_ref[...]).astype(o_ref.dtype)


def _im2col_T(x_cnhw, kh, kw):
    """(C,N,H,W) -> (C*kh*kw, N*Ho*Wo) patches, row order (Cin, kh, kw)."""
    C, N, H, W = x_cnhw.shape
    Ho, Wo = H - kh + 1, W - kw + 1
    cols = [x_cnhw[:, :, di:di + Ho, dj:dj + Wo]
            for di in range(kh) for dj in range(kw)]
    p = jnp.stack(cols, axis=1)                 # (C, kh*kw, N, Ho, Wo)
    return p.reshape(C * kh * kw, N * Ho * Wo), Ho, Wo


def conv2d_cmajor(x_cnhw, w, b, *, tn=512):
    """PyTorch Conv2d (stride 1, no padding) on a (C, N, H, W) activation.

    Returns (Cout, N, Ho, Wo).  Lowered to one lane-dense MXU GEMM:
    (Cout, Cin*kh*kw) @ (Cin*kh*kw, N*Ho*Wo), bias fused, bf16 in / f32 acc.
    """
    Cout, Cin, kh, kw = w.shape
    N = x_cnhw.shape[1]
    patches, Ho, Wo = _im2col_T(x_cnhw, kh, kw)          # (K, M) f32
    K, M = patches.shape

    Kp = _round_up(K, 128)
    Cp = _round_up(Cout, 8)
    tn = min(tn, _round_up(M, 128))
    Mp = _round_up(M, tn)

    w_p = jnp.pad(w.reshape(Cout, K),
                  ((0, Cp - Cout), (0, Kp - K))).astype(jnp.bfloat16)
    p_p = jnp.pad(patches,
                  ((0, Kp - K), (0, Mp - M))).astype(jnp.bfloat16)
    b_p = jnp.pad(b, (0, Cp - Cout)).reshape(Cp, 1).astype(jnp.float32)

    out = pl.pallas_call(
        _conv_gemm_kernel,
        out_shape=jax.ShapeDtypeStruct((Cp, Mp), jnp.float32),
        grid=(Mp // tn,),
        in_specs=[
            pl.BlockSpec((Cp, Kp), lambda j: (0, 0)),
            pl.BlockSpec((Kp, tn), lambda j: (0, j)),
            pl.BlockSpec((Cp, 1), lambda j: (0, 0)),
        ],
        out_specs=pl.BlockSpec((Cp, tn), lambda j: (0, j)),
        compiler_params=pltpu.CompilerParams(
            dimension_semantics=("parallel",)),
    )(w_p, p_p, b_p)
    return out[:Cout, :M].reshape(Cout, N, Ho, Wo)


# ------------------------ maxpool(2,2) + ReLU kernel -------------------------

def _max4_relu_kernel(x_ref, o_ref):
    m01 = jnp.maximum(x_ref[0:1, :], x_ref[1:2, :])
    m23 = jnp.maximum(x_ref[2:3, :], x_ref[3:4, :])
    o_ref[...] = jnp.maximum(jnp.maximum(m01, m23), 0.0)


def maxpool2x2_relu_cmajor(y):
    """MaxPool2d(2, 2) + ReLU on a (C, N, H, W) tensor, lane-dense flattened."""
    C, N, H, W = y.shape
    Ho, Wo = H // 2, W // 2
    y = y[:, :, :2 * Ho, :2 * Wo]
    stacked = jnp.stack(
        [y[:, :, 0::2, 0::2], y[:, :, 0::2, 1::2],
         y[:, :, 1::2, 0::2], y[:, :, 1::2, 1::2]], axis=0)
    L = C * N * Ho * Wo
    stacked = stacked.reshape(4, L)

    Lt = min(4096, _round_up(L, 128))
    Lp = _round_up(L, Lt)
    stacked = jnp.pad(stacked, ((0, 0), (0, Lp - L)))

    out = pl.pallas_call(
        _max4_relu_kernel,
        out_shape=jax.ShapeDtypeStruct((1, Lp), y.dtype),
        grid=(Lp // Lt,),
        in_specs=[pl.BlockSpec((4, Lt), lambda j: (0, j))],
        out_specs=pl.BlockSpec((1, Lt), lambda j: (0, j)),
        compiler_params=pltpu.CompilerParams(
            dimension_semantics=("parallel",)),
    )(stacked)
    return out[0, :L].reshape(C, N, Ho, Wo)


# ------------------------------ fused fc_loc ---------------------------------

def _fc_loc_kernel(x_ref, w1_ref, b1_ref, w2_ref, b2_ref, o_ref):
    h = jnp.dot(x_ref[...], w1_ref[...], preferred_element_type=jnp.float32)
    h = jnp.maximum(h + b1_ref[...], 0.0)
    o_ref[...] = (jnp.dot(h, w2_ref[...], preferred_element_type=jnp.float32)
                  + b2_ref[...]).astype(o_ref.dtype)


def fc_loc_forward(xs, w1, b1, w2, b2):
    """theta = (ReLU(xs @ w1 + b1)) @ w2 + b2, fused in one pallas_call."""
    N = xs.shape[0]
    vmem = pl.BlockSpec(memory_space=pltpu.MemorySpace.VMEM)
    return pl.pallas_call(
        _fc_loc_kernel,
        out_shape=jax.ShapeDtypeStruct((N, w2.shape[1]), jnp.float32),
        in_specs=[vmem] * 5,
        out_specs=vmem,
    )(xs.astype(jnp.float32), w1, b1.reshape(1, -1), w2, b2.reshape(1, -1))


# -------------------- affine_grid + grid_sample kernel -----------------------

def _affine_grid_sample_kernel(theta_sref, base_ref, x_ref, o_ref,
                               *, C, H, W, Hp):
    # theta_sref: SMEM (N, 6);  base_ref: VMEM (2, Pt) normalized target coords
    # x_ref: VMEM (1, C*Hp, Wp) zero-padded image;  o_ref: VMEM (1, C, Pt)
    n = pl.program_id(0)
    Pt = base_ref.shape[1]
    Wp = x_ref.shape[2]

    xt = base_ref[0:1, :]                       # (1, Pt)
    yt = base_ref[1:2, :]                       # (1, Pt)

    t00 = theta_sref[n, 0]; t01 = theta_sref[n, 1]; t02 = theta_sref[n, 2]
    t10 = theta_sref[n, 3]; t11 = theta_sref[n, 4]; t12 = theta_sref[n, 5]

    # F.affine_grid (align_corners=False)
    gx = t00 * xt + t01 * yt + t02
    gy = t10 * xt + t11 * yt + t12

    # F.grid_sample: bilinear, padding_mode='zeros', align_corners=False
    ix = ((gx + 1.0) * W - 1.0) * 0.5
    iy = ((gy + 1.0) * H - 1.0) * 0.5
    ix0 = jnp.floor(ix)
    iy0 = jnp.floor(iy)
    wx1 = ix - ix0
    wx0 = 1.0 - wx1
    wy1 = iy - iy0
    wy0 = 1.0 - wy1
    ix0i = ix0.astype(jnp.int32)
    iy0i = iy0.astype(jnp.int32)

    w_iota = jax.lax.broadcasted_iota(jnp.int32, (Wp, Pt), 0)
    h_iota = jax.lax.broadcasted_iota(jnp.int32, (Hp, Pt), 0)
    # One-hot interpolation matrices.  Out-of-range taps either never match an
    # index or hit a zero-padded image row/column -> zeros padding exactly.
    bx = (wx0 * (w_iota == ix0i).astype(jnp.float32)
          + wx1 * (w_iota == ix0i + 1).astype(jnp.float32))      # (Wp, Pt)
    by = (wy0 * (h_iota == iy0i).astype(jnp.float32)
          + wy1 * (h_iota == iy0i + 1).astype(jnp.float32))      # (Hp, Pt)

    # Single batched MXU matmul over all channels, then a cheap per-channel
    # sublane reduction weighted by `by`.
    a = jnp.dot(x_ref[0], bx, preferred_element_type=jnp.float32)  # (C*Hp, Pt)
    for c in range(C):  # C is small and static -> unrolled, slices are aligned
        a_c = a[c * Hp:(c + 1) * Hp, :] * by
        o_ref[0, c:c + 1, :] = jnp.sum(a_c, axis=0, keepdims=True)


def affine_grid_sample(x, theta, *, pt=512):
    """out = grid_sample(x, affine_grid(theta, x.shape)) — PyTorch defaults."""
    N, C, H, W = x.shape
    P = H * W
    Hp = _round_up(H, 8)
    Wp = _round_up(W, 8)
    Pt = min(pt, _round_up(P, 128))
    Pp = _round_up(P, Pt)

    # Constant base grid (depends only on H, W) built in glue.
    ii = jnp.arange(W, dtype=jnp.float32)
    jj = jnp.arange(H, dtype=jnp.float32)
    xt = (2.0 * ii + 1.0) / W - 1.0
    yt = (2.0 * jj + 1.0) / H - 1.0
    base = jnp.stack(
        [jnp.broadcast_to(xt[None, :], (H, W)).reshape(P),
         jnp.broadcast_to(yt[:, None], (H, W)).reshape(P)], axis=0)  # (2, P)
    base = jnp.pad(base, ((0, 0), (0, Pp - P)))

    # Zero-pad spatial dims to sublane multiples; padded rows/cols contribute 0.
    x_pad = jnp.pad(x.astype(jnp.float32),
                    ((0, 0), (0, 0), (0, Hp - H), (0, Wp - W)))
    x2d = x_pad.reshape(N, C * Hp, Wp)
    theta_flat = theta.reshape(N, 6).astype(jnp.float32)

    kernel = functools.partial(_affine_grid_sample_kernel,
                               C=C, H=H, W=W, Hp=Hp)
    out = pl.pallas_call(
        kernel,
        out_shape=jax.ShapeDtypeStruct((N, C, Pp), jnp.float32),
        grid_spec=pltpu.PrefetchScalarGridSpec(
            num_scalar_prefetch=1,
            grid=(N, Pp // Pt),
            in_specs=[
                pl.BlockSpec((2, Pt), lambda n, p, th: (0, p)),
                pl.BlockSpec((1, C * Hp, Wp), lambda n, p, th: (n, 0, 0)),
            ],
            out_specs=pl.BlockSpec((1, C, Pt), lambda n, p, th: (n, 0, p)),
        ),
        compiler_params=pltpu.CompilerParams(
            dimension_semantics=("parallel", "parallel")),
    )(theta_flat, base, x2d)
    return out[:, :, :P].reshape(N, C, H, W)


# ------------------------------ params / model -------------------------------

def init_params(key, fc_in):
    ks = jax.random.split(key, 6)

    def u(k, shape, fan_in):
        bound = 1.0 / (fan_in ** 0.5)
        return jax.random.uniform(k, shape, jnp.float32, -bound, bound)

    return {
        "conv1_w": u(ks[0], (8, 3, 10, 10), 3 * 10 * 10),
        "conv1_b": u(ks[1], (8,), 3 * 10 * 10),
        "conv2_w": u(ks[2], (10, 8, 8, 8), 8 * 8 * 8),
        "conv2_b": u(ks[3], (10,), 8 * 8 * 8),
        "fc1_w": u(ks[4], (32, fc_in), fc_in),
        "fc1_b": u(ks[5], (32,), fc_in),
        # fc_loc[2]: zero weights, identity-affine bias (exactly as __init__)
        "fc2_w": jnp.zeros((6, 32), jnp.float32),
        "fc2_b": jnp.array([1.0, 0.0, 0.0, 0.0, 1.0, 0.0], jnp.float32),
    }


def stn_small_forward(params, x):
    N = x.shape[0]
    x_cn = x.transpose(1, 0, 2, 3)                         # (C, N, H, W)
    # localization: Conv2d(3, 8, 10) -> MaxPool2d(2, 2) -> ReLU
    y = conv2d_cmajor(x_cn, params["conv1_w"], params["conv1_b"])
    y = maxpool2x2_relu_cmajor(y)
    #               Conv2d(8, 10, 8) -> MaxPool2d(2, 2) -> ReLU
    y = conv2d_cmajor(y, params["conv2_w"], params["conv2_b"])
    y = maxpool2x2_relu_cmajor(y)                          # (10, N, Hf, Wf)
    # fc_loc: Linear -> ReLU -> Linear  (flatten in PyTorch NCHW order)
    xs = y.transpose(1, 0, 2, 3).reshape(N, -1)            # (N, 10*Hf*Wf)
    theta = fc_loc_forward(xs, params["fc1_w"].T, params["fc1_b"],
                           params["fc2_w"].T, params["fc2_b"])   # (N, 6)
    # affine_grid + grid_sample
    return affine_grid_sample(x, theta)


if __name__ == "__main__":
    # Small input consistent with the module's conv/pool chain:
    # 47 -> conv10 -> 38 -> pool -> 19 -> conv8 -> 12 -> pool -> 6
    N, C, H, W = 2, 3, 47, 47
    Hf = ((H - 9) // 2 - 7) // 2
    Wf = ((W - 9) // 2 - 7) // 2
    fc_in = 10 * Hf * Wf   # stands in for the original 10 * 90 * 90

    key = jax.random.PRNGKey(0)
    kx, kp = jax.random.split(key)
    x = jax.random.normal(kx, (N, C, H, W), jnp.float32)
    params = init_params(kp, fc_in)

    fwd = jax.jit(stn_small_forward)
    out = jax.block_until_ready(fwd(params, x))

    assert out.shape == x.shape and out.dtype == jnp.float32
    # With fc_loc[2] zero weights + identity bias, theta is the identity
    # affine, so grid_sample must reproduce the input (up to rounding).
    max_err = float(jnp.max(jnp.abs(out - x)))
    assert max_err < 5e-2, f"identity-theta sanity check failed: {max_err}"
    print("KERNEL_OK")
</pallas_src>

<mosaic_0001>
module attributes {stable_mosaic.version = 11 : i64} {
  func.func @_conv_gemm_kernel(%arg0: i32, %arg1: memref<8x384xbf16, #tpu.memory_space<vmem>>, %arg2: memref<384x512xbf16, #tpu.memory_space<vmem>>, %arg3: memref<8x1xf32, #tpu.memory_space<vmem>>, %arg4: memref<8x512xf32, #tpu.memory_space<vmem>>) attributes {dimension_semantics = [#tpu.dimension_semantics<parallel>], iteration_bounds = array<i64: 6>, scalar_prefetch = 0 : i64, scratch_operands = 0 : i64, tpu.core_type = #tpu.core_type<tc>, window_params = [{pipeline_mode = #tpu.pipeline_mode<synchronous>, transform_indices = @transform_0, window_bounds = array<i64: 8, 384>}, {transform_indices = @transform_1, window_bounds = array<i64: 384, 512>}, {pipeline_mode = #tpu.pipeline_mode<synchronous>, transform_indices = @transform_2, window_bounds = array<i64: 8, 1>}, {transform_indices = @transform_3, window_bounds = array<i64: 8, 512>}]} {
    %c0 = arith.constant 0 : index
    %c0_0 = arith.constant 0 : index
    %0 = vector.load %arg1[%c0, %c0_0] : memref<8x384xbf16, #tpu.memory_space<vmem>>, vector<8x384xbf16>
    %c0_1 = arith.constant 0 : index
    %c0_2 = arith.constant 0 : index
    %1 = vector.load %arg2[%c0_1, %c0_2] : memref<384x512xbf16, #tpu.memory_space<vmem>>, vector<384x512xbf16>
    %cst = arith.constant dense<0.000000e+00> : vector<8x512xf32>
    %2 = tpu.matmul %0, %1, %cst {dimension_numbers = #tpu.dot_dimension_numbers<[1], [0], [0], [1], [0, 0, 1, 1], [], []>} : vector<8x384xbf16>, vector<384x512xbf16>, vector<8x512xf32> -> vector<8x512xf32>
    %c0_3 = arith.constant 0 : index
    %c0_4 = arith.constant 0 : index
    %3 = vector.load %arg3[%c0_3, %c0_4] : memref<8x1xf32, #tpu.memory_space<vmem>>, vector<8x1xf32>
    %4 = vector.broadcast %3 : vector<8x1xf32> to vector<8x512xf32>
    %5 = arith.addf %2, %4 : vector<8x512xf32>
    %c0_5 = arith.constant 0 : index
    %c0_6 = arith.constant 0 : index
    %6 = vector.load %arg4[%c0_5, %c0_6] : memref<8x512xf32, #tpu.memory_space<vmem>>, vector<8x512xf32>
    tpu.vector_store %arg4[%c0_5, %c0_6], %5 {strides = array<i32>} : memref<8x512xf32, #tpu.memory_space<vmem>>, vector<8x512xf32>,
    return
  }
  func.func @transform_0(%arg0: i32) -> (i32, i32) {
    %c0_i32 = arith.constant 0 : i32
    %c0_i32_0 = arith.constant 0 : i32
    %c0_i32_1 = arith.constant 0 : i32
    return %c0_i32, %c0_i32_0 : i32, i32
  }
  func.func @transform_1(%arg0: i32) -> (i32, i32) {
    %c0_i32 = arith.constant 0 : i32
    %c0_i32_0 = arith.constant 0 : i32
    return %c0_i32, %arg0 : i32, i32
  }
  func.func @transform_2(%arg0: i32) -> (i32, i32) {
    %c0_i32 = arith.constant 0 : i32
    %c0_i32_0 = arith.constant 0 : i32
    %c0_i32_1 = arith.constant 0 : i32
    return %c0_i32, %c0_i32_0 : i32, i32
  }
  func.func @transform_3(%arg0: i32) -> (i32, i32) {
    %c0_i32 = arith.constant 0 : i32
    %c0_i32_0 = arith.constant 0 : i32
    return %c0_i32, %arg0 : i32, i32
  }
}

module attributes {stable_mosaic.version = 11 : i64} {
  func.func @_max4_relu_kernel(%arg0: i32, %arg1: memref<4x4096xf32, #tpu.memory_space<vmem>>, %arg2: memref<1x4096xf32, #tpu.memory_space<vmem>>) attributes {dimension_semantics = [#tpu.dimension_semantics<parallel>], iteration_bounds = array<i64: 2>, scalar_prefetch = 0 : i64, scratch_operands = 0 : i64, tpu.core_type = #tpu.core_type<tc>, window_params = [{transform_indices = @transform_0, window_bounds = array<i64: 4, 4096>}, {transform_indices = @transform_1, window_bounds = array<i64: 1, 4096>}]} {
    %c0 = arith.constant 0 : index
    %c0_0 = arith.constant 0 : index
    %0 = vector.load %arg1[%c0, %c0_0] : memref<4x4096xf32, #tpu.memory_space<vmem>>, vector<1x4096xf32>
    %c1 = arith.constant 1 : index
    %c0_1 = arith.constant 0 : index
    %1 = vector.load %arg1[%c1, %c0_1] : memref<4x4096xf32, #tpu.memory_space<vmem>>, vector<1x4096xf32>
    %2 = arith.maximumf %0, %1 : vector<1x4096xf32>
    %c2 = arith.constant 2 : index
    %c0_2 = arith.constant 0 : index
    %3 = vector.load %arg1[%c2, %c0_2] : memref<4x4096xf32, #tpu.memory_space<vmem>>, vector<1x4096xf32>
    %c3 = arith.constant 3 : index
    %c0_3 = arith.constant 0 : index
    %4 = vector.load %arg1[%c3, %c0_3] : memref<4x4096xf32, #tpu.memory_space<vmem>>, vector<1x4096xf32>
    %5 = arith.maximumf %3, %4 : vector<1x4096xf32>
    %6 = arith.maximumf %2, %5 : vector<1x4096xf32>
    %cst = arith.constant 0.000000e+00 : f32
    %7 = vector.broadcast %cst : f32 to vector<1x4096xf32>
    %8 = arith.maximumf %6, %7 : vector<1x4096xf32>
    %c0_4 = arith.constant 0 : index
    %c0_5 = arith.constant 0 : index
    %9 = vector.load %arg2[%c0_4, %c0_5] : memref<1x4096xf32, #tpu.memory_space<vmem>>, vector<1x4096xf32>
    tpu.vector_store %arg2[%c0_4, %c0_5], %8 {strides = array<i32>} : memref<1x4096xf32, #tpu.memory_space<vmem>>, vector<1x4096xf32>,
    return
  }
  func.func @transform_0(%arg0: i32) -> (i32, i32) {
    %c0_i32 = arith.constant 0 : i32
    %c0_i32_0 = arith.constant 0 : i32
    return %c0_i32, %arg0 : i32, i32
  }
  func.func @transform_1(%arg0: i32) -> (i32, i32) {
    %c0_i32 = arith.constant 0 : i32
    %c0_i32_0 = arith.constant 0 : i32
    return %c0_i32, %arg0 : i32, i32
  }
}

module attributes {stable_mosaic.version = 11 : i64} {
  func.func @_conv_gemm_kernel(%arg0: i32, %arg1: memref<16x512xbf16, #tpu.memory_space<vmem>>, %arg2: memref<512x384xbf16, #tpu.memory_space<vmem>>, %arg3: memref<16x1xf32, #tpu.memory_space<vmem>>, %arg4: memref<16x384xf32, #tpu.memory_space<vmem>>) attributes {dimension_semantics = [#tpu.dimension_semantics<parallel>], iteration_bounds = array<i64: 1>, scalar_prefetch = 0 : i64, scratch_operands = 0 : i64, tpu.core_type = #tpu.core_type<tc>, window_params = [{pipeline_mode = #tpu.pipeline_mode<synchronous>, transform_indices = @transform_0, window_bounds = array<i64: 16, 512>}, {transform_indices = @transform_1, window_bounds = array<i64: 512, 384>}, {pipeline_mode = #tpu.pipeline_mode<synchronous>, transform_indices = @transform_2, window_bounds = array<i64: 16, 1>}, {transform_indices = @transform_3, window_bounds = array<i64: 16, 384>}]} {
    %c0 = arith.constant 0 : index
    %c0_0 = arith.constant 0 : index
    %0 = vector.load %arg1[%c0, %c0_0] : memref<16x512xbf16, #tpu.memory_space<vmem>>, vector<16x512xbf16>
    %c0_1 = arith.constant 0 : index
    %c0_2 = arith.constant 0 : index
    %1 = vector.load %arg2[%c0_1, %c0_2] : memref<512x384xbf16, #tpu.memory_space<vmem>>, vector<512x384xbf16>
    %cst = arith.constant dense<0.000000e+00> : vector<16x384xf32>
    %2 = tpu.matmul %0, %1, %cst {dimension_numbers = #tpu.dot_dimension_numbers<[1], [0], [0], [1], [0, 0, 1, 1], [], []>} : vector<16x512xbf16>, vector<512x384xbf16>, vector<16x384xf32> -> vector<16x384xf32>
    %c0_3 = arith.constant 0 : index
    %c0_4 = arith.constant 0 : index
    %3 = vector.load %arg3[%c0_3, %c0_4] : memref<16x1xf32, #tpu.memory_space<vmem>>, vector<16x1xf32>
    %4 = vector.broadcast %3 : vector<16x1xf32> to vector<16x384xf32>
    %5 = arith.addf %2, %4 : vector<16x384xf32>
    %c0_5 = arith.constant 0 : index
    %c0_6 = arith.constant 0 : index
    %6 = vector.load %arg4[%c0_5, %c0_6] : memref<16x384xf32, #tpu.memory_space<vmem>>, vector<16x384xf32>
    tpu.vector_store %arg4[%c0_5, %c0_6], %5 {strides = array<i32>} : memref<16x384xf32, #tpu.memory_space<vmem>>, vector<16x384xf32>,
    return
  }
  func.func @transform_0(%arg0: i32) -> (i32, i32) {
    %c0_i32 = arith.constant 0 : i32
    %c0_i32_0 = arith.constant 0 : i32
    %c0_i32_1 = arith.constant 0 : i32
    return %c0_i32, %c0_i32_0 : i32, i32
  }
  func.func @transform_1(%arg0: i32) -> (i32, i32) {
    %c0_i32 = arith.constant 0 : i32
    %c0_i32_0 = arith.constant 0 : i32
    return %c0_i32, %arg0 : i32, i32
  }
  func.func @transform_2(%arg0: i32) -> (i32, i32) {
    %c0_i32 = arith.constant 0 : i32
    %c0_i32_0 = arith.constant 0 : i32
    %c0_i32_1 = arith.constant 0 : i32
    return %c0_i32, %c0_i32_0 : i32, i32
  }
  func.func @transform_3(%arg0: i32) -> (i32, i32) {
    %c0_i32 = arith.constant 0 : i32
    %c0_i32_0 = arith.constant 0 : i32
    return %c0_i32, %arg0 : i32, i32
  }
}

module attributes {stable_mosaic.version = 11 : i64} {
  func.func @_max4_relu_kernel(%arg0: i32, %arg1: memref<4x768xf32, #tpu.memory_space<vmem>>, %arg2: memref<1x768xf32, #tpu.memory_space<vmem>>) attributes {dimension_semantics = [#tpu.dimension_semantics<parallel>], iteration_bounds = array<i64: 1>, scalar_prefetch = 0 : i64, scratch_operands = 0 : i64, tpu.core_type = #tpu.core_type<tc>, window_params = [{transform_indices = @transform_0, window_bounds = array<i64: 4, 768>}, {transform_indices = @transform_1, window_bounds = array<i64: 1, 768>}]} {
    %c0 = arith.constant 0 : index
    %c0_0 = arith.constant 0 : index
    %0 = vector.load %arg1[%c0, %c0_0] : memref<4x768xf32, #tpu.memory_space<vmem>>, vector<1x768xf32>
    %c1 = arith.constant 1 : index
    %c0_1 = arith.constant 0 : index
    %1 = vector.load %arg1[%c1, %c0_1] : memref<4x768xf32, #tpu.memory_space<vmem>>, vector<1x768xf32>
    %2 = arith.maximumf %0, %1 : vector<1x768xf32>
    %c2 = arith.constant 2 : index
    %c0_2 = arith.constant 0 : index
    %3 = vector.load %arg1[%c2, %c0_2] : memref<4x768xf32, #tpu.memory_space<vmem>>, vector<1x768xf32>
    %c3 = arith.constant 3 : index
    %c0_3 = arith.constant 0 : index
    %4 = vector.load %arg1[%c3, %c0_3] : memref<4x768xf32, #tpu.memory_space<vmem>>, vector<1x768xf32>
    %5 = arith.maximumf %3, %4 : vector<1x768xf32>
    %6 = arith.maximumf %2, %5 : vector<1x768xf32>
    %cst = arith.constant 0.000000e+00 : f32
    %7 = vector.broadcast %cst : f32 to vector<1x768xf32>
    %8 = arith.maximumf %6, %7 : vector<1x768xf32>
    %c0_4 = arith.constant 0 : index
    %c0_5 = arith.constant 0 : index
    %9 = vector.load %arg2[%c0_4, %c0_5] : memref<1x768xf32, #tpu.memory_space<vmem>>, vector<1x768xf32>
    tpu.vector_store %arg2[%c0_4, %c0_5], %8 {strides = array<i32>} : memref<1x768xf32, #tpu.memory_space<vmem>>, vector<1x768xf32>,
    return
  }
  func.func @transform_0(%arg0: i32) -> (i32, i32) {
    %c0_i32 = arith.constant 0 : i32
    %c0_i32_0 = arith.constant 0 : i32
    return %c0_i32, %arg0 : i32, i32
  }
  func.func @transform_1(%arg0: i32) -> (i32, i32) {
    %c0_i32 = arith.constant 0 : i32
    %c0_i32_0 = arith.constant 0 : i32
    return %c0_i32, %arg0 : i32, i32
  }
}

module attributes {stable_mosaic.version = 11 : i64} {
  func.func @_fc_loc_kernel(%arg0: memref<2x360xf32, #tpu.memory_space<vmem>>, %arg1: memref<360x32xf32, #tpu.memory_space<vmem>>, %arg2: memref<1x32xf32, #tpu.memory_space<vmem>>, %arg3: memref<32x6xf32, #tpu.memory_space<vmem>>, %arg4: memref<1x6xf32, #tpu.memory_space<vmem>>, %arg5: memref<2x6xf32, #tpu.memory_space<vmem>>) attributes {dimension_semantics = [], scalar_prefetch = 0 : i64, scratch_operands = 0 : i64, tpu.core_type = #tpu.core_type<tc>} {
    %c0 = arith.constant 0 : index
    %c0_0 = arith.constant 0 : index
    %0 = vector.load %arg0[%c0, %c0_0] : memref<2x360xf32, #tpu.memory_space<vmem>>, vector<2x360xf32>
    %c0_1 = arith.constant 0 : index
    %c0_2 = arith.constant 0 : index
    %1 = vector.load %arg1[%c0_1, %c0_2] : memref<360x32xf32, #tpu.memory_space<vmem>>, vector<360x32xf32>
    %cst = arith.constant dense<0.000000e+00> : vector<2x32xf32>
    %2 = tpu.matmul %0, %1, %cst {dimension_numbers = #tpu.dot_dimension_numbers<[1], [0], [0], [1], [0, 0, 1, 1], [], []>} : vector<2x360xf32>, vector<360x32xf32>, vector<2x32xf32> -> vector<2x32xf32>
    %c0_3 = arith.constant 0 : index
    %c0_4 = arith.constant 0 : index
    %3 = vector.load %arg2[%c0_3, %c0_4] : memref<1x32xf32, #tpu.memory_space<vmem>>, vector<1x32xf32>
    %4 = vector.broadcast %3 : vector<1x32xf32> to vector<2x32xf32>
    %5 = arith.addf %2, %4 : vector<2x32xf32>
    %cst_5 = arith.constant 0.000000e+00 : f32
    %6 = vector.broadcast %cst_5 : f32 to vector<2x32xf32>
    %7 = arith.maximumf %5, %6 : vector<2x32xf32>
    %c0_6 = arith.constant 0 : index
    %c0_7 = arith.constant 0 : index
    %8 = vector.load %arg3[%c0_6, %c0_7] : memref<32x6xf32, #tpu.memory_space<vmem>>, vector<32x6xf32>
    %cst_8 = arith.constant dense<0.000000e+00> : vector<2x6xf32>
    %9 = tpu.matmul %7, %8, %cst_8 {dimension_numbers = #tpu.dot_dimension_numbers<[1], [0], [0], [1], [0, 0, 1, 1], [], []>} : vector<2x32xf32>, vector<32x6xf32>, vector<2x6xf32> -> vector<2x6xf32>
    %c0_9 = arith.constant 0 : index
    %c0_10 = arith.constant 0 : index
    %10 = vector.load %arg4[%c0_9, %c0_10] : memref<1x6xf32, #tpu.memory_space<vmem>>, vector<1x6xf32>
    %11 = vector.broadcast %10 : vector<1x6xf32> to vector<2x6xf32>
    %12 = arith.addf %9, %11 : vector<2x6xf32>
    %c0_11 = arith.constant 0 : index
    %c0_12 = arith.constant 0 : index
    %13 = vector.load %arg5[%c0_11, %c0_12] : memref<2x6xf32, #tpu.memory_space<vmem>>, vector<2x6xf32>
    tpu.vector_store %arg5[%c0_11, %c0_12], %12 {strides = array<i32>} : memref<2x6xf32, #tpu.memory_space<vmem>>, vector<2x6xf32>,
    return
  }
}

module attributes {stable_mosaic.version = 11 : i64} {
  func.func @_affine_grid_sample_kernel(%arg0: i32, %arg1: i32, %arg2: memref<2x6xf32, #tpu.memory_space<smem>>, %arg3: memref<2x512xf32, #tpu.memory_space<vmem>>, %arg4: memref<1x144x48xf32, #tpu.memory_space<vmem>>, %arg5: memref<1x3x512xf32, #tpu.memory_space<vmem>>) attributes {dimension_semantics = [#tpu.dimension_semantics<parallel>, #tpu.dimension_semantics<parallel>], iteration_bounds = array<i64: 2, 5>, scalar_prefetch = 1 : i64, scratch_operands = 0 : i64, tpu.core_type = #tpu.core_type<tc>, window_params = [{transform_indices = @transform_0, window_bounds = array<i64: 2, 512>}, {transform_indices = @transform_1, window_bounds = array<i64: 1, 144, 48>}, {transform_indices = @transform_2, window_bounds = array<i64: 1, 3, 512>}]} {
    %c0 = arith.constant 0 : index
    %c0_0 = arith.constant 0 : index
    %0 = vector.load %arg3[%c0, %c0_0] : memref<2x512xf32, #tpu.memory_space<vmem>>, vector<1x512xf32>
    %c1 = arith.constant 1 : index
    %c0_1 = arith.constant 0 : index
    %1 = vector.load %arg3[%c1, %c0_1] : memref<2x512xf32, #tpu.memory_space<vmem>>, vector<1x512xf32>
    %2 = arith.index_cast %arg0 : i32 to index
    %c0_2 = arith.constant 0 : index
    %3 = memref.load %arg2[%2, %c0_2] : memref<2x6xf32, #tpu.memory_space<smem>>
    %4 = arith.index_cast %arg0 : i32 to index
    %c1_3 = arith.constant 1 : index
    %5 = memref.load %arg2[%4, %c1_3] : memref<2x6xf32, #tpu.memory_space<smem>>
    %6 = arith.index_cast %arg0 : i32 to index
    %c2 = arith.constant 2 : index
    %7 = memref.load %arg2[%6, %c2] : memref<2x6xf32, #tpu.memory_space<smem>>
    %8 = arith.index_cast %arg0 : i32 to index
    %c3 = arith.constant 3 : index
    %9 = memref.load %arg2[%8, %c3] : memref<2x6xf32, #tpu.memory_space<smem>>
    %10 = arith.index_cast %arg0 : i32 to index
    %c4 = arith.constant 4 : index
    %11 = memref.load %arg2[%10, %c4] : memref<2x6xf32, #tpu.memory_space<smem>>
    %12 = arith.index_cast %arg0 : i32 to index
    %c5 = arith.constant 5 : index
    %13 = memref.load %arg2[%12, %c5] : memref<2x6xf32, #tpu.memory_space<smem>>
    %14 = vector.broadcast %3 : f32 to vector<1x512xf32>
    %15 = arith.mulf %14, %0 : vector<1x512xf32>
    %16 = vector.broadcast %5 : f32 to vector<1x512xf32>
    %17 = arith.mulf %16, %1 : vector<1x512xf32>
    %18 = arith.addf %15, %17 : vector<1x512xf32>
    %19 = vector.broadcast %7 : f32 to vector<1x512xf32>
    %20 = arith.addf %18, %19 : vector<1x512xf32>
    %21 = vector.broadcast %9 : f32 to vector<1x512xf32>
    %22 = arith.mulf %21, %0 : vector<1x512xf32>
    %23 = vector.broadcast %11 : f32 to vector<1x512xf32>
    %24 = arith.mulf %23, %1 : vector<1x512xf32>
    %25 = arith.addf %22, %24 : vector<1x512xf32>
    %26 = vector.broadcast %13 : f32 to vector<1x512xf32>
    %27 = arith.addf %25, %26 : vector<1x512xf32>
    %cst = arith.constant 1.000000e+00 : f32
    %28 = vector.broadcast %cst : f32 to vector<1x512xf32>
    %29 = arith.addf %20, %28 : vector<1x512xf32>
    %cst_4 = arith.constant 4.700000e+01 : f32
    %30 = vector.broadcast %cst_4 : f32 to vector<1x512xf32>
    %31 = arith.mulf %29, %30 : vector<1x512xf32>
    %cst_5 = arith.constant 1.000000e+00 : f32
    %32 = vector.broadcast %cst_5 : f32 to vector<1x512xf32>
    %33 = arith.subf %31, %32 : vector<1x512xf32>
    %cst_6 = arith.constant 5.000000e-01 : f32
    %34 = vector.broadcast %cst_6 : f32 to vector<1x512xf32>
    %35 = arith.mulf %33, %34 : vector<1x512xf32>
    %cst_7 = arith.constant 1.000000e+00 : f32
    %36 = vector.broadcast %cst_7 : f32 to vector<1x512xf32>
    %37 = arith.addf %27, %36 : vector<1x512xf32>
    %cst_8 = arith.constant 4.700000e+01 : f32
    %38 = vector.broadcast %cst_8 : f32 to vector<1x512xf32>
    %39 = arith.mulf %37, %38 : vector<1x512xf32>
    %cst_9 = arith.constant 1.000000e+00 : f32
    %40 = vector.broadcast %cst_9 : f32 to vector<1x512xf32>
    %41 = arith.subf %39, %40 : vector<1x512xf32>
    %cst_10 = arith.constant 5.000000e-01 : f32
    %42 = vector.broadcast %cst_10 : f32 to vector<1x512xf32>
    %43 = arith.mulf %41, %42 : vector<1x512xf32>
    %44 = math.floor %35 : vector<1x512xf32>
    %45 = math.floor %43 : vector<1x512xf32>
    %46 = arith.subf %35, %44 : vector<1x512xf32>
    %cst_11 = arith.constant 1.000000e+00 : f32
    %47 = vector.broadcast %cst_11 : f32 to vector<1x512xf32>
    %48 = arith.subf %47, %46 : vector<1x512xf32>
    %49 = arith.subf %43, %45 : vector<1x512xf32>
    %cst_12 = arith.constant 1.000000e+00 : f32
    %50 = vector.broadcast %cst_12 : f32 to vector<1x512xf32>
    %51 = arith.subf %50, %49 : vector<1x512xf32>
    %52 = arith.fptosi %44 : vector<1x512xf32> to vector<1x512xi32>
    %53 = arith.fptosi %45 : vector<1x512xf32> to vector<1x512xi32>
    %54 = tpu.iota {dimensions = array<i32: 0>} : vector<48x512xi32>
    %55 = tpu.iota {dimensions = array<i32: 0>} : vector<48x512xi32>
    %56 = vector.broadcast %52 : vector<1x512xi32> to vector<48x512xi32>
    %57 = arith.cmpi eq, %54, %56 : vector<48x512xi32>
    %58 = arith.extui %57 : vector<48x512xi1> to vector<48x512xi32>
    %59 = arith.sitofp %58 : vector<48x512xi32> to vector<48x512xf32>
    %60 = vector.broadcast %48 : vector<1x512xf32> to vector<48x512xf32>
    %61 = arith.mulf %60, %59 : vector<48x512xf32>
    %c1_i32 = arith.constant 1 : i32
    %62 = vector.broadcast %c1_i32 : i32 to vector<1x512xi32>
    %63 = arith.addi %52, %62 : vector<1x512xi32>
    %64 = vector.broadcast %63 : vector<1x512xi32> to vector<48x512xi32>
    %65 = arith.cmpi eq, %54, %64 : vector<48x512xi32>
    %66 = arith.extui %65 : vector<48x512xi1> to vector<48x512xi32>
    %67 = arith.sitofp %66 : vector<48x512xi32> to vector<48x512xf32>
    %68 = vector.broadcast %46 : vector<1x512xf32> to vector<48x512xf32>
    %69 = arith.mulf %68, %67 : vector<48x512xf32>
    %70 = arith.addf %61, %69 : vector<48x512xf32>
    %71 = vector.broadcast %53 : vector<1x512xi32> to vector<48x512xi32>
    %72 = arith.cmpi eq, %55, %71 : vector<48x512xi32>
    %73 = arith.extui %72 : vector<48x512xi1> to vector<48x512xi32>
    %74 = arith.sitofp %73 : vector<48x512xi32> to vector<48x512xf32>
    %75 = vector.broadcast %51 : vector<1x512xf32> to vector<48x512xf32>
    %76 = arith.mulf %75, %74 : vector<48x512xf32>
    %c1_i32_13 = arith.constant 1 : i32
    %77 = vector.broadcast %c1_i32_13 : i32 to vector<1x512xi32>
    %78 = arith.addi %53, %77 : vector<1x512xi32>
    %79 = vector.broadcast %78 : vector<1x512xi32> to vector<48x512xi32>
    %80 = arith.cmpi eq, %55, %79 : vector<48x512xi32>
    %81 = arith.extui %80 : vector<48x512xi1> to vector<48x512xi32>
    %82 = arith.sitofp %81 : vector<48x512xi32> to vector<48x512xf32>
    %83 = vector.broadcast %49 : vector<1x512xf32> to vector<48x512xf32>
    %84 = arith.mulf %83, %82 : vector<48x512xf32>
    %85 = arith.addf %76, %84 : vector<48x512xf32>
    %c0_14 = arith.constant 0 : index
    %c0_15 = arith.constant 0 : index
    %c0_16 = arith.constant 0 : index
    %86 = vector.load %arg4[%c0_14, %c0_15, %c0_16] : memref<1x144x48xf32, #tpu.memory_space<vmem>>, vector<1x144x48xf32>
    %87 = vector.shape_cast %86 : vector<1x144x48xf32> to vector<144x48xf32>
    %cst_17 = arith.constant dense<0.000000e+00> : vector<144x512xf32>
    %88 = tpu.matmul %87, %70, %cst_17 {dimension_numbers = #tpu.dot_dimension_numbers<[1], [0], [0], [1], [0, 0, 1, 1], [], []>} : vector<144x48xf32>, vector<48x512xf32>, vector<144x512xf32> -> vector<144x512xf32>
    %89 = vector.extract_strided_slice %88 {offsets = [0, 0], sizes = [48, 512], strides = [1, 1]} : vector<144x512xf32> to vector<48x512xf32>
    %90 = arith.mulf %89, %85 : vector<48x512xf32>
    %cst_18 = arith.constant dense<0.000000e+00> : vector<512xf32>
    %91 = vector.multi_reduction <add>, %90, %cst_18 [0] : vector<48x512xf32> to vector<512xf32>
    %92 = vector.shape_cast %91 : vector<512xf32> to vector<1x512xf32>
    %c0_19 = arith.constant 0 : index
    %c0_20 = arith.constant 0 : index
    %c0_21 = arith.constant 0 : index
    %93 = vector.load %arg5[%c0_19, %c0_20, %c0_21] : memref<1x3x512xf32, #tpu.memory_space<vmem>>, vector<1x1x512xf32>
    %94 = vector.shape_cast %93 : vector<1x1x512xf32> to vector<1x512xf32>
    %95 = vector.shape_cast %92 : vector<1x512xf32> to vector<1x1x512xf32>
    tpu.vector_store %arg5[%c0_19, %c0_20, %c0_21], %95 {strides = array<i32>} : memref<1x3x512xf32, #tpu.memory_space<vmem>>, vector<1x1x512xf32>,
    %96 = vector.extract_strided_slice %88 {offsets = [48, 0], sizes = [48, 512], strides = [1, 1]} : vector<144x512xf32> to vector<48x512xf32>
    %97 = arith.mulf %96, %85 : vector<48x512xf32>
    %cst_22 = arith.constant dense<0.000000e+00> : vector<512xf32>
    %98 = vector.multi_reduction <add>, %97, %cst_22 [0] : vector<48x512xf32> to vector<512xf32>
    %99 = vector.shape_cast %98 : vector<512xf32> to vector<1x512xf32>
    %c0_23 = arith.constant 0 : index
    %c1_24 = arith.constant 1 : index
    %c0_25 = arith.constant 0 : index
    %100 = vector.load %arg5[%c0_23, %c1_24, %c0_25] : memref<1x3x512xf32, #tpu.memory_space<vmem>>, vector<1x1x512xf32>
    %101 = vector.shape_cast %100 : vector<1x1x512xf32> to vector<1x512xf32>
    %102 = vector.shape_cast %99 : vector<1x512xf32> to vector<1x1x512xf32>
    tpu.vector_store %arg5[%c0_23, %c1_24, %c0_25], %102 {strides = array<i32>} : memref<1x3x512xf32, #tpu.memory_space<vmem>>, vector<1x1x512xf32>,
    %103 = vector.extract_strided_slice %88 {offsets = [96, 0], sizes = [48, 512], strides = [1, 1]} : vector<144x512xf32> to vector<48x512xf32>
    %104 = arith.mulf %103, %85 : vector<48x512xf32>
    %cst_26 = arith.constant dense<0.000000e+00> : vector<512xf32>
    %105 = vector.multi_reduction <add>, %104, %cst_26 [0] : vector<48x512xf32> to vector<512xf32>
    %106 = vector.shape_cast %105 : vector<512xf32> to vector<1x512xf32>
    %c0_27 = arith.constant 0 : index
    %c2_28 = arith.constant 2 : index
    %c0_29 = arith.constant 0 : index
    %107 = vector.load %arg5[%c0_27, %c2_28, %c0_29] : memref<1x3x512xf32, #tpu.memory_space<vmem>>, vector<1x1x512xf32>
    %108 = vector.shape_cast %107 : vector<1x1x512xf32> to vector<1x512xf32>
    %109 = vector.shape_cast %106 : vector<1x512xf32> to vector<1x1x512xf32>
    tpu.vector_store %arg5[%c0_27, %c2_28, %c0_29], %109 {strides = array<i32>} : memref<1x3x512xf32, #tpu.memory_space<vmem>>, vector<1x1x512xf32>,
    return
  }
  func.func @transform_0(%arg0: i32, %arg1: i32, %arg2: memref<2x6xf32, #tpu.memory_space<smem>>) -> (i32, i32) {
    %c0_i32 = arith.constant 0 : i32
    %c0_i32_0 = arith.constant 0 : i32
    return %c0_i32, %arg1 : i32, i32
  }
  func.func @transform_1(%arg0: i32, %arg1: i32, %arg2: memref<2x6xf32, #tpu.memory_space<smem>>) -> (i32, i32, i32) {
    %c0_i32 = arith.constant 0 : i32
    %c0_i32_0 = arith.constant 0 : i32
    %c0_i32_1 = arith.constant 0 : i32
    return %arg0, %c0_i32, %c0_i32_0 : i32, i32, i32
  }
  func.func @transform_2(%arg0: i32, %arg1: i32, %arg2: memref<2x6xf32, #tpu.memory_space<smem>>) -> (i32, i32, i32) {
    %c0_i32 = arith.constant 0 : i32
    %c0_i32_0 = arith.constant 0 : i32
    return %arg0, %c0_i32, %arg1 : i32, i32, i32
  }
}

</mosaic_0001>

<llo_original>
// kernel: stn_small_forward.6
$region0: #{stn_small_forward.6}
  #allocation0 [shape = 'u32[]', space=smem, size = 0x4, offset = 0x4, fixed_abs, tag = 'smem constant byte address 0x4 - core index']
  #allocation1 [shape = 'u32[144,128]{1,0:T(1,128)}', space=vmem, size = 0x12000, scoped, tag = 'internal scratch']
  %s0 = inlined_call_operand.vmem [shape: bf16[8,384], index: 0, kind: input, shape index: {}]
  %s1 = inlined_call_operand.vmem [shape: bf16[384,3072], index: 1, kind: input, shape index: {}]
  %s2 = inlined_call_operand.vmem [shape: f32[8,1], index: 2, kind: input, shape index: {}]
  %s3 = inlined_call_operand.vmem [shape: f32[8,3072], index: 3, kind: output, shape index: {}]
  %s4 = sld [smem:[#allocation0]]
  $region68: #{stn_small_forward.6} parent=0
    _
  %s6 = ssub.s32 1, %s4
  %s7 = scalar_select 0, %s6, %s4
  $region1: #{stn_small_forward.6} parent=0
    #allocation2 [shape = 'u8[786432]{0}', space=vmem, size = 0xc0000, scoped, tag = 'input window, operand 1']
    loop: start=0, step=1, limit=8
    $region2: #{stn_small_forward.6} parent=1 // loop_pre_header
      _
    $region3: #{stn_small_forward.6} parent=1 // loop_header
      %s9 = sphi 0, %s13
      %p10 = scmp.ge.s32.totalorder %s9, 8
      %s17 = sphi 0, %s17
      %s19 = sphi 0, %s17
      %s20 = sphi 0, %s19
      %s34 = sphi 0, %s20
      %s40 = sphi 0, %s42
      %s43 = sphi 0, %s40
      %s44 = sphi 0, %s43
      %s60 = sphi 0, %s44
      %s64 = sphi 0, %s64
      %s66 = sphi 0, %s64
      %s67 = sphi 0, %s66
      %s81 = sphi 0, %s67
      %s87 = sphi 0, %s89
      %s90 = sphi 0, %s87
      %s91 = sphi 0, %s90
      %s107 = sphi 0, %s91
    $region4: #{stn_small_forward.6} parent=1 // loop_header_branch
      %12 = sbr.rel (%p10) target = $region8
    $region5: #{stn_small_forward.6} parent=1 // loop_body
      %s14 = ssub.s32 %s9, 1
      %s15 = ssub.s32 %s9, 2
      %s16 = sadd.s32 %s9, 1
      %s18 = sadd.s32 %s17, 1
      %p21 = scmp.eq.s32.totalorder %s9, 5
      %p22 = scmp.ne.s32.totalorder %s17, %s19
      %p23 = scmp.eq.s32.totalorder %s9, 0
      %p24 = por %p22, %p23
      %p25 = scmp.ne.s32.totalorder %s17, %s19
      %p26 = scmp.eq.s32.totalorder %s14, 5
      %p27 = por %p25, %p26
      %p28 = scmp.ne.s32.totalorder %s19, %s20
      %p29 = scmp.eq.s32.totalorder %s14, 0
      %p30 = por %p28, %p29
      %p31 = scmp.ne.s32.totalorder %s19, %s20
      %p32 = scmp.eq.s32.totalorder %s15, 5
      %p33 = por %p31, %p32
      %p35 = scmp.ne.s32.totalorder %s20, %s34
      %p36 = scmp.eq.s32.totalorder %s15, 0
      %p37 = por %p35, %p36
      %s38 = ssub.s32 %s9, %s16
      %p39 = scmp.eq.s32.totalorder %s38, 0
      %s41 = sadd.s32 %s40, 1
      %s42 = scalar_select %p39, %s40, %s41
      %p45 = pneg %p39
      %p46 = scmp.eq.s32.totalorder %s9, 5
      %p47 = por %p45, %p46
      %p48 = scmp.ne.s32.totalorder %s40, %s43
      %p49 = scmp.eq.s32.totalorder %s9, 0
      %p50 = por %p48, %p49
      %p51 = scmp.ne.s32.totalorder %s40, %s43
      %p52 = scmp.eq.s32.totalorder %s14, 5
      %p53 = por %p51, %p52
      %p54 = scmp.ne.s32.totalorder %s43, %s44
      %p55 = scmp.eq.s32.totalorder %s14, 0
      %p56 = por %p54, %p55
      %p57 = scmp.ne.s32.totalorder %s43, %s44
      %p58 = scmp.eq.s32.totalorder %s15, 5
      %p59 = por %p57, %p58
      %p61 = scmp.ne.s32.totalorder %s44, %s60
      %p62 = scmp.eq.s32.totalorder %s15, 0
      %p63 = por %p61, %p62
      %s65 = sadd.s32 %s64, 1
      %p68 = scmp.eq.s32.totalorder %s9, 5
      %p69 = scmp.ne.s32.totalorder %s64, %s66
      %p70 = scmp.eq.s32.totalorder %s9, 0
      %p71 = por %p69, %p70
      %p72 = scmp.ne.s32.totalorder %s64, %s66
      %p73 = scmp.eq.s32.totalorder %s14, 5
      %p74 = por %p72, %p73
      %p75 = scmp.ne.s32.totalorder %s66, %s67
      %p76 = scmp.eq.s32.totalorder %s14, 0
      %p77 = por %p75, %p76
      %p78 = scmp.ne.s32.totalorder %s66, %s67
      %p79 = scmp.eq.s32.totalorder %s15, 5
      %p80 = por %p78, %p79
      %p82 = scmp.ne.s32.totalorder %s67, %s81
      %p83 = scmp.eq.s32.totalorder %s15, 0
      %p84 = por %p82, %p83
      %s85 = ssub.s32 %s9, %s16
      %p86 = scmp.eq.s32.totalorder %s85, 0
      %s88 = sadd.s32 %s87, 1
      %s89 = scalar_select %p86, %s87, %s88
      %p92 = pneg %p86
      %p93 = scmp.eq.s32.totalorder %s9, 5
      %p94 = por %p92, %p93
      %p95 = scmp.ne.s32.totalorder %s87, %s90
      %p96 = scmp.eq.s32.totalorder %s9, 0
      %p97 = por %p95, %p96
      %p98 = scmp.ne.s32.totalorder %s87, %s90
      %p99 = scmp.eq.s32.totalorder %s14, 5
      %p100 = por %p98, %p99
      %p101 = scmp.ne.s32.totalorder %s90, %s91
      %p102 = scmp.eq.s32.totalorder %s14, 0
      %p103 = por %p101, %p102
      %p104 = scmp.ne.s32.totalorder %s90, %s91
      %p105 = scmp.eq.s32.totalorder %s15, 5
      %p106 = por %p104, %p105
      %p108 = scmp.ne.s32.totalorder %s91, %s107
      %p109 = scmp.eq.s32.totalorder %s15, 0
      %p110 = por %p108, %p109
      %p111 = scmp.le.s32.totalorder 1, %s9
      %p112 = scmp.lt.s32.totalorder %s9, 7
      %p113 = pnand %p111, %p112
      %p114 = pneg %p113
      // Predicated region
      $region9: #{stn_small_forward.6} parent=5 // pred_check
        _
      $region10: #{stn_small_forward.6} parent=5 // pred_check_branch
        %116 = sbr.rel (%p113) target = $region12
      $region11: #{stn_small_forward.6} parent=5 // pred_region
        %s117 = ssub.s32 %s9, 1
        // Predicated region
        $region13: #{stn_small_forward.6} parent=11 // pred_check
          %p118 = pneg %p30
        $region14: #{stn_small_forward.6} parent=11 // pred_check_branch
          %120 = sbr.rel (%p118) target = $region16
        $region15: #{stn_small_forward.6} parent=11 // pred_region
          _
        $region16: #{stn_small_forward.6} parent=11 // pred_fallthru
          _
        // Predicated region
        $region17: #{stn_small_forward.6} parent=11 // pred_check
          %p121 = pneg %p77
        $region18: #{stn_small_forward.6} parent=11 // pred_check_branch
          %123 = sbr.rel (%p121) target = $region20
        $region19: #{stn_small_forward.6} parent=11 // pred_region
          _
        $region20: #{stn_small_forward.6} parent=11 // pred_fallthru
          _
      $region12: #{stn_small_forward.6} parent=5 // pred_fallthru
        _
      %p124 = scmp.lt.s32.totalorder %s9, 6
      // Predicated region
      $region21: #{stn_small_forward.6} parent=5 // pred_check
        %p125 = pneg %p124
      $region22: #{stn_small_forward.6} parent=5 // pred_check_branch
        %127 = sbr.rel (%p125) target = $region24
      $region23: #{stn_small_forward.6} parent=5 // pred_region
        // Predicated region
        $region25: #{stn_small_forward.6} parent=23 // pred_check
          %p128 = pneg %p50
        $region26: #{stn_small_forward.6} parent=23 // pred_check_branch
          %130 = sbr.rel (%p128) target = $region28
        $region27: #{stn_small_forward.6} parent=23 // pred_region
          %s131 = sand.u32 %s40, 1
          %s132 = sand.u32 %s40, 1
          %s133 = smul.addr %s132, 768
          %s134 = scalar_lea.vmem [#allocation2], %s133
          %s135 = smul.u32 4, %s9
          %s136 = smul.addr %s135, 4
          %s137 = scalar_lea.vmem %s1, %s136
          // Predicated region
          $region29: #{stn_small_forward.6} parent=27 // pred_check
            _
          $region30: #{stn_small_forward.6} parent=27 // pred_check_branch
            %139 = sbr.rel (0) target = $region32
          $region31: #{stn_small_forward.6} parent=27 // pred_region
            // Predicated region
            $region33: #{stn_small_forward.6} parent=31 // pred_check
              _
            $region34: #{stn_small_forward.6} parent=31 // pred_check_branch
              %141 = sbr.rel (0) target = $region36
            $region35: #{stn_small_forward.6} parent=31 // pred_region
              loop: start=0, step=1, limit=1
              $region37: #{stn_small_forward.6} parent=35 // loop_pre_header
                _
              $region38: #{stn_small_forward.6} parent=35 // loop_header
                %s143 = sphi 0, %s147
                %p144 = scmp.ge.s32.totalorder %s143, 1
                %s148 = sphi %s137, %s137
                %s149 = sphi %s134, %s134
              $region39: #{stn_small_forward.6} parent=35 // loop_header_branch
                %146 = sbr.rel (%p144) target = $region43
              $region40: #{stn_small_forward.6} parent=35 // loop_body
                %v150 = vld [vmem:[%s148] sm:$0xff]
                %151 = vst [vmem:[%s149] sm:$0xff] %v150
                %v152 = vld [vmem:[%s148 + $0x8] sm:$0xff]
                %153 = vst [vmem:[%s149 + $0x8] sm:$0xff] %v152
                %v154 = vld [vmem:[%s148 + $0x60] sm:$0xff]
                %155 = vst [vmem:[%s149 + $0x10] sm:$0xff] %v154
                %v156 = vld [vmem:[%s148 + $0x68] sm:$0xff]
                %157 = vst [vmem:[%s149 + $0x18] sm:$0xff] %v156
                %v158 = vld [vmem:[%s148 + $0xc0] sm:$0xff]
                %159 = vst [vmem:[%s149 + $0x20] sm:$0xff] %v158
                %v160 = vld [vmem:[%s148 + $0xc8] sm:$0xff]
                %161 = vst [vmem:[%s149 + $0x28] sm:$0xff] %v160
                %v162 = vld [vmem:[%s148 + $0x120] sm:$0xff]
                %163 = vst [vmem:[%s149 + $0x30] sm:$0xff] %v162
                %v164 = vld [vmem:[%s148 + $0x128] sm:$0xff]
                %165 = vst [vmem:[%s149 + $0x38] sm:$0xff] %v164
                %v166 = vld [vmem:[%s148 + $0x180] sm:$0xff]
                %167 = vst [vmem:[%s149 + $0x40] sm:$0xff] %v166
                %v168 = vld [vmem:[%s148 + $0x188] sm:$0xff]
                %169 = vst [vmem:[%s149 + $0x48] sm:$0xff] %v168
                %v170 = vld [vmem:[%s148 + $0x1e0] sm:$0xff]
                %171 = vst [vmem:[%s149 + $0x50] sm:$0xff] %v170
                %v172 = vld [vmem:[%s148 + $0x1e8] sm:$0xff]
                %173 = vst [vmem:[%s149 + $0x58] sm:$0xff] %v172
                %v174 = vld [vmem:[%s148 + $0x240] sm:$0xff]
                %175 = vst [vmem:[%s149 + $0x60] sm:$0xff] %v174
                %v176 = vld [vmem:[%s148 + $0x248] sm:$0xff]
                %177 = vst [vmem:[%s149 + $0x68] sm:$0xff] %v176
                %v178 = vld [vmem:[%s148 + $0x2a0] sm:$0xff]
                %179 = vst [vmem:[%s149 + $0x70] sm:$0xff] %v178
                %v180 = vld [vmem:[%s148 + $0x2a8] sm:$0xff]
                %181 = vst [vmem:[%s149 + $0x78] sm:$0xff] %v180
                %v182 = vld [vmem:[%s148 + $0x300] sm:$0xff]
                %183 = vst [vmem:[%s149 + $0x80] sm:$0xff] %v182
                %v184 = vld [vmem:[%s148 + $0x308] sm:$0xff]
                %185 = vst [vmem:[%s149 + $0x88] sm:$0xff] %v184
                %v186 = vld [vmem:[%s148 + $0x360] sm:$0xff]
                %187 = vst [vmem:[%s149 + $0x90] sm:$0xff] %v186
                %v188 = vld [vmem:[%s148 + $0x368] sm:$0xff]
                %189 = vst [vmem:[%s149 + $0x98] sm:$0xff] %v188
                %v190 = vld [vmem:[%s148 + $0x3c0] sm:$0xff]
                %191 = vst [vmem:[%s149 + $0xa0] sm:$0xff] %v190
                %v192 = vld [vmem:[%s148 + $0x3c8] sm:$0xff]
                %193 = vst [vmem:[%s149 + $0xa8] sm:$0xff] %v192
                %v194 = vld [vmem:[%s148 + $0x420] sm:$0xff]
                %195 = vst [vmem:[%s149 + $0xb0] sm:$0xff] %v194
                %v196 = vld [vmem:[%s148 + $0x428] sm:$0xff]
                %197 = vst [vmem:[%s149 + $0xb8] sm:$0xff] %v196
                %v198 = vld [vmem:[%s148 + $0x480] sm:$0xff]
                %199 = vst [vmem:[%s149 + $0xc0] sm:$0xff] %v198
                %v200 = vld [vmem:[%s148 + $0x488] sm:$0xff]
                %201 = vst [vmem:[%s149 + $0xc8] sm:$0xff] %v200
                %v202 = vld [vmem:[%s148 + $0x4e0] sm:$0xff]
                %203 = vst [vmem:[%s149 + $0xd0] sm:$0xff] %v202
                %v204 = vld [vmem:[%s148 + $0x4e8] sm:$0xff]
                %205 = vst [vmem:[%s149 + $0xd8] sm:$0xff] %v204
                %v206 = vld [vmem:[%s148 + $0x540] sm:$0xff]
                %207 = vst [vmem:[%s149 + $0xe0] sm:$0xff] %v206
                %v208 = vld [vmem:[%s148 + $0x548] sm:$0xff]
                %209 = vst [vmem:[%s149 + $0xe8] sm:$0xff] %v208
                %v210 = vld [vmem:[%s148 + $0x5a0] sm:$0xff]
                %211 = vst [vmem:[%s149 + $0xf0] sm:$0xff] %v210
                %v212 = vld [vmem:[%s148 + $0x5a8] sm:$0xff]
                %213 = vst [vmem:[%s149 + $0xf8] sm:$0xff] %v212
                %v214 = vld [vmem:[%s148 + $0x600] sm:$0xff]
                %215 = vst [vmem:[%s149 + $0x100] sm:$0xff] %v214
                %v216 = vld [vmem:[%s148 + $0x608] sm:$0xff]
                %217 = vst [vmem:[%s149 + $0x108] sm:$0xff] %v216
                %v218 = vld [vmem:[%s148 + $0x660] sm:$0xff]
                %219 = vst [vmem:[%s149 + $0x110] sm:$0xff] %v218
                %v220 = vld [vmem:[%s148 + $0x668] sm:$0xff]
                %221 = vst [vmem:[%s149 + $0x118] sm:$0xff] %v220
                %v222 = vld [vmem:[%s148 + $0x6c0] sm:$0xff]
                %223 = vst [vmem:[%s149 + $0x120] sm:$0xff] %v222
                %v224 = vld [vmem:[%s148 + $0x6c8] sm:$0xff]
                %225 = vst [vmem:[%s149 + $0x128] sm:$0xff] %v224
                %v226 = vld [vmem:[%s148 + $0x720] sm:$0xff]
                %227 = vst [vmem:[%s149 + $0x130] sm:$0xff] %v226
                %v228 = vld [vmem:[%s148 + $0x728] sm:$0xff]
                %229 = vst [vmem:[%s149 + $0x138] sm:$0xff] %v228
                %v230 = vld [vmem:[%s148 + $0x780] sm:$0xff]
                %231 = vst [vmem:[%s149 + $0x140] sm:$0xff] %v230
                %v232 = vld [vmem:[%s148 + $0x788] sm:$0xff]
                %233 = vst [vmem:[%s149 + $0x148] sm:$0xff] %v232
                %v234 = vld [vmem:[%s148 + $0x7e0] sm:$0xff]
                %235 = vst [vmem:[%s149 + $0x150] sm:$0xff] %v234
                %v236 = vld [vmem:[%s148 + $0x7e8] sm:$0xff]
                %237 = vst [vmem:[%s149 + $0x158] sm:$0xff] %v236
                %v238 = vld [vmem:[%s148 + $0x840] sm:$0xff]
                %239 = vst [vmem:[%s149 + $0x160] sm:$0xff] %v238
                %v240 = vld [vmem:[%s148 + $0x848] sm:$0xff]
                %241 = vst [vmem:[%s149 + $0x168] sm:$0xff] %v240
                %v242 = vld [vmem:[%s148 + $0x8a0] sm:$0xff]
                %243 = vst [vmem:[%s149 + $0x170] sm:$0xff] %v242
                %v244 = vld [vmem:[%s148 + $0x8a8] sm:$0xff]
                %245 = vst [vmem:[%s149 + $0x178] sm:$0xff] %v244
                %v246 = vld [vmem:[%s148 + $0x900] sm:$0xff]
                %247 = vst [vmem:[%s149 + $0x180] sm:$0xff] %v246
                %v248 = vld [vmem:[%s148 + $0x908] sm:$0xff]
                %249 = vst [vmem:[%s149 + $0x188] sm:$0xff] %v248
                %v250 = vld [vmem:[%s148 + $0x960] sm:$0xff]
                %251 = vst [vmem:[%s149 + $0x190] sm:$0xff] %v250
                %v252 = vld [vmem:[%s148 + $0x968] sm:$0xff]
                %253 = vst [vmem:[%s149 + $0x198] sm:$0xff] %v252
                %v254 = vld [vmem:[%s148 + $0x9c0] sm:$0xff]
                %255 = vst [vmem:[%s149 + $0x1a0] sm:$0xff] %v254
                %v256 = vld [vmem:[%s148 + $0x9c8] sm:$0xff]
                %257 = vst [vmem:[%s149 + $0x1a8] sm:$0xff] %v256
                %v258 = vld [vmem:[%s148 + $0xa20] sm:$0xff]
                %259 = vst [vmem:[%s149 + $0x1b0] sm:$0xff] %v258
                %v260 = vld [vmem:[%s148 + $0xa28] sm:$0xff]
                %261 = vst [vmem:[%s149 + $0x1b8] sm:$0xff] %v260
                %v262 = vld [vmem:[%s148 + $0xa80] sm:$0xff]
                %263 = vst [vmem:[%s149 + $0x1c0] sm:$0xff] %v262
                %v264 = vld [vmem:[%s148 + $0xa88] sm:$0xff]
                %265 = vst [vmem:[%s149 + $0x1c8] sm:$0xff] %v264
                %v266 = vld [vmem:[%s148 + $0xae0] sm:$0xff]
                %267 = vst [vmem:[%s149 + $0x1d0] sm:$0xff] %v266
                %v268 = vld [vmem:[%s148 + $0xae8] sm:$0xff]
                %269 = vst [vmem:[%s149 + $0x1d8] sm:$0xff] %v268
                %v270 = vld [vmem:[%s148 + $0xb40] sm:$0xff]
                %271 = vst [vmem:[%s149 + $0x1e0] sm:$0xff] %v270
                %v272 = vld [vmem:[%s148 + $0xb48] sm:$0xff]
                %273 = vst [vmem:[%s149 + $0x1e8] sm:$0xff] %v272
                %v274 = vld [vmem:[%s148 + $0xba0] sm:$0xff]
                %275 = vst [vmem:[%s149 + $0x1f0] sm:$0xff] %v274
                %v276 = vld [vmem:[%s148 + $0xba8] sm:$0xff]
                %277 = vst [vmem:[%s149 + $0x1f8] sm:$0xff] %v276
                %v278 = vld [vmem:[%s148 + $0xc00] sm:$0xff]
                %279 = vst [vmem:[%s149 + $0x200] sm:$0xff] %v278
                %v280 = vld [vmem:[%s148 + $0xc08] sm:$0xff]
                %281 = vst [vmem:[%s149 + $0x208] sm:$0xff] %v280
                %v282 = vld [vmem:[%s148 + $0xc60] sm:$0xff]
                %283 = vst [vmem:[%s149 + $0x210] sm:$0xff] %v282
                %v284 = vld [vmem:[%s148 + $0xc68] sm:$0xff]
                %285 = vst [vmem:[%s149 + $0x218] sm:$0xff] %v284
                %v286 = vld [vmem:[%s148 + $0xcc0] sm:$0xff]
                %287 = vst [vmem:[%s149 + $0x220] sm:$0xff] %v286
                %v288 = vld [vmem:[%s148 + $0xcc8] sm:$0xff]
                %289 = vst [vmem:[%s149 + $0x228] sm:$0xff] %v288
                %v290 = vld [vmem:[%s148 + $0xd20] sm:$0xff]
                %291 = vst [vmem:[%s149 + $0x230] sm:$0xff] %v290
                %v292 = vld [vmem:[%s148 + $0xd28] sm:$0xff]
                %293 = vst [vmem:[%s149 + $0x238] sm:$0xff] %v292
                %v294 = vld [vmem:[%s148 + $0xd80] sm:$0xff]
                %295 = vst [vmem:[%s149 + $0x240] sm:$0xff] %v294
                %v296 = vld [vmem:[%s148 + $0xd88] sm:$0xff]
                %297 = vst [vmem:[%s149 + $0x248] sm:$0xff] %v296
                %v298 = vld [vmem:[%s148 + $0xde0] sm:$0xff]
                %299 = vst [vmem:[%s149 + $0x250] sm:$0xff] %v298
                %v300 = vld [vmem:[%s148 + $0xde8] sm:$0xff]
                %301 = vst [vmem:[%s149 + $0x258] sm:$0xff] %v300
                %v302 = vld [vmem:[%s148 + $0xe40] sm:$0xff]
                %303 = vst [vmem:[%s149 + $0x260] sm:$0xff] %v302
                %v304 = vld [vmem:[%s148 + $0xe48] sm:$0xff]
                %305 = vst [vmem:[%s149 + $0x268] sm:$0xff] %v304
                %v306 = vld [vmem:[%s148 + $0xea0] sm:$0xff]
                %307 = vst [vmem:[%s149 + $0x270] sm:$0xff] %v306
                %v308 = vld [vmem:[%s148 + $0xea8] sm:$0xff]
                %309 = vst [vmem:[%s149 + $0x278] sm:$0xff] %v308
                %v310 = vld [vmem:[%s148 + $0xf00] sm:$0xff]
                %311 = vst [vmem:[%s149 + $0x280] sm:$0xff] %v310
                %v312 = vld [vmem:[%s148 + $0xf08] sm:$0xff]
                %313 = vst [vmem:[%s149 + $0x288] sm:$0xff] %v312
                %v314 = vld [vmem:[%s148 + $0xf60] sm:$0xff]
                %315 = vst [vmem:[%s149 + $0x290] sm:$0xff] %v314
                %v316 = vld [vmem:[%s148 + $0xf68] sm:$0xff]
                %317 = vst [vmem:[%s149 + $0x298] sm:$0xff] %v316
                %v318 = vld [vmem:[%s148 + $0xfc0] sm:$0xff]
                %319 = vst [vmem:[%s149 + $0x2a0] sm:$0xff] %v318
                %v320 = vld [vmem:[%s148 + $0xfc8] sm:$0xff]
                %321 = vst [vmem:[%s149 + $0x2a8] sm:$0xff] %v320
                %v322 = vld [vmem:[%s148 + $0x1020] sm:$0xff]
                %323 = vst [vmem:[%s149 + $0x2b0] sm:$0xff] %v322
                %v324 = vld [vmem:[%s148 + $0x1028] sm:$0xff]
                %325 = vst [vmem:[%s149 + $0x2b8] sm:$0xff] %v324
                %v326 = vld [vmem:[%s148 + $0x1080] sm:$0xff]
                %327 = vst [vmem:[%s149 + $0x2c0] sm:$0xff] %v326
                %v328 = vld [vmem:[%s148 + $0x1088] sm:$0xff]
                %329 = vst [vmem:[%s149 + $0x2c8] sm:$0xff] %v328
                %v330 = vld [vmem:[%s148 + $0x10e0] sm:$0xff]
                %331 = vst [vmem:[%s149 + $0x2d0] sm:$0xff] %v330
                %v332 = vld [vmem:[%s148 + $0x10e8] sm:$0xff]
                %333 = vst [vmem:[%s149 + $0x2d8] sm:$0xff] %v332
                %v334 = vld [vmem:[%s148 + $0x1140] sm:$0xff]
                %335 = vst [vmem:[%s149 + $0x2e0] sm:$0xff] %v334
                %v336 = vld [vmem:[%s148 + $0x1148] sm:$0xff]
                %337 = vst [vmem:[%s149 + $0x2e8] sm:$0xff] %v336
                %v338 = vld [vmem:[%s148 + $0x11a0] sm:$0xff]
                %339 = vst [vmem:[%s149 + $0x2f0] sm:$0xff] %v338
                %v340 = vld [vmem:[%s148 + $0x11a8] sm:$0xff]
                %341 = vst [vmem:[%s149 + $0x2f8] sm:$0xff] %v340
              $region41: #{stn_small_forward.6} parent=35 // loop_footer
                %s147 = sadd.s32 1, %s143
              $region42: #{stn_small_forward.6} parent=35 // loop_footer_branch
                %142 = sbr.rel target = $region38
              $region43: #{stn_small_forward.6} parent=35 // loop_exit
                _
            $region36: #{stn_small_forward.6} parent=31 // pred_fallthru
              _
            // Predicated region
            $region44: #{stn_small_forward.6} parent=31 // pred_check
              _
            $region45: #{stn_small_forward.6} parent=31 // pred_check_branch
              %343 = sbr.rel target = $region47
            $region46: #{stn_small_forward.6} parent=31 // pred_region
              _
            $region47: #{stn_small_forward.6} parent=31 // pred_fallthru
              _
          $region32: #{stn_small_forward.6} parent=27 // pred_fallthru
            _
          %344 = vnop
        $region28: #{stn_small_forward.6} parent=23 // pred_fallthru
          _
      $region24: #{stn_small_forward.6} parent=5 // pred_fallthru
        _
      %p345 = scmp.le.s32.totalorder 1, %s9
      %p346 = scmp.lt.s32.totalorder %s9, 7
      %p347 = pnand %p345, %p346
      %p348 = pneg %p347
      // Predicated region
      $region48: #{stn_small_forward.6} parent=5 // pred_check
        _
      $region49: #{stn_small_forward.6} parent=5 // pred_check_branch
        %350 = sbr.rel (%p347) target = $region51
      $region50: #{stn_small_forward.6} parent=5 // pred_region
        %s351 = ssub.s32 %s9, 1
        %s352 = sand.u32 %s43, 1
        %s353 = sand.u32 %s43, 1
        %s354 = smul.addr %s353, 768
        %s355 = scalar_lea.vmem [#allocation2], %s354
        // Predicated region
        $region52: #{stn_small_forward.6} parent=50 // pred_check
          %p356 = pneg %p56
        $region53: #{stn_small_forward.6} parent=50 // pred_check_branch
          %358 = sbr.rel (%p356) target = $region55
        $region54: #{stn_small_forward.6} parent=50 // pred_region
          _
        $region55: #{stn_small_forward.6} parent=50 // pred_fallthru
          _
        %p359 = pneg %p30
        %p360 = pneg %p27
        %s361 = sand.u32 %s43, 1
        %s362 = sand.u32 %s43, 1
        %s363 = smul.addr %s362, 768
        %s364 = scalar_lea.vmem [#allocation2], %s363
        %p365 = pneg %p56
        %p366 = pneg %p53
        %p367 = pneg %p77
        %p368 = pneg %p74
        %p369 = pneg %p103
        %p370 = pneg %p100
        %s371 = smul.u32 4, %s14
        %p372 = scmp.lt.s32.totalorder %s371, 23
        %s373 = scalar_select %p372, %s371, 23
        %s374 = smul.addr %s373, 8
        %s375 = scalar_lea.vmem %s3, %s374
        %s376 = smul.u32 4, %s14
        %s377 = smul.u32 4, %s14
        %p378 = scmp.lt.s32.totalorder %s377, 23
        %s379 = scalar_select %p378, %s377, 23
        %s380 = smul.addr %s379, 8
        %s381 = scalar_lea.vmem %s3, %s380
        %s382 = smul.u32 4, %s14
        %v384 = vld [vmem:[%s0] sm:$0xff]
        %v385 = vld [vmem:[%s0 + $0x8] sm:$0xf]
        %v386 = vld [vmem:[%s355] sm:$0xff]
        %v387 = vld [vmem:[%s355 + $0x8] sm:$0xff]
        %v388 = vld [vmem:[%s355 + $0x10] sm:$0xff]
        %v389 = vld [vmem:[%s355 + $0x18] sm:$0xff]
        %v390 = vld [vmem:[%s355 + $0x20] sm:$0xff]
        %v391 = vld [vmem:[%s355 + $0x28] sm:$0xff]
        %v392 = vld [vmem:[%s355 + $0x30] sm:$0xff]
        %v393 = vld [vmem:[%s355 + $0x38] sm:$0xff]
        %v394 = vld [vmem:[%s355 + $0x40] sm:$0xff]
        %v395 = vld [vmem:[%s355 + $0x48] sm:$0xff]
        %v396 = vld [vmem:[%s355 + $0x50] sm:$0xff]
        %v397 = vld [vmem:[%s355 + $0x58] sm:$0xff]
        %v398 = vld [vmem:[%s355 + $0x60] sm:$0xff]
        %v399 = vld [vmem:[%s355 + $0x68] sm:$0xff]
        %v400 = vld [vmem:[%s355 + $0x70] sm:$0xff]
        %v401 = vld [vmem:[%s355 + $0x78] sm:$0xff]
        %v402 = vld [vmem:[%s355 + $0x80] sm:$0xff]
        %v403 = vld [vmem:[%s355 + $0x88] sm:$0xff]
        %v404 = vld [vmem:[%s355 + $0x90] sm:$0xff]
        %v405 = vld [vmem:[%s355 + $0x98] sm:$0xff]
        %v406 = vld [vmem:[%s355 + $0xa0] sm:$0xff]
        %v407 = vld [vmem:[%s355 + $0xa8] sm:$0xff]
        %v408 = vld [vmem:[%s355 + $0xb0] sm:$0xff]
        %v409 = vld [vmem:[%s355 + $0xb8] sm:$0xff]
        %v410 = vld [vmem:[%s355 + $0xc0] sm:$0xff]
        %v411 = vld [vmem:[%s355 + $0xc8] sm:$0xff]
        %v412 = vld [vmem:[%s355 + $0xd0] sm:$0xff]
        %v413 = vld [vmem:[%s355 + $0xd8] sm:$0xff]
        %v414 = vld [vmem:[%s355 + $0xe0] sm:$0xff]
        %v415 = vld [vmem:[%s355 + $0xe8] sm:$0xff]
        %v416 = vld [vmem:[%s355 + $0xf0] sm:$0xff]
        %v417 = vld [vmem:[%s355 + $0xf8] sm:$0xff]
        %v418 = vld [vmem:[%s355 + $0x100] sm:$0xff]
        %v419 = vld [vmem:[%s355 + $0x108] sm:$0xff]
        %v420 = vld [vmem:[%s355 + $0x110] sm:$0xff]
        %v421 = vld [vmem:[%s355 + $0x118] sm:$0xff]
        %v422 = vld [vmem:[%s355 + $0x120] sm:$0xff]
        %v423 = vld [vmem:[%s355 + $0x128] sm:$0xff]
        %v424 = vld [vmem:[%s355 + $0x130] sm:$0xff]
        %v425 = vld [vmem:[%s355 + $0x138] sm:$0xff]
        %v426 = vld [vmem:[%s355 + $0x140] sm:$0xff]
        %v427 = vld [vmem:[%s355 + $0x148] sm:$0xff]
        %v428 = vld [vmem:[%s355 + $0x150] sm:$0xff]
        %v429 = vld [vmem:[%s355 + $0x158] sm:$0xff]
        %v430 = vld [vmem:[%s355 + $0x160] sm:$0xff]
        %v431 = vld [vmem:[%s355 + $0x168] sm:$0xff]
        %v432 = vld [vmem:[%s355 + $0x170] sm:$0xff]
        %v433 = vld [vmem:[%s355 + $0x178] sm:$0xff]
        %v434 = vld [vmem:[%s355 + $0x180] sm:$0xff]
        %v435 = vld [vmem:[%s355 + $0x188] sm:$0xff]
        %v436 = vld [vmem:[%s355 + $0x190] sm:$0xff]
        %v437 = vld [vmem:[%s355 + $0x198] sm:$0xff]
        %v438 = vld [vmem:[%s355 + $0x1a0] sm:$0xff]
        %v439 = vld [vmem:[%s355 + $0x1a8] sm:$0xff]
        %v440 = vld [vmem:[%s355 + $0x1b0] sm:$0xff]
        %v441 = vld [vmem:[%s355 + $0x1b8] sm:$0xff]
        %v442 = vld [vmem:[%s355 + $0x1c0] sm:$0xff]
        %v443 = vld [vmem:[%s355 + $0x1c8] sm:$0xff]
        %v444 = vld [vmem:[%s355 + $0x1d0] sm:$0xff]
        %v445 = vld [vmem:[%s355 + $0x1d8] sm:$0xff]
        %v446 = vld [vmem:[%s355 + $0x1e0] sm:$0xff]
        %v447 = vld [vmem:[%s355 + $0x1e8] sm:$0xff]
        %v448 = vld [vmem:[%s355 + $0x1f0] sm:$0xff]
        %v449 = vld [vmem:[%s355 + $0x1f8] sm:$0xff]
        %v450 = vld [vmem:[%s355 + $0x200] sm:$0xff]
        %v451 = vld [vmem:[%s355 + $0x208] sm:$0xff]
        %v452 = vld [vmem:[%s355 + $0x210] sm:$0xff]
        %v453 = vld [vmem:[%s355 + $0x218] sm:$0xff]
        %v454 = vld [vmem:[%s355 + $0x220] sm:$0xff]
        %v455 = vld [vmem:[%s355 + $0x228] sm:$0xff]
        %v456 = vld [vmem:[%s355 + $0x230] sm:$0xff]
        %v457 = vld [vmem:[%s355 + $0x238] sm:$0xff]
        %v458 = vld [vmem:[%s355 + $0x240] sm:$0xff]
        %v459 = vld [vmem:[%s355 + $0x248] sm:$0xff]
        %v460 = vld [vmem:[%s355 + $0x250] sm:$0xff]
        %v461 = vld [vmem:[%s355 + $0x258] sm:$0xff]
        %v462 = vld [vmem:[%s355 + $0x260] sm:$0xff]
        %v463 = vld [vmem:[%s355 + $0x268] sm:$0xff]
        %v464 = vld [vmem:[%s355 + $0x270] sm:$0xff]
        %v465 = vld [vmem:[%s355 + $0x278] sm:$0xff]
        %v466 = vld [vmem:[%s355 + $0x280] sm:$0xff]
        %v467 = vld [vmem:[%s355 + $0x288] sm:$0xff]
        %v468 = vld [vmem:[%s355 + $0x290] sm:$0xff]
        %v469 = vld [vmem:[%s355 + $0x298] sm:$0xff]
        %v470 = vld [vmem:[%s355 + $0x2a0] sm:$0xff]
        %v471 = vld [vmem:[%s355 + $0x2a8] sm:$0xff]
        %v472 = vld [vmem:[%s355 + $0x2b0] sm:$0xff]
        %v473 = vld [vmem:[%s355 + $0x2b8] sm:$0xff]
        %v474 = vld [vmem:[%s355 + $0x2c0] sm:$0xff]
        %v475 = vld [vmem:[%s355 + $0x2c8] sm:$0xff]
        %v476 = vld [vmem:[%s355 + $0x2d0] sm:$0xff]
        %v477 = vld [vmem:[%s355 + $0x2d8] sm:$0xff]
        %v478 = vld [vmem:[%s355 + $0x2e0] sm:$0xff]
        %v479 = vld [vmem:[%s355 + $0x2e8] sm:$0xff]
        %v480 = vld [vmem:[%s355 + $0x2f0] sm:$0xff]
        %v481 = vld [vmem:[%s355 + $0x2f8] sm:$0xff]
        %v482 = vld [vmem:[%s2] sm:$0xff]
        %484 = vset.pattern.permute.xlu0 0
        %485 = vperm.xlu0 %484, %v482
        %v486 = vpop.permute.xlu0 %485
        %v490 = vunpack.c.l.b16 %v384
        %v491 = vunpack.c.h.b16 %v384
        %v492 = vunpack.c.l.b16 %v385
        %v493 = vpack.c.b16 %v490, %v490
        %v494 = vpack.c.b16 %v491, %v491
        %v495 = vpack.c.b16 %v492, %v492
        %v595 = vunpack.c.l.b16 %v386
        %v596 = vunpack.c.h.b16 %v386
        %v597 = vunpack.c.l.b16 %v387
        %v598 = vunpack.c.h.b16 %v387
        %v599 = vunpack.c.l.b16 %v388
        %v600 = vunpack.c.h.b16 %v388
        %v601 = vunpack.c.l.b16 %v389
        %v602 = vunpack.c.h.b16 %v389
        %v603 = vunpack.c.l.b16 %v390
        %v604 = vunpack.c.h.b16 %v390
        %v605 = vunpack.c.l.b16 %v391
        %v606 = vunpack.c.h.b16 %v391
        %v607 = vunpack.c.l.b16 %v392
        %v608 = vunpack.c.h.b16 %v392
        %v609 = vunpack.c.l.b16 %v393
        %v610 = vunpack.c.h.b16 %v393
        %v611 = vunpack.c.l.b16 %v394
        %v612 = vunpack.c.h.b16 %v394
        %v613 = vunpack.c.l.b16 %v395
        %v614 = vunpack.c.h.b16 %v395
        %v615 = vunpack.c.l.b16 %v396
        %v616 = vunpack.c.h.b16 %v396
        %v617 = vunpack.c.l.b16 %v397
        %v618 = vunpack.c.h.b16 %v397
        %v619 = vunpack.c.l.b16 %v398
        %v620 = vunpack.c.h.b16 %v398
        %v621 = vunpack.c.l.b16 %v399
        %v622 = vunpack.c.h.b16 %v399
        %v623 = vunpack.c.l.b16 %v400
        %v624 = vunpack.c.h.b16 %v400
        %v625 = vunpack.c.l.b16 %v401
        %v626 = vunpack.c.h.b16 %v401
        %v627 = vunpack.c.l.b16 %v402
        %v628 = vunpack.c.h.b16 %v402
        %v629 = vunpack.c.l.b16 %v403
        %v630 = vunpack.c.h.b16 %v403
        %v631 = vunpack.c.l.b16 %v404
        %v632 = vunpack.c.h.b16 %v404
        %v633 = vunpack.c.l.b16 %v405
        %v634 = vunpack.c.h.b16 %v405
        %v635 = vunpack.c.l.b16 %v406
        %v636 = vunpack.c.h.b16 %v406
        %v637 = vunpack.c.l.b16 %v407
        %v638 = vunpack.c.h.b16 %v407
        %v639 = vunpack.c.l.b16 %v408
        %v640 = vunpack.c.h.b16 %v408
        %v641 = vunpack.c.l.b16 %v409
        %v642 = vunpack.c.h.b16 %v409
        %v643 = vunpack.c.l.b16 %v410
        %v644 = vunpack.c.h.b16 %v410
        %v645 = vunpack.c.l.b16 %v411
        %v646 = vunpack.c.h.b16 %v411
        %v647 = vunpack.c.l.b16 %v412
        %v648 = vunpack.c.h.b16 %v412
        %v649 = vunpack.c.l.b16 %v413
        %v650 = vunpack.c.h.b16 %v413
        %v651 = vunpack.c.l.b16 %v414
        %v652 = vunpack.c.h.b16 %v414
        %v653 = vunpack.c.l.b16 %v415
        %v654 = vunpack.c.h.b16 %v415
        %v655 = vunpack.c.l.b16 %v416
        %v656 = vunpack.c.h.b16 %v416
        %v657 = vunpack.c.l.b16 %v417
        %v658 = vunpack.c.h.b16 %v417
        %v659 = vunpack.c.l.b16 %v418
        %v660 = vunpack.c.h.b16 %v418
        %v661 = vunpack.c.l.b16 %v419
        %v662 = vunpack.c.h.b16 %v419
        %v663 = vunpack.c.l.b16 %v420
        %v664 = vunpack.c.h.b16 %v420
        %v665 = vunpack.c.l.b16 %v421
        %v666 = vunpack.c.h.b16 %v421
        %v667 = vunpack.c.l.b16 %v422
        %v668 = vunpack.c.h.b16 %v422
        %v669 = vunpack.c.l.b16 %v423
        %v670 = vunpack.c.h.b16 %v423
        %v671 = vunpack.c.l.b16 %v424
        %v672 = vunpack.c.h.b16 %v424
        %v673 = vunpack.c.l.b16 %v425
        %v674 = vunpack.c.h.b16 %v425
        %v675 = vunpack.c.l.b16 %v426
        %v676 = vunpack.c.h.b16 %v426
        %v677 = vunpack.c.l.b16 %v427
        %v678 = vunpack.c.h.b16 %v427
        %v679 = vunpack.c.l.b16 %v428
        %v680 = vunpack.c.h.b16 %v428
        %v681 = vunpack.c.l.b16 %v429
        %v682 = vunpack.c.h.b16 %v429
        %v683 = vunpack.c.l.b16 %v430
        %v684 = vunpack.c.h.b16 %v430
        %v685 = vunpack.c.l.b16 %v431
        %v686 = vunpack.c.h.b16 %v431
        %v687 = vunpack.c.l.b16 %v432
        %v688 = vunpack.c.h.b16 %v432
        %v689 = vunpack.c.l.b16 %v433
        %v690 = vunpack.c.h.b16 %v433
        %v691 = vunpack.c.l.b16 %v434
        %v692 = vunpack.c.h.b16 %v434
        %v693 = vunpack.c.l.b16 %v435
        %v694 = vunpack.c.h.b16 %v435
        %v695 = vunpack.c.l.b16 %v436
        %v696 = vunpack.c.h.b16 %v436
        %v697 = vunpack.c.l.b16 %v437
        %v698 = vunpack.c.h.b16 %v437
        %v699 = vunpack.c.l.b16 %v438
        %v700 = vunpack.c.h.b16 %v438
        %v701 = vunpack.c.l.b16 %v439
        %v702 = vunpack.c.h.b16 %v439
        %v703 = vunpack.c.l.b16 %v440
        %v704 = vunpack.c.h.b16 %v440
        %v705 = vunpack.c.l.b16 %v441
        %v706 = vunpack.c.h.b16 %v441
        %v707 = vunpack.c.l.b16 %v442
        %v708 = vunpack.c.h.b16 %v442
        %v709 = vunpack.c.l.b16 %v443
        %v710 = vunpack.c.h.b16 %v443
        %v711 = vunpack.c.l.b16 %v444
        %v712 = vunpack.c.h.b16 %v444
        %v713 = vunpack.c.l.b16 %v445
        %v714 = vunpack.c.h.b16 %v445
        %v715 = vunpack.c.l.b16 %v446
        %v716 = vunpack.c.h.b16 %v446
        %v717 = vunpack.c.l.b16 %v447
        %v718 = vunpack.c.h.b16 %v447
        %v719 = vunpack.c.l.b16 %v448
        %v720 = vunpack.c.h.b16 %v448
        %v721 = vunpack.c.l.b16 %v449
        %v722 = vunpack.c.h.b16 %v449
        %v723 = vunpack.c.l.b16 %v450
        %v724 = vunpack.c.h.b16 %v450
        %v725 = vunpack.c.l.b16 %v451
        %v726 = vunpack.c.h.b16 %v451
        %v727 = vunpack.c.l.b16 %v452
        %v728 = vunpack.c.h.b16 %v452
        %v729 = vunpack.c.l.b16 %v453
        %v730 = vunpack.c.h.b16 %v453
        %v731 = vunpack.c.l.b16 %v454
        %v732 = vunpack.c.h.b16 %v454
        %v733 = vunpack.c.l.b16 %v455
        %v734 = vunpack.c.h.b16 %v455
        %v735 = vunpack.c.l.b16 %v456
        %v736 = vunpack.c.h.b16 %v456
        %v737 = vunpack.c.l.b16 %v457
        %v738 = vunpack.c.h.b16 %v457
        %v739 = vunpack.c.l.b16 %v458
        %v740 = vunpack.c.h.b16 %v458
        %v741 = vunpack.c.l.b16 %v459
        %v742 = vunpack.c.h.b16 %v459
        %v743 = vunpack.c.l.b16 %v460
        %v744 = vunpack.c.h.b16 %v460
        %v745 = vunpack.c.l.b16 %v461
        %v746 = vunpack.c.h.b16 %v461
        %v747 = vunpack.c.l.b16 %v462
        %v748 = vunpack.c.h.b16 %v462
        %v749 = vunpack.c.l.b16 %v463
        %v750 = vunpack.c.h.b16 %v463
        %v751 = vunpack.c.l.b16 %v464
        %v752 = vunpack.c.h.b16 %v464
        %v753 = vunpack.c.l.b16 %v465
        %v754 = vunpack.c.h.b16 %v465
        %v755 = vunpack.c.l.b16 %v466
        %v756 = vunpack.c.h.b16 %v466
        %v757 = vunpack.c.l.b16 %v467
        %v758 = vunpack.c.h.b16 %v467
        %v759 = vunpack.c.l.b16 %v468
        %v760 = vunpack.c.h.b16 %v468
        %v761 = vunpack.c.l.b16 %v469
        %v762 = vunpack.c.h.b16 %v469
        %v763 = vunpack.c.l.b16 %v470
        %v764 = vunpack.c.h.b16 %v470
        %v765 = vunpack.c.l.b16 %v471
        %v766 = vunpack.c.h.b16 %v471
        %v767 = vunpack.c.l.b16 %v472
        %v768 = vunpack.c.h.b16 %v472
        %v769 = vunpack.c.l.b16 %v473
        %v770 = vunpack.c.h.b16 %v473
        %v771 = vunpack.c.l.b16 %v474
        %v772 = vunpack.c.h.b16 %v474
        %v773 = vunpack.c.l.b16 %v475
        %v774 = vunpack.c.h.b16 %v475
        %v775 = vunpack.c.l.b16 %v476
        %v776 = vunpack.c.h.b16 %v476
        %v777 = vunpack.c.l.b16 %v477
        %v778 = vunpack.c.h.b16 %v477
        %v779 = vunpack.c.l.b16 %v478
        %v780 = vunpack.c.h.b16 %v478
        %v781 = vunpack.c.l.b16 %v479
        %v782 = vunpack.c.h.b16 %v479
        %v783 = vunpack.c.l.b16 %v480
        %v784 = vunpack.c.h.b16 %v480
        %v785 = vunpack.c.l.b16 %v481
        %v786 = vunpack.c.h.b16 %v481
        %v787 = vpack.c.b16 %v599, %v595
        %v788 = vpack.c.b16 %v600, %v596
        %v789 = vpack.c.b16 %v601, %v597
        %v790 = vpack.c.b16 %v602, %v598
        %v791 = vpack.c.b16 %v607, %v603
        %v792 = vpack.c.b16 %v608, %v604
        %v793 = vpack.c.b16 %v609, %v605
        %v794 = vpack.c.b16 %v610, %v606
        %v795 = vpack.c.b16 %v615, %v611
        %v796 = vpack.c.b16 %v616, %v612
        %v797 = vpack.c.b16 %v617, %v613
        %v798 = vpack.c.b16 %v618, %v614
        %v799 = vpack.c.b16 %v623, %v619
        %v800 = vpack.c.b16 %v624, %v620
        %v801 = vpack.c.b16 %v625, %v621
        %v802 = vpack.c.b16 %v626, %v622
        %v803 = vpack.c.b16 %v631, %v627
        %v804 = vpack.c.b16 %v632, %v628
        %v805 = vpack.c.b16 %v633, %v629
        %v806 = vpack.c.b16 %v634, %v630
        %v807 = vpack.c.b16 %v639, %v635
        %v808 = vpack.c.b16 %v640, %v636
        %v809 = vpack.c.b16 %v641, %v637
        %v810 = vpack.c.b16 %v642, %v638
        %v811 = vpack.c.b16 %v647, %v643
        %v812 = vpack.c.b16 %v648, %v644
        %v813 = vpack.c.b16 %v649, %v645
        %v814 = vpack.c.b16 %v650, %v646
        %v815 = vpack.c.b16 %v655, %v651
        %v816 = vpack.c.b16 %v656, %v652
        %v817 = vpack.c.b16 %v657, %v653
        %v818 = vpack.c.b16 %v658, %v654
        %v819 = vpack.c.b16 %v663, %v659
        %v820 = vpack.c.b16 %v664, %v660
        %v821 = vpack.c.b16 %v665, %v661
        %v822 = vpack.c.b16 %v666, %v662
        %v823 = vpack.c.b16 %v671, %v667
        %v824 = vpack.c.b16 %v672, %v668
        %v825 = vpack.c.b16 %v673, %v669
        %v826 = vpack.c.b16 %v674, %v670
        %v827 = vpack.c.b16 %v679, %v675
        %v828 = vpack.c.b16 %v680, %v676
        %v829 = vpack.c.b16 %v681, %v677
        %v830 = vpack.c.b16 %v682, %v678
        %v831 = vpack.c.b16 %v687, %v683
        %v832 = vpack.c.b16 %v688, %v684
        %v833 = vpack.c.b16 %v689, %v685
        %v834 = vpack.c.b16 %v690, %v686
        %v835 = vpack.c.b16 %v695, %v691
        %v836 = vpack.c.b16 %v696, %v692
        %v837 = vpack.c.b16 %v697, %v693
        %v838 = vpack.c.b16 %v698, %v694
        %v839 = vpack.c.b16 %v703, %v699
        %v840 = vpack.c.b16 %v704, %v700
        %v841 = vpack.c.b16 %v705, %v701
        %v842 = vpack.c.b16 %v706, %v702
        %v843 = vpack.c.b16 %v711, %v707
        %v844 = vpack.c.b16 %v712, %v708
        %v845 = vpack.c.b16 %v713, %v709
        %v846 = vpack.c.b16 %v714, %v710
        %v847 = vpack.c.b16 %v719, %v715
        %v848 = vpack.c.b16 %v720, %v716
        %v849 = vpack.c.b16 %v721, %v717
        %v850 = vpack.c.b16 %v722, %v718
        %v851 = vpack.c.b16 %v727, %v723
        %v852 = vpack.c.b16 %v728, %v724
        %v853 = vpack.c.b16 %v729, %v725
        %v854 = vpack.c.b16 %v730, %v726
        %v855 = vpack.c.b16 %v735, %v731
        %v856 = vpack.c.b16 %v736, %v732
        %v857 = vpack.c.b16 %v737, %v733
        %v858 = vpack.c.b16 %v738, %v734
        %v859 = vpack.c.b16 %v743, %v739
        %v860 = vpack.c.b16 %v744, %v740
        %v861 = vpack.c.b16 %v745, %v741
        %v862 = vpack.c.b16 %v746, %v742
        %v863 = vpack.c.b16 %v751, %v747
        %v864 = vpack.c.b16 %v752, %v748
        %v865 = vpack.c.b16 %v753, %v749
        %v866 = vpack.c.b16 %v754, %v750
        %v867 = vpack.c.b16 %v759, %v755
        %v868 = vpack.c.b16 %v760, %v756
        %v869 = vpack.c.b16 %v761, %v757
        %v870 = vpack.c.b16 %v762, %v758
        %v871 = vpack.c.b16 %v767, %v763
        %v872 = vpack.c.b16 %v768, %v764
        %v873 = vpack.c.b16 %v769, %v765
        %v874 = vpack.c.b16 %v770, %v766
        %v875 = vpack.c.b16 %v775, %v771
        %v876 = vpack.c.b16 %v776, %v772
        %v877 = vpack.c.b16 %v777, %v773
        %v878 = vpack.c.b16 %v778, %v774
        %v879 = vpack.c.b16 %v783, %v779
        %v880 = vpack.c.b16 %v784, %v780
        %v881 = vpack.c.b16 %v785, %v781
        %v882 = vpack.c.b16 %v786, %v782
        %979 = vmatprep.subr.bf16.mxu0 %v816
        %980 = vmatpush1.bf16.msra.mxu0 %v815
        %981 = vmatprep.subr.bf16.mxu0 %v812
        %982 = vmatpush1.bf16.msra.mxu0 %v811
        %983 = vmatprep.subr.bf16.mxu0 %v808
        %984 = vmatpush1.bf16.msra.mxu0 %v807
        %985 = vmatprep.subr.bf16.mxu0 %v804
        %986 = vmatpush1.bf16.msra.mxu0 %v803
        %987 = vmatprep.subr.bf16.mxu0 %v800
        %988 = vmatpush1.bf16.msra.mxu0 %v799
        %989 = vmatprep.subr.bf16.mxu0 %v796
        %990 = vmatpush1.bf16.msra.mxu0 %v795
        %991 = vmatprep.subr.bf16.mxu0 %v792
        %992 = vmatpush1.bf16.msra.mxu0 %v791
        %993 = vmatprep.subr.bf16.mxu0 %v788
        %994 = vmatpush1.bf16.msra.mxu0 %v787
        %995 = vmatprep.subr.bf16.mxu0 %v848
        %996 = vmatpush2.bf16.msra.mxu0 %v847
        %997 = vmatprep.subr.bf16.mxu0 %v844
        %998 = vmatpush2.bf16.msra.mxu0 %v843
        %999 = vmatprep.subr.bf16.mxu0 %v840
        %1000 = vmatpush2.bf16.msra.mxu0 %v839
        %1001 = vmatprep.subr.bf16.mxu0 %v836
        %1002 = vmatpush2.bf16.msra.mxu0 %v835
        %1003 = vmatprep.subr.bf16.mxu0 %v832
        %1004 = vmatpush2.bf16.msra.mxu0 %v831
        %1005 = vmatprep.subr.bf16.mxu0 %v828
        %1006 = vmatpush2.bf16.msra.mxu0 %v827
        %1007 = vmatprep.subr.bf16.mxu0 %v824
        %1008 = vmatpush2.bf16.msra.mxu0 %v823
        %1009 = vmatprep.subr.bf16.mxu0 %v820
        %1010 = vmatpush2.bf16.msra.mxu0 %v819
        %1011 = vmatprep.mubr.bf16.mxu0 %v494
        %1012 = vmatmul.mubr.bf16.gmra.mxu0 %v493
        %v1013 = vpop.f32.mrf.mxu0
        %v1014 = vadd.f32 %v486, %v1013
        %v1015 = vpop.f32.mrf.mxu0
        %v1016 = vadd.f32 %v486, %v1015
        %v1017 = vpop.f32.mrf.mxu0
        %v1018 = vpop.f32.mrf.mxu0
        %1019 = vdwg.mxu0
        %1020 = vmatprep.subr.bf16.mxu0 %v880
        %1021 = vmatpush1.bf16.msra.mxu0 %v879
        %1022 = vmatprep.subr.bf16.mxu0 %v876
        %1023 = vmatpush1.bf16.msra.mxu0 %v875
        %1024 = vmatprep.subr.bf16.mxu0 %v872
        %1025 = vmatpush1.bf16.msra.mxu0 %v871
        %1026 = vmatprep.subr.bf16.mxu0 %v868
        %1027 = vmatpush1.bf16.msra.mxu0 %v867
        %1028 = vmatprep.subr.bf16.mxu0 %v864
        %1029 = vmatpush1.bf16.msra.mxu0 %v863
        %1030 = vmatprep.subr.bf16.mxu0 %v860
        %1031 = vmatpush1.bf16.msra.mxu0 %v859
        %1032 = vmatprep.subr.bf16.mxu0 %v856
        %1033 = vmatpush1.bf16.msra.mxu0 %v855
        %1034 = vmatprep.subr.bf16.mxu0 %v852
        %1035 = vmatpush1.bf16.msra.mxu0 %v851
        %1036 = vmatprep.subr.bf16.mxu0 0
        %1037 = vmatpush2.bf16.msra.mxu0 0
        %1038 = vmatprep.subr.bf16.mxu0 0
        %1039 = vmatpush2.bf16.msra.mxu0 0
        %1040 = vmatprep.subr.bf16.mxu0 0
        %1041 = vmatpush2.bf16.msra.mxu0 0
        %1042 = vmatprep.subr.bf16.mxu0 0
        %1043 = vmatpush2.bf16.msra.mxu0 0
        %1044 = vmatprep.subr.bf16.mxu0 0
        %1045 = vmatpush2.bf16.msra.mxu0 0
        %1046 = vmatprep.subr.bf16.mxu0 0
        %1047 = vmatpush2.bf16.msra.mxu0 0
        %1048 = vmatprep.subr.bf16.mxu0 0
        %1049 = vmatpush2.bf16.msra.mxu0 0
        %1050 = vmatprep.subr.bf16.mxu0 0
        %1051 = vmatpush2.bf16.msra.mxu0 0
        %1052 = vmatprep.mubr.bf16.mxu0 0
        %1053 = vmatmul.mubr.bf16.gmra.mxu0 %v495
        %v1054 = vpop.f32.mrf.mxu0
        %v1055 = vadd.f32 %v1014, %v1054
        %v1056 = vpop.f32.mrf.mxu0
        %v1057 = vadd.f32 %v1016, %v1056
        %v1058 = vpop.f32.mrf.mxu0
        %v1059 = vpop.f32.mrf.mxu0
        %1060 = vdwg.mxu0
        %1061 = vmatprep.subr.bf16.mxu0 %v818
        %1062 = vmatpush1.bf16.msra.mxu0 %v817
        %1063 = vmatprep.subr.bf16.mxu0 %v814
        %1064 = vmatpush1.bf16.msra.mxu0 %v813
        %1065 = vmatprep.subr.bf16.mxu0 %v810
        %1066 = vmatpush1.bf16.msra.mxu0 %v809
        %1067 = vmatprep.subr.bf16.mxu0 %v806
        %1068 = vmatpush1.bf16.msra.mxu0 %v805
        %1069 = vmatprep.subr.bf16.mxu0 %v802
        %1070 = vmatpush1.bf16.msra.mxu0 %v801
        %1071 = vmatprep.subr.bf16.mxu0 %v798
        %1072 = vmatpush1.bf16.msra.mxu0 %v797
        %1073 = vmatprep.subr.bf16.mxu0 %v794
        %1074 = vmatpush1.bf16.msra.mxu0 %v793
        %1075 = vmatprep.subr.bf16.mxu0 %v790
        %1076 = vmatpush1.bf16.msra.mxu0 %v789
        %1077 = vmatprep.subr.bf16.mxu0 %v850
        %1078 = vmatpush2.bf16.msra.mxu0 %v849
        %1079 = vmatprep.subr.bf16.mxu0 %v846
        %1080 = vmatpush2.bf16.msra.mxu0 %v845
        %1081 = vmatprep.subr.bf16.mxu0 %v842
        %1082 = vmatpush2.bf16.msra.mxu0 %v841
        %1083 = vmatprep.subr.bf16.mxu0 %v838
        %1084 = vmatpush2.bf16.msra.mxu0 %v837
        %1085 = vmatprep.subr.bf16.mxu0 %v834
        %1086 = vmatpush2.bf16.msra.mxu0 %v833
        %1087 = vmatprep.subr.bf16.mxu0 %v830
        %1088 = vmatpush2.bf16.msra.mxu0 %v829
        %1089 = vmatprep.subr.bf16.mxu0 %v826
        %1090 = vmatpush2.bf16.msra.mxu0 %v825
        %1091 = vmatprep.subr.bf16.mxu0 %v822
        %1092 = vmatpush2.bf16.msra.mxu0 %v821
        %1093 = vmatprep.mubr.bf16.mxu0 %v494
        %1094 = vmatmul.mubr.bf16.gmra.mxu0 %v493
        %v1095 = vpop.f32.mrf.mxu0
        %v1096 = vadd.f32 %v486, %v1095
        %v1097 = vpop.f32.mrf.mxu0
        %v1098 = vadd.f32 %v486, %v1097
        %v1099 = vpop.f32.mrf.mxu0
        %v1100 = vpop.f32.mrf.mxu0
        %1101 = vdwg.mxu0
        %1102 = vmatprep.subr.bf16.mxu0 %v882
        %1103 = vmatpush1.bf16.msra.mxu0 %v881
        %1104 = vmatprep.subr.bf16.mxu0 %v878
        %1105 = vmatpush1.bf16.msra.mxu0 %v877
        %1106 = vmatprep.subr.bf16.mxu0 %v874
        %1107 = vmatpush1.bf16.msra.mxu0 %v873
        %1108 = vmatprep.subr.bf16.mxu0 %v870
        %1109 = vmatpush1.bf16.msra.mxu0 %v869
        %1110 = vmatprep.subr.bf16.mxu0 %v866
        %1111 = vmatpush1.bf16.msra.mxu0 %v865
        %1112 = vmatprep.subr.bf16.mxu0 %v862
        %1113 = vmatpush1.bf16.msra.mxu0 %v861
        %1114 = vmatprep.subr.bf16.mxu0 %v858
        %1115 = vmatpush1.bf16.msra.mxu0 %v857
        %1116 = vmatprep.subr.bf16.mxu0 %v854
        %1117 = vmatpush1.bf16.msra.mxu0 %v853
        %1118 = vmatprep.subr.bf16.mxu0 0
        %1119 = vmatpush2.bf16.msra.mxu0 0
        %1120 = vmatprep.subr.bf16.mxu0 0
        %1121 = vmatpush2.bf16.msra.mxu0 0
        %1122 = vmatprep.subr.bf16.mxu0 0
        %1123 = vmatpush2.bf16.msra.mxu0 0
        %1124 = vmatprep.subr.bf16.mxu0 0
        %1125 = vmatpush2.bf16.msra.mxu0 0
        %1126 = vmatprep.subr.bf16.mxu0 0
        %1127 = vmatpush2.bf16.msra.mxu0 0
        %1128 = vmatprep.subr.bf16.mxu0 0
        %1129 = vmatpush2.bf16.msra.mxu0 0
        %1130 = vmatprep.subr.bf16.mxu0 0
        %1131 = vmatpush2.bf16.msra.mxu0 0
        %1132 = vmatprep.subr.bf16.mxu0 0
        %1133 = vmatpush2.bf16.msra.mxu0 0
        %1134 = vmatprep.mubr.bf16.mxu0 0
        %1135 = vmatmul.mubr.bf16.gmra.mxu0 %v495
        %v1136 = vpop.f32.mrf.mxu0
        %v1137 = vadd.f32 %v1096, %v1136
        %v1138 = vpop.f32.mrf.mxu0
        %v1139 = vadd.f32 %v1098, %v1138
        %v1140 = vpop.f32.mrf.mxu0
        %v1141 = vpop.f32.mrf.mxu0
        %1142 = vdwg.mxu0
        %1143 = vst [vmem:[%s381] sm:$0xff] %v1055
        %1144 = vst [vmem:[%s381 + $0x8] sm:$0xff] %v1057
        %1145 = vst [vmem:[%s381 + $0x10] sm:$0xff] %v1137
        %1146 = vst [vmem:[%s381 + $0x18] sm:$0xff] %v1139
        %s1147 = smul.u32 4, %s14
        %p1148 = scmp.lt.s32.totalorder %s1147, 23
        %s1149 = scalar_select %p1148, %s1147, 23
        %s1150 = smul.addr %s1149, 8
        %s1151 = scalar_lea.vmem %s3, %s1150
        // Predicated region
        $region56: #{stn_small_forward.6} parent=50 // pred_check
          %p1152 = pneg %p100
        $region57: #{stn_small_forward.6} parent=50 // pred_check_branch
          %1154 = sbr.rel (%p1152) target = $region59
        $region58: #{stn_small_forward.6} parent=50 // pred_region
          %s1155 = smul.u32 4, %s14
        $region59: #{stn_small_forward.6} parent=50 // pred_fallthru
          _
      $region51: #{stn_small_forward.6} parent=5 // pred_fallthru
        _
      %p1156 = scmp.le.s32.totalorder 2, %s9
      // Predicated region
      $region60: #{stn_small_forward.6} parent=5 // pred_check
        %p1157 = pneg %p1156
      $region61: #{stn_small_forward.6} parent=5 // pred_check_branch
        %1159 = sbr.rel (%p1157) target = $region63
      $region62: #{stn_small_forward.6} parent=5 // pred_region
        %s1160 = ssub.s32 %s9, 2
        // Predicated region
        $region64: #{stn_small_forward.6} parent=62 // pred_check
          %p1161 = pneg %p106
        $region65: #{stn_small_forward.6} parent=62 // pred_check_branch
          %1163 = sbr.rel (%p1161) target = $region67
        $region66: #{stn_small_forward.6} parent=62 // pred_region
          %s1164 = smul.u32 4, %s15
          %p1165 = scmp.lt.s32.totalorder %s1164, 23
          %s1166 = scalar_select %p1165, %s1164, 23
          %s1167 = smul.addr %s1166, 8
          %s1168 = scalar_lea.vmem %s3, %s1167
        $region67: #{stn_small_forward.6} parent=62 // pred_fallthru
          _
      $region63: #{stn_small_forward.6} parent=5 // pred_fallthru
        _
    $region6: #{stn_small_forward.6} parent=1 // loop_footer
      %s13 = sadd.s32 1, %s9
    $region7: #{stn_small_forward.6} parent=1 // loop_footer_branch
      %8 = sbr.rel target = $region3
    $region8: #{stn_small_forward.6} parent=1 // loop_exit
      _

// kernel: stn_small_forward.7
$region0: #{stn_small_forward.7}
  #allocation0 [shape = 'u32[]', space=smem, size = 0x4, offset = 0x4, fixed_abs, tag = 'smem constant byte address 0x4 - core index']
  #allocation1 [shape = 'u32[144,128]{1,0:T(1,128)}', space=vmem, size = 0x12000, scoped, tag = 'internal scratch']
  %s0 = inlined_call_operand.vmem [shape: f32[4,8192], index: 0, kind: input, shape index: {}]
  %s1 = inlined_call_operand.vmem [shape: f32[1,8192], index: 1, kind: output, shape index: {}]
  %s2 = sld [smem:[#allocation0]]
  $region37: #{stn_small_forward.7} parent=0
    _
  %s4 = ssub.s32 1, %s2
  %s5 = scalar_select 0, %s4, %s2
  loop: start=0, step=1, limit=4
  $region2: #{stn_small_forward.7} parent=0 // loop_pre_header
    _
  $region3: #{stn_small_forward.7} parent=0 // loop_header
    %s7 = sphi 0, %s11
    %p8 = scmp.ge.s32.totalorder %s7, 4
    %s17 = sphi 0, %s19
    %s20 = sphi 0, %s17
    %s21 = sphi 0, %s20
    %s37 = sphi 0, %s21
    %s43 = sphi 0, %s45
    %s46 = sphi 0, %s43
    %s47 = sphi 0, %s46
    %s63 = sphi 0, %s47
  $region4: #{stn_small_forward.7} parent=0 // loop_header_branch
    %10 = sbr.rel (%p8) target = $region8
  $region5: #{stn_small_forward.7} parent=0 // loop_body
    %s12 = ssub.s32 %s7, 1
    %s13 = ssub.s32 %s7, 2
    %s14 = sadd.s32 %s7, 1
    %s15 = ssub.s32 %s7, %s14
    %p16 = scmp.eq.s32.totalorder %s15, 0
    %s18 = sadd.s32 %s17, 1
    %s19 = scalar_select %p16, %s17, %s18
    %p22 = pneg %p16
    %p23 = scmp.eq.s32.totalorder %s7, 1
    %p24 = por %p22, %p23
    %p25 = scmp.ne.s32.totalorder %s17, %s20
    %p26 = scmp.eq.s32.totalorder %s7, 0
    %p27 = por %p25, %p26
    %p28 = scmp.ne.s32.totalorder %s17, %s20
    %p29 = scmp.eq.s32.totalorder %s12, 1
    %p30 = por %p28, %p29
    %p31 = scmp.ne.s32.totalorder %s20, %s21
    %p32 = scmp.eq.s32.totalorder %s12, 0
    %p33 = por %p31, %p32
    %p34 = scmp.ne.s32.totalorder %s20, %s21
    %p35 = scmp.eq.s32.totalorder %s13, 1
    %p36 = por %p34, %p35
    %p38 = scmp.ne.s32.totalorder %s21, %s37
    %p39 = scmp.eq.s32.totalorder %s13, 0
    %p40 = por %p38, %p39
    %s41 = ssub.s32 %s7, %s14
    %p42 = scmp.eq.s32.totalorder %s41, 0
    %s44 = sadd.s32 %s43, 1
    %s45 = scalar_select %p42, %s43, %s44
    %p48 = pneg %p42
    %p49 = scmp.eq.s32.totalorder %s7, 1
    %p50 = por %p48, %p49
    %p51 = scmp.ne.s32.totalorder %s43, %s46
    %p52 = scmp.eq.s32.totalorder %s7, 0
    %p53 = por %p51, %p52
    %p54 = scmp.ne.s32.totalorder %s43, %s46
    %p55 = scmp.eq.s32.totalorder %s12, 1
    %p56 = por %p54, %p55
    %p57 = scmp.ne.s32.totalorder %s46, %s47
    %p58 = scmp.eq.s32.totalorder %s12, 0
    %p59 = por %p57, %p58
    %p60 = scmp.ne.s32.totalorder %s46, %s47
    %p61 = scmp.eq.s32.totalorder %s13, 1
    %p62 = por %p60, %p61
    %p64 = scmp.ne.s32.totalorder %s47, %s63
    %p65 = scmp.eq.s32.totalorder %s13, 0
    %p66 = por %p64, %p65
    %p67 = scmp.le.s32.totalorder 1, %s7
    %p68 = scmp.lt.s32.totalorder %s7, 3
    %p69 = pnand %p67, %p68
    %p70 = pneg %p69
    // Predicated region
    $region9: #{stn_small_forward.7} parent=5 // pred_check
      _
    $region10: #{stn_small_forward.7} parent=5 // pred_check_branch
      %72 = sbr.rel (%p69) target = $region12
    $region11: #{stn_small_forward.7} parent=5 // pred_region
      %s73 = ssub.s32 %s7, 1
    $region12: #{stn_small_forward.7} parent=5 // pred_fallthru
      _
    %p74 = scmp.lt.s32.totalorder %s7, 2
    // Predicated region
    $region13: #{stn_small_forward.7} parent=5 // pred_check
      %p75 = pneg %p74
    $region14: #{stn_small_forward.7} parent=5 // pred_check_branch
      %77 = sbr.rel (%p75) target = $region16
    $region15: #{stn_small_forward.7} parent=5 // pred_region
      // Predicated region
      $region17: #{stn_small_forward.7} parent=15 // pred_check
        %p78 = pneg %p27
      $region18: #{stn_small_forward.7} parent=15 // pred_check_branch
        %80 = sbr.rel (%p78) target = $region20
      $region19: #{stn_small_forward.7} parent=15 // pred_region
        %s81 = smul.u32 32, %s7
        %p82 = scmp.lt.s32.totalorder %s81, 63
        %s83 = scalar_select %p82, %s81, 63
        %s84 = smul.addr %s83, 4
        %s85 = scalar_lea.vmem %s0, %s84
        %s86 = smul.u32 32, %s7
      $region20: #{stn_small_forward.7} parent=15 // pred_fallthru
        _
    $region16: #{stn_small_forward.7} parent=5 // pred_fallthru
      _
    %p87 = scmp.le.s32.totalorder 1, %s7
    %p88 = scmp.lt.s32.totalorder %s7, 3
    %p89 = pnand %p87, %p88
    %p90 = pneg %p89
    // Predicated region
    $region21: #{stn_small_forward.7} parent=5 // pred_check
      _
    $region22: #{stn_small_forward.7} parent=5 // pred_check_branch
      %92 = sbr.rel (%p89) target = $region24
    $region23: #{stn_small_forward.7} parent=5 // pred_region
      %s93 = ssub.s32 %s7, 1
      %s94 = smul.u32 32, %s12
      %p95 = scmp.lt.s32.totalorder %s94, 63
      %s96 = scalar_select %p95, %s94, 63
      %s97 = smul.addr %s96, 4
      %s98 = scalar_lea.vmem %s0, %s97
      %p99 = pneg %p33
      %p100 = pneg %p30
      %p101 = pneg %p59
      %p102 = pneg %p56
      %s103 = smul.u32 32, %s12
      %p104 = scmp.lt.s32.totalorder %s103, 63
      %s105 = scalar_select %p104, %s103, 63
      %s106 = scalar_lea.vmem %s1, %s105
      %s107 = smul.u32 32, %s12
      %p108 = scmp.lt.s32.totalorder %s107, 63
      %s109 = scalar_select %p108, %s107, 63
      %s110 = smul.addr %s109, 4
      %s111 = scalar_lea.vmem %s0, %s110
      %s112 = smul.u32 32, %s12
      %s113 = smul.u32 32, %s12
      %p114 = scmp.lt.s32.totalorder %s113, 63
      %s115 = scalar_select %p114, %s113, 63
      %s116 = scalar_lea.vmem %s1, %s115
      %s117 = smul.u32 32, %s12
      %v118 = vld [vmem:[%s111] ss:$4 sm:$0xff]
      %s119 = scalar_lea.vmem %s111, 32
      %v120 = vld [vmem:[%s119] ss:$4 sm:$0xff]
      %s121 = scalar_lea.vmem %s111, 64
      %v122 = vld [vmem:[%s121] ss:$4 sm:$0xff]
      %s123 = scalar_lea.vmem %s111, 96
      %v124 = vld [vmem:[%s123] ss:$4 sm:$0xff]
      %s125 = scalar_lea.vmem %s111, 1
      %v126 = vld [vmem:[%s125] ss:$4 sm:$0xff]
      %s127 = scalar_lea.vmem %s111, 33
      %v128 = vld [vmem:[%s127] ss:$4 sm:$0xff]
      %s129 = scalar_lea.vmem %s111, 65
      %v130 = vld [vmem:[%s129] ss:$4 sm:$0xff]
      %s131 = scalar_lea.vmem %s111, 97
      %v132 = vld [vmem:[%s131] ss:$4 sm:$0xff]
      %v133 = vmax.f32 %v118, %v126
      %v134 = vmax.f32 %v120, %v128
      %v135 = vmax.f32 %v122, %v130
      %v136 = vmax.f32 %v124, %v132
      %s137 = scalar_lea.vmem %s111, 2
      %v138 = vld [vmem:[%s137] ss:$4 sm:$0xff]
      %s139 = scalar_lea.vmem %s111, 34
      %v140 = vld [vmem:[%s139] ss:$4 sm:$0xff]
      %s141 = scalar_lea.vmem %s111, 66
      %v142 = vld [vmem:[%s141] ss:$4 sm:$0xff]
      %s143 = scalar_lea.vmem %s111, 98
      %v144 = vld [vmem:[%s143] ss:$4 sm:$0xff]
      %s145 = scalar_lea.vmem %s111, 3
      %v146 = vld [vmem:[%s145] ss:$4 sm:$0xff]
      %s147 = scalar_lea.vmem %s111, 35
      %v148 = vld [vmem:[%s147] ss:$4 sm:$0xff]
      %s149 = scalar_lea.vmem %s111, 67
      %v150 = vld [vmem:[%s149] ss:$4 sm:$0xff]
      %s151 = scalar_lea.vmem %s111, 99
      %v152 = vld [vmem:[%s151] ss:$4 sm:$0xff]
      %v153 = vmax.f32 %v138, %v146
      %v154 = vmax.f32 %v140, %v148
      %v155 = vmax.f32 %v142, %v150
      %v156 = vmax.f32 %v144, %v152
      %v157 = vmax.f32 %v133, %v153
      %v158 = vmax.f32 %v134, %v154
      %v159 = vmax.f32 %v135, %v155
      %v160 = vmax.f32 %v136, %v156
      %v161 = vmax.f32 %v157, 0.0
      %v162 = vmax.f32 %v158, 0.0
      %v163 = vmax.f32 %v159, 0.0
      %v164 = vmax.f32 %v160, 0.0
      %165 = vst [vmem:[%s116] sm:$0xff] %v161
      %166 = vst [vmem:[%s116 + $0x8] sm:$0xff] %v162
      %167 = vst [vmem:[%s116 + $0x10] sm:$0xff] %v163
      %168 = vst [vmem:[%s116 + $0x18] sm:$0xff] %v164
      %s169 = smul.u32 32, %s12
      %p170 = scmp.lt.s32.totalorder %s169, 63
      %s171 = scalar_select %p170, %s169, 63
      %s172 = scalar_lea.vmem %s1, %s171
      // Predicated region
      $region25: #{stn_small_forward.7} parent=23 // pred_check
        %p173 = pneg %p56
      $region26: #{stn_small_forward.7} parent=23 // pred_check_branch
        %175 = sbr.rel (%p173) target = $region28
      $region27: #{stn_small_forward.7} parent=23 // pred_region
        %s176 = smul.u32 32, %s12
      $region28: #{stn_small_forward.7} parent=23 // pred_fallthru
        _
    $region24: #{stn_small_forward.7} parent=5 // pred_fallthru
      _
    %p177 = scmp.le.s32.totalorder 2, %s7
    // Predicated region
    $region29: #{stn_small_forward.7} parent=5 // pred_check
      %p178 = pneg %p177
    $region30: #{stn_small_forward.7} parent=5 // pred_check_branch
      %180 = sbr.rel (%p178) target = $region32
    $region31: #{stn_small_forward.7} parent=5 // pred_region
      %s181 = ssub.s32 %s7, 2
      // Predicated region
      $region33: #{stn_small_forward.7} parent=31 // pred_check
        %p182 = pneg %p62
      $region34: #{stn_small_forward.7} parent=31 // pred_check_branch
        %184 = sbr.rel (%p182) target = $region36
      $region35: #{stn_small_forward.7} parent=31 // pred_region
        %s185 = smul.u32 32, %s13
        %p186 = scmp.lt.s32.totalorder %s185, 63
        %s187 = scalar_select %p186, %s185, 63
        %s188 = scalar_lea.vmem %s1, %s187
      $region36: #{stn_small_forward.7} parent=31 // pred_fallthru
        _
    $region32: #{stn_small_forward.7} parent=5 // pred_fallthru
      _
  $region6: #{stn_small_forward.7} parent=0 // loop_footer
    %s11 = sadd.s32 1, %s7
  $region7: #{stn_small_forward.7} parent=0 // loop_footer_branch
    %6 = sbr.rel target = $region3
  $region8: #{stn_small_forward.7} parent=0 // loop_exit
    _

// kernel: stn_small_forward.8
$region0: #{stn_small_forward.8}
  #allocation0 [shape = 'u32[]', space=smem, size = 0x4, offset = 0x4, fixed_abs, tag = 'smem constant byte address 0x4 - core index']
  #allocation1 [shape = 'u32[144,128]{1,0:T(1,128)}', space=vmem, size = 0x12000, scoped, tag = 'internal scratch']
  %s0 = inlined_call_operand.vmem [shape: bf16[16,512], index: 0, kind: input, shape index: {}]
  %s1 = inlined_call_operand.vmem [shape: bf16[512,384], index: 1, kind: input, shape index: {}]
  %s2 = inlined_call_operand.vmem [shape: f32[16,1], index: 2, kind: input, shape index: {}]
  %s3 = inlined_call_operand.vmem [shape: f32[16,384], index: 3, kind: output, shape index: {}]
  %s4 = sld [smem:[#allocation0]]
  $region22: #{stn_small_forward.8} parent=0
    _
  %s6 = ssub.s32 1, %s4
  %s7 = scalar_select 0, %s6, %s4
  // Predicated region
  $region2: #{stn_small_forward.8} parent=0 // pred_check
    _
  $region3: #{stn_small_forward.8} parent=0 // pred_check_branch
    %9 = sbr.rel (0) target = $region5
  $region4: #{stn_small_forward.8} parent=0 // pred_region
    _
  $region5: #{stn_small_forward.8} parent=0 // pred_fallthru
    _
  // Predicated region
  $region6: #{stn_small_forward.8} parent=0 // pred_check
    _
  $region7: #{stn_small_forward.8} parent=0 // pred_check_branch
    %11 = sbr.rel (0) target = $region9
  $region8: #{stn_small_forward.8} parent=0 // pred_region
    _
  $region9: #{stn_small_forward.8} parent=0 // pred_fallthru
    _
  // Predicated region
  $region10: #{stn_small_forward.8} parent=0 // pred_check
    _
  $region11: #{stn_small_forward.8} parent=0 // pred_check_branch
    %13 = sbr.rel (0) target = $region13
  $region12: #{stn_small_forward.8} parent=0 // pred_region
    _
  $region13: #{stn_small_forward.8} parent=0 // pred_fallthru
    _
  %v15 = vld [vmem:[%s0] sm:$0xff]
  %v16 = vld [vmem:[%s0 + $0x8] sm:$0xff]
  %v17 = vld [vmem:[%s0 + $0x10] sm:$0xff]
  %v18 = vld [vmem:[%s0 + $0x18] sm:$0xff]
  %v19 = vld [vmem:[%s1] sm:$0xff]
  %v20 = vld [vmem:[%s1 + $0x8] sm:$0xf]
  %v21 = vld [vmem:[%s1 + $0xc] sm:$0xff]
  %v22 = vld [vmem:[%s1 + $0x14] sm:$0xf]
  %v23 = vld [vmem:[%s1 + $0x18] sm:$0xff]
  %v24 = vld [vmem:[%s1 + $0x20] sm:$0xf]
  %v25 = vld [vmem:[%s1 + $0x24] sm:$0xff]
  %v26 = vld [vmem:[%s1 + $0x2c] sm:$0xf]
  %v27 = vld [vmem:[%s1 + $0x30] sm:$0xff]
  %v28 = vld [vmem:[%s1 + $0x38] sm:$0xf]
  %v29 = vld [vmem:[%s1 + $0x3c] sm:$0xff]
  %v30 = vld [vmem:[%s1 + $0x44] sm:$0xf]
  %v31 = vld [vmem:[%s1 + $0x48] sm:$0xff]
  %v32 = vld [vmem:[%s1 + $0x50] sm:$0xf]
  %v33 = vld [vmem:[%s1 + $0x54] sm:$0xff]
  %v34 = vld [vmem:[%s1 + $0x5c] sm:$0xf]
  %v35 = vld [vmem:[%s1 + $0x60] sm:$0xff]
  %v36 = vld [vmem:[%s1 + $0x68] sm:$0xf]
  %v37 = vld [vmem:[%s1 + $0x6c] sm:$0xff]
  %v38 = vld [vmem:[%s1 + $0x74] sm:$0xf]
  %v39 = vld [vmem:[%s1 + $0x78] sm:$0xff]
  %v40 = vld [vmem:[%s1 + $0x80] sm:$0xf]
  %v41 = vld [vmem:[%s1 + $0x84] sm:$0xff]
  %v42 = vld [vmem:[%s1 + $0x8c] sm:$0xf]
  %v43 = vld [vmem:[%s1 + $0x90] sm:$0xff]
  %v44 = vld [vmem:[%s1 + $0x98] sm:$0xf]
  %v45 = vld [vmem:[%s1 + $0x9c] sm:$0xff]
  %v46 = vld [vmem:[%s1 + $0xa4] sm:$0xf]
  %v47 = vld [vmem:[%s1 + $0xa8] sm:$0xff]
  %v48 = vld [vmem:[%s1 + $0xb0] sm:$0xf]
  %v49 = vld [vmem:[%s1 + $0xb4] sm:$0xff]
  %v50 = vld [vmem:[%s1 + $0xbc] sm:$0xf]
  %v51 = vld [vmem:[%s1 + $0xc0] sm:$0xff]
  %v52 = vld [vmem:[%s1 + $0xc8] sm:$0xf]
  %v53 = vld [vmem:[%s1 + $0xcc] sm:$0xff]
  %v54 = vld [vmem:[%s1 + $0xd4] sm:$0xf]
  %v55 = vld [vmem:[%s1 + $0xd8] sm:$0xff]
  %v56 = vld [vmem:[%s1 + $0xe0] sm:$0xf]
  %v57 = vld [vmem:[%s1 + $0xe4] sm:$0xff]
  %v58 = vld [vmem:[%s1 + $0xec] sm:$0xf]
  %v59 = vld [vmem:[%s1 + $0xf0] sm:$0xff]
  %v60 = vld [vmem:[%s1 + $0xf8] sm:$0xf]
  %v61 = vld [vmem:[%s1 + $0xfc] sm:$0xff]
  %v62 = vld [vmem:[%s1 + $0x104] sm:$0xf]
  %v63 = vld [vmem:[%s1 + $0x108] sm:$0xff]
  %v64 = vld [vmem:[%s1 + $0x110] sm:$0xf]
  %v65 = vld [vmem:[%s1 + $0x114] sm:$0xff]
  %v66 = vld [vmem:[%s1 + $0x11c] sm:$0xf]
  %v67 = vld [vmem:[%s1 + $0x120] sm:$0xff]
  %v68 = vld [vmem:[%s1 + $0x128] sm:$0xf]
  %v69 = vld [vmem:[%s1 + $0x12c] sm:$0xff]
  %v70 = vld [vmem:[%s1 + $0x134] sm:$0xf]
  %v71 = vld [vmem:[%s1 + $0x138] sm:$0xff]
  %v72 = vld [vmem:[%s1 + $0x140] sm:$0xf]
  %v73 = vld [vmem:[%s1 + $0x144] sm:$0xff]
  %v74 = vld [vmem:[%s1 + $0x14c] sm:$0xf]
  %v75 = vld [vmem:[%s1 + $0x150] sm:$0xff]
  %v76 = vld [vmem:[%s1 + $0x158] sm:$0xf]
  %v77 = vld [vmem:[%s1 + $0x15c] sm:$0xff]
  %v78 = vld [vmem:[%s1 + $0x164] sm:$0xf]
  %v79 = vld [vmem:[%s1 + $0x168] sm:$0xff]
  %v80 = vld [vmem:[%s1 + $0x170] sm:$0xf]
  %v81 = vld [vmem:[%s1 + $0x174] sm:$0xff]
  %v82 = vld [vmem:[%s1 + $0x17c] sm:$0xf]
  %v83 = vld [vmem:[%s1 + $0x180] sm:$0xff]
  %v84 = vld [vmem:[%s1 + $0x188] sm:$0xf]
  %v85 = vld [vmem:[%s1 + $0x18c] sm:$0xff]
  %v86 = vld [vmem:[%s1 + $0x194] sm:$0xf]
  %v87 = vld [vmem:[%s1 + $0x198] sm:$0xff]
  %v88 = vld [vmem:[%s1 + $0x1a0] sm:$0xf]
  %v89 = vld [vmem:[%s1 + $0x1a4] sm:$0xff]
  %v90 = vld [vmem:[%s1 + $0x1ac] sm:$0xf]
  %v91 = vld [vmem:[%s1 + $0x1b0] sm:$0xff]
  %v92 = vld [vmem:[%s1 + $0x1b8] sm:$0xf]
  %v93 = vld [vmem:[%s1 + $0x1bc] sm:$0xff]
  %v94 = vld [vmem:[%s1 + $0x1c4] sm:$0xf]
  %v95 = vld [vmem:[%s1 + $0x1c8] sm:$0xff]
  %v96 = vld [vmem:[%s1 + $0x1d0] sm:$0xf]
  %v97 = vld [vmem:[%s1 + $0x1d4] sm:$0xff]
  %v98 = vld [vmem:[%s1 + $0x1dc] sm:$0xf]
  %v99 = vld [vmem:[%s1 + $0x1e0] sm:$0xff]
  %v100 = vld [vmem:[%s1 + $0x1e8] sm:$0xf]
  %v101 = vld [vmem:[%s1 + $0x1ec] sm:$0xff]
  %v102 = vld [vmem:[%s1 + $0x1f4] sm:$0xf]
  %v103 = vld [vmem:[%s1 + $0x1f8] sm:$0xff]
  %v104 = vld [vmem:[%s1 + $0x200] sm:$0xf]
  %v105 = vld [vmem:[%s1 + $0x204] sm:$0xff]
  %v106 = vld [vmem:[%s1 + $0x20c] sm:$0xf]
  %v107 = vld [vmem:[%s1 + $0x210] sm:$0xff]
  %v108 = vld [vmem:[%s1 + $0x218] sm:$0xf]
  %v109 = vld [vmem:[%s1 + $0x21c] sm:$0xff]
  %v110 = vld [vmem:[%s1 + $0x224] sm:$0xf]
  %v111 = vld [vmem:[%s1 + $0x228] sm:$0xff]
  %v112 = vld [vmem:[%s1 + $0x230] sm:$0xf]
  %v113 = vld [vmem:[%s1 + $0x234] sm:$0xff]
  %v114 = vld [vmem:[%s1 + $0x23c] sm:$0xf]
  %v115 = vld [vmem:[%s1 + $0x240] sm:$0xff]
  %v116 = vld [vmem:[%s1 + $0x248] sm:$0xf]
  %v117 = vld [vmem:[%s1 + $0x24c] sm:$0xff]
  %v118 = vld [vmem:[%s1 + $0x254] sm:$0xf]
  %v119 = vld [vmem:[%s1 + $0x258] sm:$0xff]
  %v120 = vld [vmem:[%s1 + $0x260] sm:$0xf]
  %v121 = vld [vmem:[%s1 + $0x264] sm:$0xff]
  %v122 = vld [vmem:[%s1 + $0x26c] sm:$0xf]
  %v123 = vld [vmem:[%s1 + $0x270] sm:$0xff]
  %v124 = vld [vmem:[%s1 + $0x278] sm:$0xf]
  %v125 = vld [vmem:[%s1 + $0x27c] sm:$0xff]
  %v126 = vld [vmem:[%s1 + $0x284] sm:$0xf]
  %v127 = vld [vmem:[%s1 + $0x288] sm:$0xff]
  %v128 = vld [vmem:[%s1 + $0x290] sm:$0xf]
  %v129 = vld [vmem:[%s1 + $0x294] sm:$0xff]
  %v130 = vld [vmem:[%s1 + $0x29c] sm:$0xf]
  %v131 = vld [vmem:[%s1 + $0x2a0] sm:$0xff]
  %v132 = vld [vmem:[%s1 + $0x2a8] sm:$0xf]
  %v133 = vld [vmem:[%s1 + $0x2ac] sm:$0xff]
  %v134 = vld [vmem:[%s1 + $0x2b4] sm:$0xf]
  %v135 = vld [vmem:[%s1 + $0x2b8] sm:$0xff]
  %v136 = vld [vmem:[%s1 + $0x2c0] sm:$0xf]
  %v137 = vld [vmem:[%s1 + $0x2c4] sm:$0xff]
  %v138 = vld [vmem:[%s1 + $0x2cc] sm:$0xf]
  %v139 = vld [vmem:[%s1 + $0x2d0] sm:$0xff]
  %v140 = vld [vmem:[%s1 + $0x2d8] sm:$0xf]
  %v141 = vld [vmem:[%s1 + $0x2dc] sm:$0xff]
  %v142 = vld [vmem:[%s1 + $0x2e4] sm:$0xf]
  %v143 = vld [vmem:[%s1 + $0x2e8] sm:$0xff]
  %v144 = vld [vmem:[%s1 + $0x2f0] sm:$0xf]
  %v145 = vld [vmem:[%s1 + $0x2f4] sm:$0xff]
  %v146 = vld [vmem:[%s1 + $0x2fc] sm:$0xf]
  %v147 = vld [vmem:[%s2] sm:$0xff]
  %v148 = vld [vmem:[%s2 + $0x8] sm:$0xff]
  %150 = vset.pattern.permute.xlu0 0
  %151 = vperm.xlu0 %150, %v147
  %v152 = vpop.permute.xlu0 %151
  %155 = vset.pattern.permute.xlu0 0
  %156 = vperm.xlu0 %155, %v148
  %v157 = vpop.permute.xlu0 %156
  %v163 = vunpack.c.l.b16 %v15
  %v164 = vunpack.c.h.b16 %v15
  %v165 = vunpack.c.l.b16 %v16
  %v166 = vunpack.c.h.b16 %v16
  %v167 = vunpack.c.l.b16 %v17
  %v168 = vunpack.c.h.b16 %v17
  %v169 = vunpack.c.l.b16 %v18
  %v170 = vunpack.c.h.b16 %v18
  %v171 = vpack.c.b16 %v167, %v163
  %v172 = vpack.c.b16 %v168, %v164
  %v173 = vpack.c.b16 %v169, %v165
  %v174 = vpack.c.b16 %v170, %v166
  %v307 = vunpack.c.l.b16 %v19
  %v308 = vunpack.c.h.b16 %v19
  %v309 = vunpack.c.l.b16 %v20
  %v310 = vunpack.c.l.b16 %v21
  %v311 = vunpack.c.h.b16 %v21
  %v312 = vunpack.c.l.b16 %v22
  %v313 = vunpack.c.l.b16 %v23
  %v314 = vunpack.c.h.b16 %v23
  %v315 = vunpack.c.l.b16 %v24
  %v316 = vunpack.c.l.b16 %v25
  %v317 = vunpack.c.h.b16 %v25
  %v318 = vunpack.c.l.b16 %v26
  %v319 = vunpack.c.l.b16 %v27
  %v320 = vunpack.c.h.b16 %v27
  %v321 = vunpack.c.l.b16 %v28
  %v322 = vunpack.c.l.b16 %v29
  %v323 = vunpack.c.h.b16 %v29
  %v324 = vunpack.c.l.b16 %v30
  %v325 = vunpack.c.l.b16 %v31
  %v326 = vunpack.c.h.b16 %v31
  %v327 = vunpack.c.l.b16 %v32
  %v328 = vunpack.c.l.b16 %v33
  %v329 = vunpack.c.h.b16 %v33
  %v330 = vunpack.c.l.b16 %v34
  %v331 = vunpack.c.l.b16 %v35
  %v332 = vunpack.c.h.b16 %v35
  %v333 = vunpack.c.l.b16 %v36
  %v334 = vunpack.c.l.b16 %v37
  %v335 = vunpack.c.h.b16 %v37
  %v336 = vunpack.c.l.b16 %v38
  %v337 = vunpack.c.l.b16 %v39
  %v338 = vunpack.c.h.b16 %v39
  %v339 = vunpack.c.l.b16 %v40
  %v340 = vunpack.c.l.b16 %v41
  %v341 = vunpack.c.h.b16 %v41
  %v342 = vunpack.c.l.b16 %v42
  %v343 = vunpack.c.l.b16 %v43
  %v344 = vunpack.c.h.b16 %v43
  %v345 = vunpack.c.l.b16 %v44
  %v346 = vunpack.c.l.b16 %v45
  %v347 = vunpack.c.h.b16 %v45
  %v348 = vunpack.c.l.b16 %v46
  %v349 = vunpack.c.l.b16 %v47
  %v350 = vunpack.c.h.b16 %v47
  %v351 = vunpack.c.l.b16 %v48
  %v352 = vunpack.c.l.b16 %v49
  %v353 = vunpack.c.h.b16 %v49
  %v354 = vunpack.c.l.b16 %v50
  %v355 = vunpack.c.l.b16 %v51
  %v356 = vunpack.c.h.b16 %v51
  %v357 = vunpack.c.l.b16 %v52
  %v358 = vunpack.c.l.b16 %v53
  %v359 = vunpack.c.h.b16 %v53
  %v360 = vunpack.c.l.b16 %v54
  %v361 = vunpack.c.l.b16 %v55
  %v362 = vunpack.c.h.b16 %v55
  %v363 = vunpack.c.l.b16 %v56
  %v364 = vunpack.c.l.b16 %v57
  %v365 = vunpack.c.h.b16 %v57
  %v366 = vunpack.c.l.b16 %v58
  %v367 = vunpack.c.l.b16 %v59
  %v368 = vunpack.c.h.b16 %v59
  %v369 = vunpack.c.l.b16 %v60
  %v370 = vunpack.c.l.b16 %v61
  %v371 = vunpack.c.h.b16 %v61
  %v372 = vunpack.c.l.b16 %v62
  %v373 = vunpack.c.l.b16 %v63
  %v374 = vunpack.c.h.b16 %v63
  %v375 = vunpack.c.l.b16 %v64
  %v376 = vunpack.c.l.b16 %v65
  %v377 = vunpack.c.h.b16 %v65
  %v378 = vunpack.c.l.b16 %v66
  %v379 = vunpack.c.l.b16 %v67
  %v380 = vunpack.c.h.b16 %v67
  %v381 = vunpack.c.l.b16 %v68
  %v382 = vunpack.c.l.b16 %v69
  %v383 = vunpack.c.h.b16 %v69
  %v384 = vunpack.c.l.b16 %v70
  %v385 = vunpack.c.l.b16 %v71
  %v386 = vunpack.c.h.b16 %v71
  %v387 = vunpack.c.l.b16 %v72
  %v388 = vunpack.c.l.b16 %v73
  %v389 = vunpack.c.h.b16 %v73
  %v390 = vunpack.c.l.b16 %v74
  %v391 = vunpack.c.l.b16 %v75
  %v392 = vunpack.c.h.b16 %v75
  %v393 = vunpack.c.l.b16 %v76
  %v394 = vunpack.c.l.b16 %v77
  %v395 = vunpack.c.h.b16 %v77
  %v396 = vunpack.c.l.b16 %v78
  %v397 = vunpack.c.l.b16 %v79
  %v398 = vunpack.c.h.b16 %v79
  %v399 = vunpack.c.l.b16 %v80
  %v400 = vunpack.c.l.b16 %v81
  %v401 = vunpack.c.h.b16 %v81
  %v402 = vunpack.c.l.b16 %v82
  %v403 = vunpack.c.l.b16 %v83
  %v404 = vunpack.c.h.b16 %v83
  %v405 = vunpack.c.l.b16 %v84
  %v406 = vunpack.c.l.b16 %v85
  %v407 = vunpack.c.h.b16 %v85
  %v408 = vunpack.c.l.b16 %v86
  %v409 = vunpack.c.l.b16 %v87
  %v410 = vunpack.c.h.b16 %v87
  %v411 = vunpack.c.l.b16 %v88
  %v412 = vunpack.c.l.b16 %v89
  %v413 = vunpack.c.h.b16 %v89
  %v414 = vunpack.c.l.b16 %v90
  %v415 = vunpack.c.l.b16 %v91
  %v416 = vunpack.c.h.b16 %v91
  %v417 = vunpack.c.l.b16 %v92
  %v418 = vunpack.c.l.b16 %v93
  %v419 = vunpack.c.h.b16 %v93
  %v420 = vunpack.c.l.b16 %v94
  %v421 = vunpack.c.l.b16 %v95
  %v422 = vunpack.c.h.b16 %v95
  %v423 = vunpack.c.l.b16 %v96
  %v424 = vunpack.c.l.b16 %v97
  %v425 = vunpack.c.h.b16 %v97
  %v426 = vunpack.c.l.b16 %v98
  %v427 = vunpack.c.l.b16 %v99
  %v428 = vunpack.c.h.b16 %v99
  %v429 = vunpack.c.l.b16 %v100
  %v430 = vunpack.c.l.b16 %v101
  %v431 = vunpack.c.h.b16 %v101
  %v432 = vunpack.c.l.b16 %v102
  %v433 = vunpack.c.l.b16 %v103
  %v434 = vunpack.c.h.b16 %v103
  %v435 = vunpack.c.l.b16 %v104
  %v436 = vunpack.c.l.b16 %v105
  %v437 = vunpack.c.h.b16 %v105
  %v438 = vunpack.c.l.b16 %v106
  %v439 = vunpack.c.l.b16 %v107
  %v440 = vunpack.c.h.b16 %v107
  %v441 = vunpack.c.l.b16 %v108
  %v442 = vunpack.c.l.b16 %v109
  %v443 = vunpack.c.h.b16 %v109
  %v444 = vunpack.c.l.b16 %v110
  %v445 = vunpack.c.l.b16 %v111
  %v446 = vunpack.c.h.b16 %v111
  %v447 = vunpack.c.l.b16 %v112
  %v448 = vunpack.c.l.b16 %v113
  %v449 = vunpack.c.h.b16 %v113
  %v450 = vunpack.c.l.b16 %v114
  %v451 = vunpack.c.l.b16 %v115
  %v452 = vunpack.c.h.b16 %v115
  %v453 = vunpack.c.l.b16 %v116
  %v454 = vunpack.c.l.b16 %v117
  %v455 = vunpack.c.h.b16 %v117
  %v456 = vunpack.c.l.b16 %v118
  %v457 = vunpack.c.l.b16 %v119
  %v458 = vunpack.c.h.b16 %v119
  %v459 = vunpack.c.l.b16 %v120
  %v460 = vunpack.c.l.b16 %v121
  %v461 = vunpack.c.h.b16 %v121
  %v462 = vunpack.c.l.b16 %v122
  %v463 = vunpack.c.l.b16 %v123
  %v464 = vunpack.c.h.b16 %v123
  %v465 = vunpack.c.l.b16 %v124
  %v466 = vunpack.c.l.b16 %v125
  %v467 = vunpack.c.h.b16 %v125
  %v468 = vunpack.c.l.b16 %v126
  %v469 = vunpack.c.l.b16 %v127
  %v470 = vunpack.c.h.b16 %v127
  %v471 = vunpack.c.l.b16 %v128
  %v472 = vunpack.c.l.b16 %v129
  %v473 = vunpack.c.h.b16 %v129
  %v474 = vunpack.c.l.b16 %v130
  %v475 = vunpack.c.l.b16 %v131
  %v476 = vunpack.c.h.b16 %v131
  %v477 = vunpack.c.l.b16 %v132
  %v478 = vunpack.c.l.b16 %v133
  %v479 = vunpack.c.h.b16 %v133
  %v480 = vunpack.c.l.b16 %v134
  %v481 = vunpack.c.l.b16 %v135
  %v482 = vunpack.c.h.b16 %v135
  %v483 = vunpack.c.l.b16 %v136
  %v484 = vunpack.c.l.b16 %v137
  %v485 = vunpack.c.h.b16 %v137
  %v486 = vunpack.c.l.b16 %v138
  %v487 = vunpack.c.l.b16 %v139
  %v488 = vunpack.c.h.b16 %v139
  %v489 = vunpack.c.l.b16 %v140
  %v490 = vunpack.c.l.b16 %v141
  %v491 = vunpack.c.h.b16 %v141
  %v492 = vunpack.c.l.b16 %v142
  %v493 = vunpack.c.l.b16 %v143
  %v494 = vunpack.c.h.b16 %v143
  %v495 = vunpack.c.l.b16 %v144
  %v496 = vunpack.c.l.b16 %v145
  %v497 = vunpack.c.h.b16 %v145
  %v498 = vunpack.c.l.b16 %v146
  %v499 = vpack.c.b16 %v310, %v307
  %v500 = vpack.c.b16 %v311, %v308
  %v501 = vpack.c.b16 %v312, %v309
  %v502 = vpack.c.b16 %v316, %v313
  %v503 = vpack.c.b16 %v317, %v314
  %v504 = vpack.c.b16 %v318, %v315
  %v505 = vpack.c.b16 %v322, %v319
  %v506 = vpack.c.b16 %v323, %v320
  %v507 = vpack.c.b16 %v324, %v321
  %v508 = vpack.c.b16 %v328, %v325
  %v509 = vpack.c.b16 %v329, %v326
  %v510 = vpack.c.b16 %v330, %v327
  %v511 = vpack.c.b16 %v334, %v331
  %v512 = vpack.c.b16 %v335, %v332
  %v513 = vpack.c.b16 %v336, %v333
  %v514 = vpack.c.b16 %v340, %v337
  %v515 = vpack.c.b16 %v341, %v338
  %v516 = vpack.c.b16 %v342, %v339
  %v517 = vpack.c.b16 %v346, %v343
  %v518 = vpack.c.b16 %v347, %v344
  %v519 = vpack.c.b16 %v348, %v345
  %v520 = vpack.c.b16 %v352, %v349
  %v521 = vpack.c.b16 %v353, %v350
  %v522 = vpack.c.b16 %v354, %v351
  %v523 = vpack.c.b16 %v358, %v355
  %v524 = vpack.c.b16 %v359, %v356
  %v525 = vpack.c.b16 %v360, %v357
  %v526 = vpack.c.b16 %v364, %v361
  %v527 = vpack.c.b16 %v365, %v362
  %v528 = vpack.c.b16 %v366, %v363
  %v529 = vpack.c.b16 %v370, %v367
  %v530 = vpack.c.b16 %v371, %v368
  %v531 = vpack.c.b16 %v372, %v369
  %v532 = vpack.c.b16 %v376, %v373
  %v533 = vpack.c.b16 %v377, %v374
  %v534 = vpack.c.b16 %v378, %v375
  %v535 = vpack.c.b16 %v382, %v379
  %v536 = vpack.c.b16 %v383, %v380
  %v537 = vpack.c.b16 %v384, %v381
  %v538 = vpack.c.b16 %v388, %v385
  %v539 = vpack.c.b16 %v389, %v386
  %v540 = vpack.c.b16 %v390, %v387
  %v541 = vpack.c.b16 %v394, %v391
  %v542 = vpack.c.b16 %v395, %v392
  %v543 = vpack.c.b16 %v396, %v393
  %v544 = vpack.c.b16 %v400, %v397
  %v545 = vpack.c.b16 %v401, %v398
  %v546 = vpack.c.b16 %v402, %v399
  %v547 = vpack.c.b16 %v406, %v403
  %v548 = vpack.c.b16 %v407, %v404
  %v549 = vpack.c.b16 %v408, %v405
  %v550 = vpack.c.b16 %v412, %v409
  %v551 = vpack.c.b16 %v413, %v410
  %v552 = vpack.c.b16 %v414, %v411
  %v553 = vpack.c.b16 %v418, %v415
  %v554 = vpack.c.b16 %v419, %v416
  %v555 = vpack.c.b16 %v420, %v417
  %v556 = vpack.c.b16 %v424, %v421
  %v557 = vpack.c.b16 %v425, %v422
  %v558 = vpack.c.b16 %v426, %v423
  %v559 = vpack.c.b16 %v430, %v427
  %v560 = vpack.c.b16 %v431, %v428
  %v561 = vpack.c.b16 %v432, %v429
  %v562 = vpack.c.b16 %v436, %v433
  %v563 = vpack.c.b16 %v437, %v434
  %v564 = vpack.c.b16 %v438, %v435
  %v565 = vpack.c.b16 %v442, %v439
  %v566 = vpack.c.b16 %v443, %v440
  %v567 = vpack.c.b16 %v444, %v441
  %v568 = vpack.c.b16 %v448, %v445
  %v569 = vpack.c.b16 %v449, %v446
  %v570 = vpack.c.b16 %v450, %v447
  %v571 = vpack.c.b16 %v454, %v451
  %v572 = vpack.c.b16 %v455, %v452
  %v573 = vpack.c.b16 %v456, %v453
  %v574 = vpack.c.b16 %v460, %v457
  %v575 = vpack.c.b16 %v461, %v458
  %v576 = vpack.c.b16 %v462, %v459
  %v577 = vpack.c.b16 %v466, %v463
  %v578 = vpack.c.b16 %v467, %v464
  %v579 = vpack.c.b16 %v468, %v465
  %v580 = vpack.c.b16 %v472, %v469
  %v581 = vpack.c.b16 %v473, %v470
  %v582 = vpack.c.b16 %v474, %v471
  %v583 = vpack.c.b16 %v478, %v475
  %v584 = vpack.c.b16 %v479, %v476
  %v585 = vpack.c.b16 %v480, %v477
  %v586 = vpack.c.b16 %v484, %v481
  %v587 = vpack.c.b16 %v485, %v482
  %v588 = vpack.c.b16 %v486, %v483
  %v589 = vpack.c.b16 %v490, %v487
  %v590 = vpack.c.b16 %v491, %v488
  %v591 = vpack.c.b16 %v492, %v489
  %v592 = vpack.c.b16 %v496, %v493
  %v593 = vpack.c.b16 %v497, %v494
  %v594 = vpack.c.b16 %v498, %v495
  %691 = vmatprep.subr.bf16.mxu0 %v521
  %692 = vmatpush1.bf16.msra.mxu0 %v520
  %693 = vmatprep.subr.bf16.mxu0 %v518
  %694 = vmatpush1.bf16.msra.mxu0 %v517
  %695 = vmatprep.subr.bf16.mxu0 %v515
  %696 = vmatpush1.bf16.msra.mxu0 %v514
  %697 = vmatprep.subr.bf16.mxu0 %v512
  %698 = vmatpush1.bf16.msra.mxu0 %v511
  %699 = vmatprep.subr.bf16.mxu0 %v509
  %700 = vmatpush1.bf16.msra.mxu0 %v508
  %701 = vmatprep.subr.bf16.mxu0 %v506
  %702 = vmatpush1.bf16.msra.mxu0 %v505
  %703 = vmatprep.subr.bf16.mxu0 %v503
  %704 = vmatpush1.bf16.msra.mxu0 %v502
  %705 = vmatprep.subr.bf16.mxu0 %v500
  %706 = vmatpush1.bf16.msra.mxu0 %v499
  %707 = vmatprep.subr.bf16.mxu0 %v545
  %708 = vmatpush2.bf16.msra.mxu0 %v544
  %709 = vmatprep.subr.bf16.mxu0 %v542
  %710 = vmatpush2.bf16.msra.mxu0 %v541
  %711 = vmatprep.subr.bf16.mxu0 %v539
  %712 = vmatpush2.bf16.msra.mxu0 %v538
  %713 = vmatprep.subr.bf16.mxu0 %v536
  %714 = vmatpush2.bf16.msra.mxu0 %v535
  %715 = vmatprep.subr.bf16.mxu0 %v533
  %716 = vmatpush2.bf16.msra.mxu0 %v532
  %717 = vmatprep.subr.bf16.mxu0 %v530
  %718 = vmatpush2.bf16.msra.mxu0 %v529
  %719 = vmatprep.subr.bf16.mxu0 %v527
  %720 = vmatpush2.bf16.msra.mxu0 %v526
  %721 = vmatprep.subr.bf16.mxu0 %v524
  %722 = vmatpush2.bf16.msra.mxu0 %v523
  %723 = vmatprep.mubr.bf16.mxu0 %v172
  %724 = vmatmul.mubr.bf16.gmra.mxu0 %v171
  %v725 = vpop.f32.mrf.mxu0
  %v726 = vadd.f32 %v152, %v725
  %v727 = vpop.f32.mrf.mxu0
  %v728 = vadd.f32 %v152, %v727
  %v729 = vpop.f32.mrf.mxu0
  %v730 = vadd.f32 %v157, %v729
  %v731 = vpop.f32.mrf.mxu0
  %v732 = vadd.f32 %v157, %v731
  %733 = vdwg.mxu0
  %734 = vmatprep.subr.bf16.mxu0 %v569
  %735 = vmatpush1.bf16.msra.mxu0 %v568
  %736 = vmatprep.subr.bf16.mxu0 %v566
  %737 = vmatpush1.bf16.msra.mxu0 %v565
  %738 = vmatprep.subr.bf16.mxu0 %v563
  %739 = vmatpush1.bf16.msra.mxu0 %v562
  %740 = vmatprep.subr.bf16.mxu0 %v560
  %741 = vmatpush1.bf16.msra.mxu0 %v559
  %742 = vmatprep.subr.bf16.mxu0 %v557
  %743 = vmatpush1.bf16.msra.mxu0 %v556
  %744 = vmatprep.subr.bf16.mxu0 %v554
  %745 = vmatpush1.bf16.msra.mxu0 %v553
  %746 = vmatprep.subr.bf16.mxu0 %v551
  %747 = vmatpush1.bf16.msra.mxu0 %v550
  %748 = vmatprep.subr.bf16.mxu0 %v548
  %749 = vmatpush1.bf16.msra.mxu0 %v547
  %750 = vmatprep.subr.bf16.mxu0 %v593
  %751 = vmatpush2.bf16.msra.mxu0 %v592
  %752 = vmatprep.subr.bf16.mxu0 %v590
  %753 = vmatpush2.bf16.msra.mxu0 %v589
  %754 = vmatprep.subr.bf16.mxu0 %v587
  %755 = vmatpush2.bf16.msra.mxu0 %v586
  %756 = vmatprep.subr.bf16.mxu0 %v584
  %757 = vmatpush2.bf16.msra.mxu0 %v583
  %758 = vmatprep.subr.bf16.mxu0 %v581
  %759 = vmatpush2.bf16.msra.mxu0 %v580
  %760 = vmatprep.subr.bf16.mxu0 %v578
  %761 = vmatpush2.bf16.msra.mxu0 %v577
  %762 = vmatprep.subr.bf16.mxu0 %v575
  %763 = vmatpush2.bf16.msra.mxu0 %v574
  %764 = vmatprep.subr.bf16.mxu0 %v572
  %765 = vmatpush2.bf16.msra.mxu0 %v571
  %766 = vmatprep.mubr.bf16.mxu0 %v174
  %767 = vmatmul.mubr.bf16.gmra.mxu0 %v173
  %v768 = vpop.f32.mrf.mxu0
  %v769 = vadd.f32 %v726, %v768
  %v770 = vpop.f32.mrf.mxu0
  %v771 = vadd.f32 %v728, %v770
  %v772 = vpop.f32.mrf.mxu0
  %v773 = vadd.f32 %v730, %v772
  %v774 = vpop.f32.mrf.mxu0
  %v775 = vadd.f32 %v732, %v774
  %776 = vdwg.mxu0
  %777 = vmatprep.subr.bf16.mxu0 0
  %778 = vmatpush1.bf16.msra.mxu0 %v522
  %779 = vmatprep.subr.bf16.mxu0 0
  %780 = vmatpush1.bf16.msra.mxu0 %v519
  %781 = vmatprep.subr.bf16.mxu0 0
  %782 = vmatpush1.bf16.msra.mxu0 %v516
  %783 = vmatprep.subr.bf16.mxu0 0
  %784 = vmatpush1.bf16.msra.mxu0 %v513
  %785 = vmatprep.subr.bf16.mxu0 0
  %786 = vmatpush1.bf16.msra.mxu0 %v510
  %787 = vmatprep.subr.bf16.mxu0 0
  %788 = vmatpush1.bf16.msra.mxu0 %v507
  %789 = vmatprep.subr.bf16.mxu0 0
  %790 = vmatpush1.bf16.msra.mxu0 %v504
  %791 = vmatprep.subr.bf16.mxu0 0
  %792 = vmatpush1.bf16.msra.mxu0 %v501
  %793 = vmatprep.subr.bf16.mxu0 0
  %794 = vmatpush2.bf16.msra.mxu0 %v546
  %795 = vmatprep.subr.bf16.mxu0 0
  %796 = vmatpush2.bf16.msra.mxu0 %v543
  %797 = vmatprep.subr.bf16.mxu0 0
  %798 = vmatpush2.bf16.msra.mxu0 %v540
  %799 = vmatprep.subr.bf16.mxu0 0
  %800 = vmatpush2.bf16.msra.mxu0 %v537
  %801 = vmatprep.subr.bf16.mxu0 0
  %802 = vmatpush2.bf16.msra.mxu0 %v534
  %803 = vmatprep.subr.bf16.mxu0 0
  %804 = vmatpush2.bf16.msra.mxu0 %v531
  %805 = vmatprep.subr.bf16.mxu0 0
  %806 = vmatpush2.bf16.msra.mxu0 %v528
  %807 = vmatprep.subr.bf16.mxu0 0
  %808 = vmatpush2.bf16.msra.mxu0 %v525
  %809 = vmatprep.mubr.bf16.mxu0 %v172
  %810 = vmatmul.mubr.bf16.gmra.mxu0 %v171
  %v811 = vpop.f32.mrf.mxu0
  %v812 = vadd.f32 %v152, %v811
  %v813 = vpop.f32.mrf.mxu0
  %v814 = vpop.f32.mrf.mxu0
  %v815 = vadd.f32 %v157, %v814
  %v816 = vpop.f32.mrf.mxu0
  %817 = vdwg.mxu0
  %818 = vmatprep.subr.bf16.mxu0 0
  %819 = vmatpush1.bf16.msra.mxu0 %v570
  %820 = vmatprep.subr.bf16.mxu0 0
  %821 = vmatpush1.bf16.msra.mxu0 %v567
  %822 = vmatprep.subr.bf16.mxu0 0
  %823 = vmatpush1.bf16.msra.mxu0 %v564
  %824 = vmatprep.subr.bf16.mxu0 0
  %825 = vmatpush1.bf16.msra.mxu0 %v561
  %826 = vmatprep.subr.bf16.mxu0 0
  %827 = vmatpush1.bf16.msra.mxu0 %v558
  %828 = vmatprep.subr.bf16.mxu0 0
  %829 = vmatpush1.bf16.msra.mxu0 %v555
  %830 = vmatprep.subr.bf16.mxu0 0
  %831 = vmatpush1.bf16.msra.mxu0 %v552
  %832 = vmatprep.subr.bf16.mxu0 0
  %833 = vmatpush1.bf16.msra.mxu0 %v549
  %834 = vmatprep.subr.bf16.mxu0 0
  %835 = vmatpush2.bf16.msra.mxu0 %v594
  %836 = vmatprep.subr.bf16.mxu0 0
  %837 = vmatpush2.bf16.msra.mxu0 %v591
  %838 = vmatprep.subr.bf16.mxu0 0
  %839 = vmatpush2.bf16.msra.mxu0 %v588
  %840 = vmatprep.subr.bf16.mxu0 0
  %841 = vmatpush2.bf16.msra.mxu0 %v585
  %842 = vmatprep.subr.bf16.mxu0 0
  %843 = vmatpush2.bf16.msra.mxu0 %v582
  %844 = vmatprep.subr.bf16.mxu0 0
  %845 = vmatpush2.bf16.msra.mxu0 %v579
  %846 = vmatprep.subr.bf16.mxu0 0
  %847 = vmatpush2.bf16.msra.mxu0 %v576
  %848 = vmatprep.subr.bf16.mxu0 0
  %849 = vmatpush2.bf16.msra.mxu0 %v573
  %850 = vmatprep.mubr.bf16.mxu0 %v174
  %851 = vmatmul.mubr.bf16.gmra.mxu0 %v173
  %v852 = vpop.f32.mrf.mxu0
  %v853 = vadd.f32 %v812, %v852
  %v854 = vpop.f32.mrf.mxu0
  %v855 = vpop.f32.mrf.mxu0
  %v856 = vadd.f32 %v815, %v855
  %v857 = vpop.f32.mrf.mxu0
  %858 = vdwg.mxu0
  %859 = vst [vmem:[%s3] sm:$0xff] %v769
  %860 = vst [vmem:[%s3 + $0x8] sm:$0xff] %v771
  %861 = vst [vmem:[%s3 + $0x10] sm:$0xff] %v853
  %862 = vst [vmem:[%s3 + $0x18] sm:$0xff] %v773
  %863 = vst [vmem:[%s3 + $0x20] sm:$0xff] %v775
  %864 = vst [vmem:[%s3 + $0x28] sm:$0xff] %v856
  // Predicated region
  $region14: #{stn_small_forward.8} parent=0 // pred_check
    _
  $region15: #{stn_small_forward.8} parent=0 // pred_check_branch
    %866 = sbr.rel (0) target = $region17
  $region16: #{stn_small_forward.8} parent=0 // pred_region
    _
  $region17: #{stn_small_forward.8} parent=0 // pred_fallthru
    _
  // Predicated region
  $region18: #{stn_small_forward.8} parent=0 // pred_check
    _
  $region19: #{stn_small_forward.8} parent=0 // pred_check_branch
    %868 = sbr.rel (0) target = $region21
  $region20: #{stn_small_forward.8} parent=0 // pred_region
    _
  $region21: #{stn_small_forward.8} parent=0 // pred_fallthru
    _

// kernel: squeeze.3
$region0: #{squeeze.3}
  %s0 = inlined_call_operand.vmem [shape: f32[720], index: 0, kind: input, shape index: {}]
  %s1 = inlined_call_operand.vmem [shape: f32[10,2,6,6], index: 1, kind: output, shape index: {}]
  %s2 = smov 3
  %v3 = vld [vmem:[%s0] ss:$3 sm:%s2]
  %vm4 = vcmask 48128
  %5 = vst.msk [vmem:[%s1] ss:$84 sm:$0x3] %vm4, %v3
  %s6 = scalar_lea.vmem %s0, 5
  %s7 = smov 3
  %v8 = vld [vmem:[%s6] ss:$-3 sm:%s7]
  %9 = vrot.lane.b32.xlu0 %v8, 126
  %v10 = vpop.permute.xlu0 %9
  %vm11 = vcmask 48128
  %s12 = scalar_lea.vmem %s1, 141
  %13 = vst.msk [vmem:[%s12] ss:$-84 sm:$0x3] %vm11, %v10
  %s14 = scalar_lea.vmem %s0, 4
  %s15 = smov 3
  %v16 = vld [vmem:[%s14] ss:$-3 sm:%s15]
  %17 = vrot.lane.b32.xlu0 %v16, 124
  %v18 = vpop.permute.xlu0 %17
  %vm19 = vcmask 48128
  %s20 = scalar_lea.vmem %s1, 114
  %21 = vst.msk [vmem:[%s20] ss:$-86 sm:$0x3] %vm19, %v18
  %s22 = smov 3
  %v23 = vld [vmem:[%s0] ss:$3 sm:%s22]
  %24 = vrot.lane.b32.xlu0 %v23, 122
  %v25 = vpop.permute.xlu0 %24
  %vm26 = vcmask 48128
  %s27 = scalar_lea.vmem %s1, 1
  %28 = vst.msk [vmem:[%s27] ss:$84 sm:$0x3] %vm26, %v25
  %s29 = scalar_lea.vmem %s0, 5
  %s30 = smov 3
  %v31 = vld [vmem:[%s29] ss:$-3 sm:%s30]
  %32 = vrot.lane.b32.xlu0 %v31, 120
  %v33 = vpop.permute.xlu0 %32
  %vm34 = vcmask 48128
  %s35 = scalar_lea.vmem %s1, 144
  %36 = vst.msk [vmem:[%s35] ss:$-86 sm:$0x3] %vm34, %v33
  %s37 = scalar_lea.vmem %s0, 4
  %s38 = smov 3
  %v39 = vld [vmem:[%s37] ss:$-3 sm:%s38]
  %40 = vrot.lane.b32.xlu0 %v39, 118
  %v41 = vpop.permute.xlu0 %40
  %vm42 = vcmask 48128
  %s43 = scalar_lea.vmem %s1, 115
  %44 = vst.msk [vmem:[%s43] ss:$-86 sm:$0x3] %vm42, %v41
  %s45 = smov 3
  %v46 = vld [vmem:[%s0] ss:$3 sm:%s45]
  %47 = vrot.lane.b32.xlu0 %v46, 116
  %v48 = vpop.permute.xlu0 %47
  %vm49 = vcmask 48128
  %s50 = scalar_lea.vmem %s1, 2
  %51 = vst.msk [vmem:[%s50] ss:$86 sm:$0x3] %vm49, %v48
  %s52 = scalar_lea.vmem %s0, 5
  %s53 = smov 3
  %v54 = vld [vmem:[%s52] ss:$-3 sm:%s53]
  %55 = vrot.lane.b32.xlu0 %v54, 114
  %v56 = vpop.permute.xlu0 %55
  %vm57 = vcmask 48128
  %s58 = scalar_lea.vmem %s1, 145
  %59 = vst.msk [vmem:[%s58] ss:$-86 sm:$0x3] %vm57, %v56
  %s60 = scalar_lea.vmem %s0, 1
  %s61 = smov 3
  %v62 = vld [vmem:[%s60] ss:$3 sm:%s61]
  %63 = vrot.lane.b32.xlu0 %v62, 112
  %v64 = vpop.permute.xlu0 %63
  %vm65 = vcmask 48128
  %s66 = scalar_lea.vmem %s1, 32
  %67 = vst.msk [vmem:[%s66] ss:$84 sm:$0x3] %vm65, %v64
  %s68 = smov 3
  %v69 = vld [vmem:[%s0] ss:$3 sm:%s68]
  %70 = vrot.lane.b32.xlu0 %v69, 110
  %v71 = vpop.permute.xlu0 %70
  %vm72 = vcmask 48128
  %s73 = scalar_lea.vmem %s1, 3
  %74 = vst.msk [vmem:[%s73] ss:$86 sm:$0x3] %vm72, %v71
  %s75 = scalar_lea.vmem %s0, 5
  %s76 = smov 3
  %v77 = vld [vmem:[%s75] ss:$-3 sm:%s76]
  %78 = vrot.lane.b32.xlu0 %v77, 108
  %v79 = vpop.permute.xlu0 %78
  %vm80 = vcmask 48128
  %s81 = scalar_lea.vmem %s1, 146
  %82 = vst.msk [vmem:[%s81] ss:$-86 sm:$0x3] %vm80, %v79
  %s83 = scalar_lea.vmem %s0, 1
  %s84 = smov 3
  %v85 = vld [vmem:[%s83] ss:$3 sm:%s84]
  %86 = vrot.lane.b32.xlu0 %v85, 106
  %v87 = vpop.permute.xlu0 %86
  %vm88 = vcmask 48128
  %s89 = scalar_lea.vmem %s1, 33
  %90 = vst.msk [vmem:[%s89] ss:$84 sm:$0x3] %vm88, %v87
  %s91 = smov 3
  %v92 = vld [vmem:[%s0] ss:$3 sm:%s91]
  %93 = vrot.lane.b32.xlu0 %v92, 104
  %v94 = vpop.permute.xlu0 %93
  %vm95 = vcmask 48128
  %s96 = scalar_lea.vmem %s1, 4
  %97 = vst.msk [vmem:[%s96] ss:$86 sm:$0x3] %vm95, %v94
  %s98 = scalar_lea.vmem %s0, 5
  %s99 = smov 3
  %v100 = vld [vmem:[%s98] ss:$-3 sm:%s99]
  %101 = vrot.lane.b32.xlu0 %v100, 102
  %v102 = vpop.permute.xlu0 %101
  %vm103 = vcmask 48128
  %s104 = scalar_lea.vmem %s1, 147
  %105 = vst.msk [vmem:[%s104] ss:$-86 sm:$0x3] %vm103, %v102
  %s106 = scalar_lea.vmem %s0, 1
  %s107 = smov 3
  %v108 = vld [vmem:[%s106] ss:$3 sm:%s107]
  %109 = vrot.lane.b32.xlu0 %v108, 100
  %v110 = vpop.permute.xlu0 %109
  %vm111 = vcmask 48128
  %s112 = scalar_lea.vmem %s1, 34
  %113 = vst.msk [vmem:[%s112] ss:$86 sm:$0x3] %vm111, %v110
  %s114 = smov 3
  %v115 = vld [vmem:[%s0] ss:$3 sm:%s114]
  %116 = vrot.lane.b32.xlu0 %v115, 98
  %v117 = vpop.permute.xlu0 %116
  %vm118 = vcmask 48128
  %s119 = scalar_lea.vmem %s1, 5
  %120 = vst.msk [vmem:[%s119] ss:$86 sm:$0x3] %vm118, %v117
  %s121 = scalar_lea.vmem %s0, 2
  %s122 = smov 3
  %v123 = vld [vmem:[%s121] ss:$3 sm:%s122]
  %124 = vrot.lane.b32.xlu0 %v123, 96
  %v125 = vpop.permute.xlu0 %124
  %vm126 = vcmask 48128
  %s127 = scalar_lea.vmem %s1, 64
  %128 = vst.msk [vmem:[%s127] ss:$84 sm:$0x3] %vm126, %v125
  %s129 = scalar_lea.vmem %s0, 1
  %s130 = smov 3
  %v131 = vld [vmem:[%s129] ss:$3 sm:%s130]
  %132 = vrot.lane.b32.xlu0 %v131, 94
  %v133 = vpop.permute.xlu0 %132
  %vm134 = vcmask 48128
  %s135 = scalar_lea.vmem %s1, 35
  %136 = vst.msk [vmem:[%s135] ss:$86 sm:$0x3] %vm134, %v133
  %s137 = smov 3
  %v138 = vld [vmem:[%s0] ss:$3 sm:%s137]
  %139 = vrot.lane.b32.xlu0 %v138, 92
  %v140 = vpop.permute.xlu0 %139
  %vm141 = vcmask 48128
  %s142 = scalar_lea.vmem %s1, 8
  %143 = vst.msk [vmem:[%s142] ss:$84 sm:$0x3] %vm141, %v140
  %s144 = scalar_lea.vmem %s0, 2
  %s145 = smov 3
  %v146 = vld [vmem:[%s144] ss:$3 sm:%s145]
  %147 = vrot.lane.b32.xlu0 %v146, 90
  %v148 = vpop.permute.xlu0 %147
  %vm149 = vcmask 48128
  %s150 = scalar_lea.vmem %s1, 65
  %151 = vst.msk [vmem:[%s150] ss:$84 sm:$0x3] %vm149, %v148
  %s152 = scalar_lea.vmem %s0, 1
  %s153 = smov 3
  %v154 = vld [vmem:[%s152] ss:$3 sm:%s153]
  %155 = vrot.lane.b32.xlu0 %v154, 88
  %v156 = vpop.permute.xlu0 %155
  %vm157 = vcmask 48128
  %s158 = scalar_lea.vmem %s1, 36
  %159 = vst.msk [vmem:[%s158] ss:$86 sm:$0x3] %vm157, %v156
  %s160 = smov 3
  %v161 = vld [vmem:[%s0] ss:$3 sm:%s160]
  %162 = vrot.lane.b32.xlu0 %v161, 86
  %v163 = vpop.permute.xlu0 %162
  %vm164 = vcmask 48128
  %s165 = scalar_lea.vmem %s1, 9
  %166 = vst.msk [vmem:[%s165] ss:$84 sm:$0x3] %vm164, %v163
  %s167 = scalar_lea.vmem %s0, 2
  %s168 = smov 3
  %v169 = vld [vmem:[%s167] ss:$3 sm:%s168]
  %170 = vrot.lane.b32.xlu0 %v169, 84
  %v171 = vpop.permute.xlu0 %170
  %vm172 = vcmask 48128
  %s173 = scalar_lea.vmem %s1, 66
  %174 = vst.msk [vmem:[%s173] ss:$86 sm:$0x3] %vm172, %v171
  %s175 = scalar_lea.vmem %s0, 1
  %s176 = smov 3
  %v177 = vld [vmem:[%s175] ss:$3 sm:%s176]
  %178 = vrot.lane.b32.xlu0 %v177, 82
  %v179 = vpop.permute.xlu0 %178
  %vm180 = vcmask 48128
  %s181 = scalar_lea.vmem %s1, 37
  %182 = vst.msk [vmem:[%s181] ss:$86 sm:$0x3] %vm180, %v179
  %s183 = scalar_lea.vmem %s0, 3
  %s184 = smov 3
  %v185 = vld [vmem:[%s183] ss:$-3 sm:%s184]
  %186 = vrot.lane.b32.xlu0 %v185, 80
  %v187 = vpop.permute.xlu0 %186
  %vm188 = vcmask 48128
  %s189 = scalar_lea.vmem %s1, 96
  %190 = vst.msk [vmem:[%s189] ss:$-86 sm:$0x3] %vm188, %v187
  %s191 = scalar_lea.vmem %s0, 2
  %s192 = smov 3
  %v193 = vld [vmem:[%s191] ss:$3 sm:%s192]
  %194 = vrot.lane.b32.xlu0 %v193, 78
  %v195 = vpop.permute.xlu0 %194
  %vm196 = vcmask 48128
  %s197 = scalar_lea.vmem %s1, 67
  %198 = vst.msk [vmem:[%s197] ss:$86 sm:$0x3] %vm196, %v195
  %s199 = scalar_lea.vmem %s0, 1
  %s200 = smov 3
  %v201 = vld [vmem:[%s199] ss:$3 sm:%s200]
  %202 = vrot.lane.b32.xlu0 %v201, 76
  %v203 = vpop.permute.xlu0 %202
  %vm204 = vcmask 48128
  %s205 = scalar_lea.vmem %s1, 40
  %206 = vst.msk [vmem:[%s205] ss:$84 sm:$0x3] %vm204, %v203
  %s207 = scalar_lea.vmem %s0, 3
  %s208 = smov 3
  %v209 = vld [vmem:[%s207] ss:$-3 sm:%s208]
  %210 = vrot.lane.b32.xlu0 %v209, 74
  %v211 = vpop.permute.xlu0 %210
  %vm212 = vcmask 48128
  %s213 = scalar_lea.vmem %s1, 97
  %214 = vst.msk [vmem:[%s213] ss:$-86 sm:$0x3] %vm212, %v211
  %s215 = scalar_lea.vmem %s0, 2
  %s216 = smov 3
  %v217 = vld [vmem:[%s215] ss:$3 sm:%s216]
  %218 = vrot.lane.b32.xlu0 %v217, 72
  %v219 = vpop.permute.xlu0 %218
  %vm220 = vcmask 48128
  %s221 = scalar_lea.vmem %s1, 68
  %222 = vst.msk [vmem:[%s221] ss:$86 sm:$0x3] %vm220, %v219
  %s223 = scalar_lea.vmem %s0, 1
  %s224 = smov 3
  %v225 = vld [vmem:[%s223] ss:$3 sm:%s224]
  %226 = vrot.lane.b32.xlu0 %v225, 70
  %v227 = vpop.permute.xlu0 %226
  %vm228 = vcmask 48128
  %s229 = scalar_lea.vmem %s1, 41
  %230 = vst.msk [vmem:[%s229] ss:$84 sm:$0x3] %vm228, %v227
  %s231 = scalar_lea.vmem %s0, 3
  %s232 = smov 3
  %v233 = vld [vmem:[%s231] ss:$-3 sm:%s232]
  %234 = vrot.lane.b32.xlu0 %v233, 68
  %v235 = vpop.permute.xlu0 %234
  %vm236 = vcmask 48128
  %s237 = scalar_lea.vmem %s1, 98
  %238 = vst.msk [vmem:[%s237] ss:$-86 sm:$0x3] %vm236, %v235
  %s239 = scalar_lea.vmem %s0, 2
  %s240 = smov 3
  %v241 = vld [vmem:[%s239] ss:$3 sm:%s240]
  %242 = vrot.lane.b32.xlu0 %v241, 66
  %v243 = vpop.permute.xlu0 %242
  %vm244 = vcmask 48128
  %s245 = scalar_lea.vmem %s1, 69
  %246 = vst.msk [vmem:[%s245] ss:$86 sm:$0x3] %vm244, %v243
  %s247 = scalar_lea.vmem %s0, 4
  %s248 = smov 3
  %v249 = vld [vmem:[%s247] ss:$-3 sm:%s248]
  %250 = vrot.lane.b32.xlu0 %v249, 64
  %v251 = vpop.permute.xlu0 %250
  %vm252 = vcmask 48128
  %s253 = scalar_lea.vmem %s1, 128
  %254 = vst.msk [vmem:[%s253] ss:$-86 sm:$0x3] %vm252, %v251
  %s255 = scalar_lea.vmem %s0, 3
  %s256 = smov 3
  %v257 = vld [vmem:[%s255] ss:$-3 sm:%s256]
  %258 = vrot.lane.b32.xlu0 %v257, 62
  %v259 = vpop.permute.xlu0 %258
  %vm260 = vcmask 48128
  %s261 = scalar_lea.vmem %s1, 99
  %262 = vst.msk [vmem:[%s261] ss:$-86 sm:$0x3] %vm260, %v259
  %s263 = scalar_lea.vmem %s0, 2
  %s264 = smov 3
  %v265 = vld [vmem:[%s263] ss:$3 sm:%s264]
  %266 = vrot.lane.b32.xlu0 %v265, 60
  %v267 = vpop.permute.xlu0 %266
  %vm268 = vcmask 48128
  %s269 = scalar_lea.vmem %s1, 72
  %270 = vst.msk [vmem:[%s269] ss:$84 sm:$0x3] %vm268, %v267
  %s271 = scalar_lea.vmem %s0, 4
  %s272 = smov 3
  %v273 = vld [vmem:[%s271] ss:$-3 sm:%s272]
  %274 = vrot.lane.b32.xlu0 %v273, 58
  %v275 = vpop.permute.xlu0 %274
  %vm276 = vcmask 48128
  %s277 = scalar_lea.vmem %s1, 129
  %278 = vst.msk [vmem:[%s277] ss:$-86 sm:$0x3] %vm276, %v275
  %s279 = scalar_lea.vmem %s0, 3
  %s280 = smov 3
  %v281 = vld [vmem:[%s279] ss:$-3 sm:%s280]
  %282 = vrot.lane.b32.xlu0 %v281, 56
  %v283 = vpop.permute.xlu0 %282
  %vm284 = vcmask 48128
  %s285 = scalar_lea.vmem %s1, 100
  %286 = vst.msk [vmem:[%s285] ss:$-84 sm:$0x3] %vm284, %v283
  %s287 = scalar_lea.vmem %s0, 2
  %s288 = smov 3
  %v289 = vld [vmem:[%s287] ss:$3 sm:%s288]
  %290 = vrot.lane.b32.xlu0 %v289, 54
  %v291 = vpop.permute.xlu0 %290
  %vm292 = vcmask 48128
  %s293 = scalar_lea.vmem %s1, 73
  %294 = vst.msk [vmem:[%s293] ss:$84 sm:$0x3] %vm292, %v291
  %s295 = scalar_lea.vmem %s0, 4
  %s296 = smov 3
  %v297 = vld [vmem:[%s295] ss:$-3 sm:%s296]
  %298 = vrot.lane.b32.xlu0 %v297, 52
  %v299 = vpop.permute.xlu0 %298
  %vm300 = vcmask 48128
  %s301 = scalar_lea.vmem %s1, 130
  %302 = vst.msk [vmem:[%s301] ss:$-86 sm:$0x3] %vm300, %v299
  %s303 = scalar_lea.vmem %s0, 3
  %s304 = smov 3
  %v305 = vld [vmem:[%s303] ss:$-3 sm:%s304]
  %306 = vrot.lane.b32.xlu0 %v305, 50
  %v307 = vpop.permute.xlu0 %306
  %vm308 = vcmask 48128
  %s309 = scalar_lea.vmem %s1, 101
  %310 = vst.msk [vmem:[%s309] ss:$-84 sm:$0x3] %vm308, %v307
  %s311 = scalar_lea.vmem %s0, 2
  %v312 = vld [vmem:[%s311] sm:$0x1]
  %313 = vrot.lane.b32.xlu0 %v312, 48
  %v314 = vpop.permute.xlu0 %313
  %vm315 = vcmask 48128
  %s316 = scalar_lea.vmem %s1, 74
  %317 = vst.msk [vmem:[%s316] sm:$0x1] %vm315, %v314
  %s318 = scalar_lea.vmem %s0, 4
  %s319 = smov 3
  %v320 = vld [vmem:[%s318] ss:$-3 sm:%s319]
  %321 = vrot.lane.b32.xlu0 %v320, 46
  %v322 = vpop.permute.xlu0 %321
  %vm323 = vcmask 48128
  %s324 = scalar_lea.vmem %s1, 131
  %325 = vst.msk [vmem:[%s324] ss:$-86 sm:$0x3] %vm323, %v322
  %s326 = scalar_lea.vmem %s0, 3
  %s327 = smov 3
  %v328 = vld [vmem:[%s326] ss:$-3 sm:%s327]
  %329 = vrot.lane.b32.xlu0 %v328, 44
  %v330 = vpop.permute.xlu0 %329
  %vm331 = vcmask 48128
  %s332 = scalar_lea.vmem %s1, 104
  %333 = vst.msk [vmem:[%s332] ss:$-86 sm:$0x3] %vm331, %v330
  %s334 = scalar_lea.vmem %s0, 2
  %v335 = vld [vmem:[%s334] sm:$0x1]
  %336 = vrot.lane.b32.xlu0 %v335, 42
  %v337 = vpop.permute.xlu0 %336
  %vm338 = vcmask 48128
  %s339 = scalar_lea.vmem %s1, 75
  %340 = vst.msk [vmem:[%s339] sm:$0x1] %vm338, %v337
  %s341 = scalar_lea.vmem %s0, 4
  %s342 = smov 3
  %v343 = vld [vmem:[%s341] ss:$-3 sm:%s342]
  %344 = vrot.lane.b32.xlu0 %v343, 40
  %v345 = vpop.permute.xlu0 %344
  %vm346 = vcmask 48128
  %s347 = scalar_lea.vmem %s1, 132
  %348 = vst.msk [vmem:[%s347] ss:$-84 sm:$0x3] %vm346, %v345
  %s349 = scalar_lea.vmem %s0, 3
  %s350 = smov 3
  %v351 = vld [vmem:[%s349] ss:$-3 sm:%s350]
  %352 = vrot.lane.b32.xlu0 %v351, 38
  %v353 = vpop.permute.xlu0 %352
  %vm354 = vcmask 48128
  %s355 = scalar_lea.vmem %s1, 105
  %356 = vst.msk [vmem:[%s355] ss:$-86 sm:$0x3] %vm354, %v353
  %s357 = scalar_lea.vmem %s0, 2
  %v358 = vld [vmem:[%s357] sm:$0x1]
  %359 = vrot.lane.b32.xlu0 %v358, 36
  %v360 = vpop.permute.xlu0 %359
  %vm361 = vcmask 48128
  %s362 = scalar_lea.vmem %s1, 76
  %363 = vst.msk [vmem:[%s362] sm:$0x1] %vm361, %v360
  %s364 = scalar_lea.vmem %s0, 4
  %s365 = smov 3
  %v366 = vld [vmem:[%s364] ss:$-3 sm:%s365]
  %367 = vrot.lane.b32.xlu0 %v366, 34
  %v368 = vpop.permute.xlu0 %367
  %vm369 = vcmask 48128
  %s370 = scalar_lea.vmem %s1, 133
  %371 = vst.msk [vmem:[%s370] ss:$-84 sm:$0x3] %vm369, %v368
  %s372 = scalar_lea.vmem %s0, 3
  %s373 = smov 3
  %v374 = vld [vmem:[%s372] ss:$-3 sm:%s373]
  %375 = vrot.lane.b32.xlu0 %v374, 32
  %v376 = vpop.permute.xlu0 %375
  %vm377 = vcmask 48128
  %s378 = scalar_lea.vmem %s1, 106
  %379 = vst.msk [vmem:[%s378] ss:$-86 sm:$0x3] %vm377, %v376
  %s380 = scalar_lea.vmem %s0, 2
  %v381 = vld [vmem:[%s380] sm:$0x1]
  %382 = vrot.lane.b32.xlu0 %v381, 30
  %v383 = vpop.permute.xlu0 %382
  %vm384 = vcmask 48128
  %s385 = scalar_lea.vmem %s1, 77
  %386 = vst.msk [vmem:[%s385] sm:$0x1] %vm384, %v383
  %s387 = scalar_lea.vmem %s0, 4
  %s388 = smov 3
  %v389 = vld [vmem:[%s387] ss:$-3 sm:%s388]
  %390 = vrot.lane.b32.xlu0 %v389, 28
  %v391 = vpop.permute.xlu0 %390
  %vm392 = vcmask 48128
  %s393 = scalar_lea.vmem %s1, 136
  %394 = vst.msk [vmem:[%s393] ss:$-86 sm:$0x3] %vm392, %v391
  %s395 = scalar_lea.vmem %s0, 3
  %s396 = smov 3
  %v397 = vld [vmem:[%s395] ss:$-3 sm:%s396]
  %398 = vrot.lane.b32.xlu0 %v397, 26
  %v399 = vpop.permute.xlu0 %398
  %vm400 = vcmask 48128
  %s401 = scalar_lea.vmem %s1, 107
  %402 = vst.msk [vmem:[%s401] ss:$-86 sm:$0x3] %vm400, %v399
  %s403 = scalar_lea.vmem %s0, 2
  %v404 = vld [vmem:[%s403] sm:$0x1]
  %405 = vrot.lane.b32.xlu0 %v404, 24
  %v406 = vpop.permute.xlu0 %405
  %vm407 = vcmask 48128
  %s408 = scalar_lea.vmem %s1, 80
  %409 = vst.msk [vmem:[%s408] sm:$0x1] %vm407, %v406
  %s410 = scalar_lea.vmem %s0, 4
  %s411 = smov 3
  %v412 = vld [vmem:[%s410] ss:$-3 sm:%s411]
  %413 = vrot.lane.b32.xlu0 %v412, 22
  %v414 = vpop.permute.xlu0 %413
  %vm415 = vcmask 48128
  %s416 = scalar_lea.vmem %s1, 137
  %417 = vst.msk [vmem:[%s416] ss:$-86 sm:$0x3] %vm415, %v414
  %s418 = scalar_lea.vmem %s0, 3
  %s419 = smov 3
  %v420 = vld [vmem:[%s418] ss:$-3 sm:%s419]
  %421 = vrot.lane.b32.xlu0 %v420, 20
  %v422 = vpop.permute.xlu0 %421
  %vm423 = vcmask 48128
  %s424 = scalar_lea.vmem %s1, 108
  %425 = vst.msk [vmem:[%s424] ss:$-84 sm:$0x3] %vm423, %v422
  %s426 = scalar_lea.vmem %s0, 2
  %v427 = vld [vmem:[%s426] sm:$0x1]
  %428 = vrot.lane.b32.xlu0 %v427, 18
  %v429 = vpop.permute.xlu0 %428
  %vm430 = vcmask 48128
  %s431 = scalar_lea.vmem %s1, 81
  %432 = vst.msk [vmem:[%s431] sm:$0x1] %vm430, %v429
  %s433 = scalar_lea.vmem %s0, 4
  %s434 = smov 3
  %v435 = vld [vmem:[%s433] ss:$-3 sm:%s434]
  %436 = vrot.lane.b32.xlu0 %v435, 16
  %v437 = vpop.permute.xlu0 %436
  %vm438 = vcmask 48128
  %s439 = scalar_lea.vmem %s1, 138
  %440 = vst.msk [vmem:[%s439] ss:$-86 sm:$0x3] %vm438, %v437
  %s441 = scalar_lea.vmem %s0, 3
  %s442 = smov 3
  %v443 = vld [vmem:[%s441] ss:$-3 sm:%s442]
  %444 = vrot.lane.b32.xlu0 %v443, 14
  %v445 = vpop.permute.xlu0 %444
  %vm446 = vcmask 48128
  %s447 = scalar_lea.vmem %s1, 109
  %448 = vst.msk [vmem:[%s447] ss:$-84 sm:$0x3] %vm446, %v445
  %s449 = scalar_lea.vmem %s0, 2
  %v450 = vld [vmem:[%s449] sm:$0x1]
  %451 = vrot.lane.b32.xlu0 %v450, 12
  %v452 = vpop.permute.xlu0 %451
  %vm453 = vcmask 48128
  %s454 = scalar_lea.vmem %s1, 82
  %455 = vst.msk [vmem:[%s454] sm:$0x1] %vm453, %v452
  %s456 = scalar_lea.vmem %s0, 4
  %s457 = smov 3
  %v458 = vld [vmem:[%s456] ss:$-3 sm:%s457]
  %459 = vrot.lane.b32.xlu0 %v458, 10
  %v460 = vpop.permute.xlu0 %459
  %vm461 = vcmask 48128
  %s462 = scalar_lea.vmem %s1, 139
  %463 = vst.msk [vmem:[%s462] ss:$-86 sm:$0x3] %vm461, %v460
  %s464 = scalar_lea.vmem %s0, 3
  %s465 = smov 3
  %v466 = vld [vmem:[%s464] ss:$-3 sm:%s465]
  %467 = vrot.lane.b32.xlu0 %v466, 8
  %v468 = vpop.permute.xlu0 %467
  %vm469 = vcmask 48128
  %s470 = scalar_lea.vmem %s1, 112
  %471 = vst.msk [vmem:[%s470] ss:$-86 sm:$0x3] %vm469, %v468
  %s472 = scalar_lea.vmem %s0, 2
  %v473 = vld [vmem:[%s472] sm:$0x1]
  %474 = vrot.lane.b32.xlu0 %v473, 6
  %v475 = vpop.permute.xlu0 %474
  %vm476 = vcmask 48128
  %s477 = scalar_lea.vmem %s1, 83
  %478 = vst.msk [vmem:[%s477] sm:$0x1] %vm476, %v475
  %s479 = scalar_lea.vmem %s0, 4
  %s480 = smov 3
  %v481 = vld [vmem:[%s479] ss:$-3 sm:%s480]
  %s482 = scalar_lea.vmem %s0, 5
  %s483 = smov 3
  %v484 = vld [vmem:[%s482] ss:$-3 sm:%s483]
  %vm485 = vcmask 1014784
  %v486 = vsel %vm485, %v484, %v481
  %487 = vrot.lane.b32.xlu0 %v486, 4
  %v488 = vpop.permute.xlu0 %487
  %vm489 = vcmask 31744
  %s490 = scalar_lea.vmem %s1, 140
  %491 = vst.msk [vmem:[%s490] ss:$-84 sm:$0x3] %vm489, %v488
  %vm492 = vcmask 48160
  %s493 = scalar_lea.vmem %s1, 140
  %494 = vst.msk [vmem:[%s493] ss:$-84 sm:$0x3] %vm492, %v488
  %s495 = scalar_lea.vmem %s0, 3
  %s496 = smov 3
  %v497 = vld [vmem:[%s495] ss:$-3 sm:%s496]
  %s498 = scalar_lea.vmem %s0, 4
  %s499 = smov 3
  %v500 = vld [vmem:[%s498] ss:$-3 sm:%s499]
  %vm501 = vcmask 1031168
  %v502 = vsel %vm501, %v500, %v497
  %503 = vrot.lane.b32.xlu0 %v502, 2
  %v504 = vpop.permute.xlu0 %503
  %vm505 = vcmask 15360
  %s506 = scalar_lea.vmem %s1, 113
  %507 = vst.msk [vmem:[%s506] ss:$-86 sm:$0x3] %vm505, %v504
  %vm508 = vcmask 48144
  %s509 = scalar_lea.vmem %s1, 113
  %510 = vst.msk [vmem:[%s509] ss:$-86 sm:$0x3] %vm508, %v504

// kernel: stn_small_forward.9
$region0: #{stn_small_forward.9}
  #allocation0 [shape = 'u32[]', space=smem, size = 0x4, offset = 0x4, fixed_abs, tag = 'smem constant byte address 0x4 - core index']
  #allocation1 [shape = 'u32[144,128]{1,0:T(1,128)}', space=vmem, size = 0x12000, scoped, tag = 'internal scratch']
  %s0 = inlined_call_operand.vmem [shape: f32[4,768], index: 0, kind: input, shape index: {}]
  %s1 = inlined_call_operand.vmem [shape: f32[1,768], index: 1, kind: output, shape index: {}]
  %s2 = sld [smem:[#allocation0]]
  $region14: #{stn_small_forward.9} parent=0
    _
  %s4 = ssub.s32 1, %s2
  %s5 = scalar_select 0, %s4, %s2
  // Predicated region
  $region2: #{stn_small_forward.9} parent=0 // pred_check
    _
  $region3: #{stn_small_forward.9} parent=0 // pred_check_branch
    %7 = sbr.rel (0) target = $region5
  $region4: #{stn_small_forward.9} parent=0 // pred_region
    _
  $region5: #{stn_small_forward.9} parent=0 // pred_fallthru
    _
  %v8 = vld [vmem:[%s0] ss:$4 sm:$0x3f]
  %s9 = scalar_lea.vmem %s0, 1
  %v10 = vld [vmem:[%s9] ss:$4 sm:$0x3f]
  %v11 = vmax.f32 %v8, %v10
  %s12 = scalar_lea.vmem %s0, 2
  %v13 = vld [vmem:[%s12] ss:$4 sm:$0x3f]
  %s14 = scalar_lea.vmem %s0, 3
  %v15 = vld [vmem:[%s14] ss:$4 sm:$0x3f]
  %v16 = vmax.f32 %v13, %v15
  %v17 = vmax.f32 %v11, %v16
  %v18 = vmax.f32 %v17, 0.0
  %v19 = vlaneseq
  %vm20 = vcmp.ge.s32.totalorder %v19, 0
  %vm21 = vcmp.lt.s32.totalorder %v19, 768
  %vm22 = vmand %vm20, %vm21
  %23 = vst.msk [vmem:[%s1] sm:$0x3f] %vm22, %v18
  // Predicated region
  $region6: #{stn_small_forward.9} parent=0 // pred_check
    _
  $region7: #{stn_small_forward.9} parent=0 // pred_check_branch
    %25 = sbr.rel (0) target = $region9
  $region8: #{stn_small_forward.9} parent=0 // pred_region
    _
  $region9: #{stn_small_forward.9} parent=0 // pred_fallthru
    _
  // Predicated region
  $region10: #{stn_small_forward.9} parent=0 // pred_check
    _
  $region11: #{stn_small_forward.9} parent=0 // pred_check_branch
    %27 = sbr.rel (0) target = $region13
  $region12: #{stn_small_forward.9} parent=0 // pred_region
    _
  $region13: #{stn_small_forward.9} parent=0 // pred_fallthru
    _

// kernel: stn_small_forward.10
$region0: #{stn_small_forward.10}
  #allocation0 [shape = 'u32[]', space=smem, size = 0x4, offset = 0x4, fixed_abs, tag = 'smem constant byte address 0x4 - core index']
  #allocation1 [shape = 'u32[144,128]{1,0:T(1,128)}', space=vmem, size = 0x12000, scoped, tag = 'internal scratch']
  %s0 = inlined_call_operand.vmem [shape: f32[2,360], index: 0, kind: input, shape index: {}]
  %s1 = inlined_call_operand.vmem [shape: f32[360,32], index: 1, kind: input, shape index: {}]
  %s2 = inlined_call_operand.vmem [shape: f32[1,32], index: 2, kind: input, shape index: {}]
  %s3 = inlined_call_operand.vmem [shape: f32[32,6], index: 3, kind: input, shape index: {}]
  %s4 = inlined_call_operand.vmem [shape: f32[1,6], index: 4, kind: input, shape index: {}]
  %s5 = inlined_call_operand.vmem [shape: f32[2,6], index: 5, kind: output, shape index: {}]
  %s6 = sld [smem:[#allocation0]]
  $region30: #{stn_small_forward.10} parent=0
    _
  %s8 = ssub.s32 1, %s6
  %s9 = scalar_select 0, %s8, %s6
  // Predicated region
  $region2: #{stn_small_forward.10} parent=0 // pred_check
    _
  $region3: #{stn_small_forward.10} parent=0 // pred_check_branch
    %11 = sbr.rel (0) target = $region5
  $region4: #{stn_small_forward.10} parent=0 // pred_region
    _
  $region5: #{stn_small_forward.10} parent=0 // pred_fallthru
    _
  // Predicated region
  $region6: #{stn_small_forward.10} parent=0 // pred_check
    _
  $region7: #{stn_small_forward.10} parent=0 // pred_check_branch
    %13 = sbr.rel (0) target = $region9
  $region8: #{stn_small_forward.10} parent=0 // pred_region
    _
  $region9: #{stn_small_forward.10} parent=0 // pred_fallthru
    _
  // Predicated region
  $region10: #{stn_small_forward.10} parent=0 // pred_check
    _
  $region11: #{stn_small_forward.10} parent=0 // pred_check_branch
    %15 = sbr.rel (0) target = $region13
  $region12: #{stn_small_forward.10} parent=0 // pred_region
    _
  $region13: #{stn_small_forward.10} parent=0 // pred_fallthru
    _
  // Predicated region
  $region14: #{stn_small_forward.10} parent=0 // pred_check
    _
  $region15: #{stn_small_forward.10} parent=0 // pred_check_branch
    %17 = sbr.rel (0) target = $region17
  $region16: #{stn_small_forward.10} parent=0 // pred_region
    _
  $region17: #{stn_small_forward.10} parent=0 // pred_fallthru
    _
  // Predicated region
  $region18: #{stn_small_forward.10} parent=0 // pred_check
    _
  $region19: #{stn_small_forward.10} parent=0 // pred_check_branch
    %19 = sbr.rel (0) target = $region21
  $region20: #{stn_small_forward.10} parent=0 // pred_region
    _
  $region21: #{stn_small_forward.10} parent=0 // pred_fallthru
    _
  %v20 = vld [vmem:[%s0] sm:$0x3f]
  %v21 = vld [vmem:[%s1] sm:$0xff]
  %v22 = vld [vmem:[%s1 + $0x8] sm:$0xff]
  %v23 = vld [vmem:[%s1 + $0x10] sm:$0xff]
  %v24 = vld [vmem:[%s1 + $0x18] sm:$0xff]
  %v25 = vld [vmem:[%s1 + $0x20] sm:$0xff]
  %v26 = vld [vmem:[%s1 + $0x28] sm:$0xff]
  %v27 = vld [vmem:[%s1 + $0x30] sm:$0xff]
  %v28 = vld [vmem:[%s1 + $0x38] sm:$0xff]
  %v29 = vld [vmem:[%s1 + $0x40] sm:$0xff]
  %v30 = vld [vmem:[%s1 + $0x48] sm:$0xff]
  %v31 = vld [vmem:[%s1 + $0x50] sm:$0xff]
  %v32 = vld [vmem:[%s1 + $0x58] sm:$0xff]
  %v33 = vld [vmem:[%s1 + $0x60] sm:$0xff]
  %v34 = vld [vmem:[%s1 + $0x68] sm:$0xff]
  %v35 = vld [vmem:[%s1 + $0x70] sm:$0xff]
  %v36 = vld [vmem:[%s1 + $0x78] sm:$0xff]
  %v37 = vld [vmem:[%s1 + $0x80] sm:$0xff]
  %v38 = vld [vmem:[%s1 + $0x88] sm:$0xff]
  %v39 = vld [vmem:[%s1 + $0x90] sm:$0xff]
  %v40 = vld [vmem:[%s1 + $0x98] sm:$0xff]
  %v41 = vld [vmem:[%s1 + $0xa0] sm:$0xff]
  %v42 = vld [vmem:[%s1 + $0xa8] sm:$0xff]
  %v43 = vld [vmem:[%s1 + $0xb0] sm:$0xff]
  %v44 = vld [vmem:[%s1 + $0xb8] sm:$0xff]
  %v45 = vld [vmem:[%s1 + $0xc0] sm:$0xff]
  %v46 = vld [vmem:[%s1 + $0xc8] sm:$0xff]
  %v47 = vld [vmem:[%s1 + $0xd0] sm:$0xff]
  %v48 = vld [vmem:[%s1 + $0xd8] sm:$0xff]
  %v49 = vld [vmem:[%s1 + $0xe0] sm:$0xff]
  %v50 = vld [vmem:[%s1 + $0xe8] sm:$0xff]
  %v51 = vld [vmem:[%s1 + $0xf0] sm:$0xff]
  %v52 = vld [vmem:[%s1 + $0xf8] sm:$0xff]
  %v53 = vld [vmem:[%s1 + $0x100] sm:$0xff]
  %v54 = vld [vmem:[%s1 + $0x108] sm:$0xff]
  %v55 = vld [vmem:[%s1 + $0x110] sm:$0xff]
  %v56 = vld [vmem:[%s1 + $0x118] sm:$0xff]
  %v57 = vld [vmem:[%s1 + $0x120] sm:$0xff]
  %v58 = vld [vmem:[%s1 + $0x128] sm:$0xff]
  %v59 = vld [vmem:[%s1 + $0x130] sm:$0xff]
  %v60 = vld [vmem:[%s1 + $0x138] sm:$0xff]
  %v61 = vld [vmem:[%s1 + $0x140] sm:$0xff]
  %v62 = vld [vmem:[%s1 + $0x148] sm:$0xff]
  %v63 = vld [vmem:[%s1 + $0x150] sm:$0xff]
  %v64 = vld [vmem:[%s1 + $0x158] sm:$0xff]
  %v65 = vld [vmem:[%s1 + $0x160] sm:$0xff]
  %v66 = vld [vmem:[%s2] sm:$0x1]
  %v68 = vlaneseq
  %v69 = vshrl.u32 %v68, 7
  %v70 = vsub.s32 0, %v69
  %v71 = vrot.slane %v66, %v70
  %v74 = vcombine.high %v20, %v20
  %v76 = vunpack.c.l.s4 1983009808
  %v77 = vunpack.c.0.s8 %v76
  %v78 = vlaneseq
  %v79 = vshrl.u32 %v78, 7
  %v80 = vsub.s32 %v77, %v79
  %v81 = vrot.slane %v20, %v80
  %v83 = vunpack.c.l.s4 1983009808
  %v84 = vunpack.c.0.s8 %v83
  %v85 = vlaneseq
  %v86 = vshrl.u32 %v85, 7
  %v87 = vsub.s32 %v84, %v86
  %v88 = vrot.slane %v74, %v87
  %v89 = vcombine.high %v81, %v81
  %vm92 = vcmask 850944
  %v93 = vsel %vm92, %v88, 0
  %95 = vmatprep.subr.mxu0 0.0
  %96 = vmatpush1.msra.mxu0 %v36
  %97 = vmatprep.subr.mxu0 0.0
  %98 = vmatpush1.msra.mxu0 %v35
  %99 = vmatprep.subr.mxu0 0.0
  %100 = vmatpush1.msra.mxu0 %v34
  %101 = vmatprep.subr.mxu0 0.0
  %102 = vmatpush1.msra.mxu0 %v33
  %103 = vmatprep.subr.mxu0 0.0
  %104 = vmatpush1.msra.mxu0 %v32
  %105 = vmatprep.subr.mxu0 0.0
  %106 = vmatpush1.msra.mxu0 %v31
  %107 = vmatprep.subr.mxu0 0.0
  %108 = vmatpush1.msra.mxu0 %v30
  %109 = vmatprep.subr.mxu0 0.0
  %110 = vmatpush1.msra.mxu0 %v29
  %111 = vmatprep.subr.mxu0 0.0
  %112 = vmatpush1.msra.mxu0 %v28
  %113 = vmatprep.subr.mxu0 0.0
  %114 = vmatpush1.msra.mxu0 %v27
  %115 = vmatprep.subr.mxu0 0.0
  %116 = vmatpush1.msra.mxu0 %v26
  %117 = vmatprep.subr.mxu0 0.0
  %118 = vmatpush1.msra.mxu0 %v25
  %119 = vmatprep.subr.mxu0 0.0
  %120 = vmatpush1.msra.mxu0 %v24
  %121 = vmatprep.subr.mxu0 0.0
  %122 = vmatpush1.msra.mxu0 %v23
  %123 = vmatprep.subr.mxu0 0.0
  %124 = vmatpush1.msra.mxu0 %v22
  %125 = vmatprep.subr.mxu0 0.0
  %126 = vmatpush1.msra.mxu0 %v21
  %127 = vmatprep.subr.mxu0 0.0
  %128 = vmatpush2.msra.mxu0 %v52
  %129 = vmatprep.subr.mxu0 0.0
  %130 = vmatpush2.msra.mxu0 %v51
  %131 = vmatprep.subr.mxu0 0.0
  %132 = vmatpush2.msra.mxu0 %v50
  %133 = vmatprep.subr.mxu0 0.0
  %134 = vmatpush2.msra.mxu0 %v49
  %135 = vmatprep.subr.mxu0 0.0
  %136 = vmatpush2.msra.mxu0 %v48
  %137 = vmatprep.subr.mxu0 0.0
  %138 = vmatpush2.msra.mxu0 %v47
  %139 = vmatprep.subr.mxu0 0.0
  %140 = vmatpush2.msra.mxu0 %v46
  %141 = vmatprep.subr.mxu0 0.0
  %142 = vmatpush2.msra.mxu0 %v45
  %143 = vmatprep.subr.mxu0 0.0
  %144 = vmatpush2.msra.mxu0 %v44
  %145 = vmatprep.subr.mxu0 0.0
  %146 = vmatpush2.msra.mxu0 %v43
  %147 = vmatprep.subr.mxu0 0.0
  %148 = vmatpush2.msra.mxu0 %v42
  %149 = vmatprep.subr.mxu0 0.0
  %150 = vmatpush2.msra.mxu0 %v41
  %151 = vmatprep.subr.mxu0 0.0
  %152 = vmatpush2.msra.mxu0 %v40
  %153 = vmatprep.subr.mxu0 0.0
  %154 = vmatpush2.msra.mxu0 %v39
  %155 = vmatprep.subr.mxu0 0.0
  %156 = vmatpush2.msra.mxu0 %v38
  %157 = vmatprep.subr.mxu0 0.0
  %158 = vmatpush2.msra.mxu0 %v37
  %159 = vmatprep.mubr.f32.mxu0 %v89
  %160 = vmatmul.mubr.f32.gmra.mxu0 %v81
  %v161 = vpop.f32.mrf.mxu0
  %v162 = vadd.f32 %v71, %v161
  %v163 = vpop.f32.mrf.mxu0
  %164 = vdwg.mxu0
  %165 = vmatprep.subr.mxu0 0.0
  %166 = vmatpush1.msra.mxu0 0.0
  %167 = vmatprep.subr.mxu0 0.0
  %168 = vmatpush1.msra.mxu0 0.0
  %169 = vmatprep.subr.mxu0 0.0
  %170 = vmatpush1.msra.mxu0 0.0
  %171 = vmatprep.subr.mxu0 0.0
  %172 = vmatpush1.msra.mxu0 %v65
  %173 = vmatprep.subr.mxu0 0.0
  %174 = vmatpush1.msra.mxu0 %v64
  %175 = vmatprep.subr.mxu0 0.0
  %176 = vmatpush1.msra.mxu0 %v63
  %177 = vmatprep.subr.mxu0 0.0
  %178 = vmatpush1.msra.mxu0 %v62
  %179 = vmatprep.subr.mxu0 0.0
  %180 = vmatpush1.msra.mxu0 %v61
  %181 = vmatprep.subr.mxu0 0.0
  %182 = vmatpush1.msra.mxu0 %v60
  %183 = vmatprep.subr.mxu0 0.0
  %184 = vmatpush1.msra.mxu0 %v59
  %185 = vmatprep.subr.mxu0 0.0
  %186 = vmatpush1.msra.mxu0 %v58
  %187 = vmatprep.subr.mxu0 0.0
  %188 = vmatpush1.msra.mxu0 %v57
  %189 = vmatprep.subr.mxu0 0.0
  %190 = vmatpush1.msra.mxu0 %v56
  %191 = vmatprep.subr.mxu0 0.0
  %192 = vmatpush1.msra.mxu0 %v55
  %193 = vmatprep.subr.mxu0 0.0
  %194 = vmatpush1.msra.mxu0 %v54
  %195 = vmatprep.subr.mxu0 0.0
  %196 = vmatpush1.msra.mxu0 %v53
  %197 = vmatprep.subr.mxu0 0.0
  %198 = vmatpush2.msra.mxu0 0.0
  %199 = vmatprep.subr.mxu0 0.0
  %200 = vmatpush2.msra.mxu0 0.0
  %201 = vmatprep.subr.mxu0 0.0
  %202 = vmatpush2.msra.mxu0 0.0
  %203 = vmatprep.subr.mxu0 0.0
  %204 = vmatpush2.msra.mxu0 0.0
  %205 = vmatprep.subr.mxu0 0.0
  %206 = vmatpush2.msra.mxu0 0.0
  %207 = vmatprep.subr.mxu0 0.0
  %208 = vmatpush2.msra.mxu0 0.0
  %209 = vmatprep.subr.mxu0 0.0
  %210 = vmatpush2.msra.mxu0 0.0
  %211 = vmatprep.subr.mxu0 0.0
  %212 = vmatpush2.msra.mxu0 0.0
  %213 = vmatprep.subr.mxu0 0.0
  %214 = vmatpush2.msra.mxu0 0.0
  %215 = vmatprep.subr.mxu0 0.0
  %216 = vmatpush2.msra.mxu0 0.0
  %217 = vmatprep.subr.mxu0 0.0
  %218 = vmatpush2.msra.mxu0 0.0
  %219 = vmatprep.subr.mxu0 0.0
  %220 = vmatpush2.msra.mxu0 0.0
  %221 = vmatprep.subr.mxu0 0.0
  %222 = vmatpush2.msra.mxu0 0.0
  %223 = vmatprep.subr.mxu0 0.0
  %224 = vmatpush2.msra.mxu0 0.0
  %225 = vmatprep.subr.mxu0 0.0
  %226 = vmatpush2.msra.mxu0 0.0
  %227 = vmatprep.subr.mxu0 0.0
  %228 = vmatpush2.msra.mxu0 0.0
  %229 = vmatprep.mubr.f32.mxu0 0.0
  %230 = vmatmul.mubr.f32.gmra.mxu0 %v93
  %v231 = vpop.f32.mrf.mxu0
  %v232 = vadd.f32 %v162, %v231
  %v233 = vpop.f32.mrf.mxu0
  %234 = vdwg.mxu0
  %v235 = vmax.f32 %v232, 0.0
  %v236 = vld [vmem:[%s3] sm:$0xff]
  %v237 = vld [vmem:[%s3 + $0x8] sm:$0xff]
  %v238 = vld [vmem:[%s3 + $0x10] sm:$0xff]
  %v239 = vld [vmem:[%s3 + $0x18] sm:$0xff]
  %v240 = vld [vmem:[%s4] sm:$0x1]
  %v242 = vlaneseq
  %v243 = vshrl.u32 %v242, 7
  %v244 = vsub.s32 0, %v243
  %v245 = vrot.slane %v240, %v244
  %vm247 = vcmask 261120
  %v249 = vsel %vm247, %v235, 0
  %251 = vmatprep.subr.mxu0 0.0
  %252 = vmatpush1.msra.mxu0 0.0
  %253 = vmatprep.subr.mxu0 0.0
  %254 = vmatpush1.msra.mxu0 0.0
  %255 = vmatprep.subr.mxu0 0.0
  %256 = vmatpush1.msra.mxu0 0.0
  %257 = vmatprep.subr.mxu0 0.0
  %258 = vmatpush1.msra.mxu0 0.0
  %259 = vmatprep.subr.mxu0 0.0
  %260 = vmatpush1.msra.mxu0 0.0
  %261 = vmatprep.subr.mxu0 0.0
  %262 = vmatpush1.msra.mxu0 0.0
  %263 = vmatprep.subr.mxu0 0.0
  %264 = vmatpush1.msra.mxu0 0.0
  %265 = vmatprep.subr.mxu0 0.0
  %266 = vmatpush1.msra.mxu0 0.0
  %267 = vmatprep.subr.mxu0 0.0
  %268 = vmatpush1.msra.mxu0 0.0
  %269 = vmatprep.subr.mxu0 0.0
  %270 = vmatpush1.msra.mxu0 0.0
  %271 = vmatprep.subr.mxu0 0.0
  %272 = vmatpush1.msra.mxu0 0.0
  %273 = vmatprep.subr.mxu0 0.0
  %274 = vmatpush1.msra.mxu0 0.0
  %275 = vmatprep.subr.mxu0 0.0
  %276 = vmatpush1.msra.mxu0 %v239
  %277 = vmatprep.subr.mxu0 0.0
  %278 = vmatpush1.msra.mxu0 %v238
  %279 = vmatprep.subr.mxu0 0.0
  %280 = vmatpush1.msra.mxu0 %v237
  %281 = vmatprep.subr.mxu0 0.0
  %282 = vmatpush1.msra.mxu0 %v236
  %283 = vmatprep.subr.mxu0 0.0
  %284 = vmatpush2.msra.mxu0 0.0
  %285 = vmatprep.subr.mxu0 0.0
  %286 = vmatpush2.msra.mxu0 0.0
  %287 = vmatprep.subr.mxu0 0.0
  %288 = vmatpush2.msra.mxu0 0.0
  %289 = vmatprep.subr.mxu0 0.0
  %290 = vmatpush2.msra.mxu0 0.0
  %291 = vmatprep.subr.mxu0 0.0
  %292 = vmatpush2.msra.mxu0 0.0
  %293 = vmatprep.subr.mxu0 0.0
  %294 = vmatpush2.msra.mxu0 0.0
  %295 = vmatprep.subr.mxu0 0.0
  %296 = vmatpush2.msra.mxu0 0.0
  %297 = vmatprep.subr.mxu0 0.0
  %298 = vmatpush2.msra.mxu0 0.0
  %299 = vmatprep.subr.mxu0 0.0
  %300 = vmatpush2.msra.mxu0 0.0
  %301 = vmatprep.subr.mxu0 0.0
  %302 = vmatpush2.msra.mxu0 0.0
  %303 = vmatprep.subr.mxu0 0.0
  %304 = vmatpush2.msra.mxu0 0.0
  %305 = vmatprep.subr.mxu0 0.0
  %306 = vmatpush2.msra.mxu0 0.0
  %307 = vmatprep.subr.mxu0 0.0
  %308 = vmatpush2.msra.mxu0 0.0
  %309 = vmatprep.subr.mxu0 0.0
  %310 = vmatpush2.msra.mxu0 0.0
  %311 = vmatprep.subr.mxu0 0.0
  %312 = vmatpush2.msra.mxu0 0.0
  %313 = vmatprep.subr.mxu0 0.0
  %314 = vmatpush2.msra.mxu0 0.0
  %315 = vmatprep.mubr.f32.mxu0 0.0
  %316 = vmatmul.mubr.f32.gmra.mxu0 %v249
  %v317 = vpop.f32.mrf.mxu0
  %v318 = vadd.f32 %v245, %v317
  %v319 = vpop.f32.mrf.mxu0
  %320 = vdwg.mxu0
  %vm321 = vcmask 41984
  %322 = vst.msk [vmem:[%s5] sm:$0x3] %vm321, %v318
  // Predicated region
  $region22: #{stn_small_forward.10} parent=0 // pred_check
    _
  $region23: #{stn_small_forward.10} parent=0 // pred_check_branch
    %324 = sbr.rel (0) target = $region25
  $region24: #{stn_small_forward.10} parent=0 // pred_region
    _
  $region25: #{stn_small_forward.10} parent=0 // pred_fallthru
    _
  // Predicated region
  $region26: #{stn_small_forward.10} parent=0 // pred_check
    _
  $region27: #{stn_small_forward.10} parent=0 // pred_check_branch
    %326 = sbr.rel (0) target = $region29
  $region28: #{stn_small_forward.10} parent=0 // pred_region
    _
  $region29: #{stn_small_forward.10} parent=0 // pred_fallthru
    _

// kernel: stn_small_forward.11
$region0: #{stn_small_forward.11}
  #allocation0 [shape = 'u32[]', space=smem, size = 0x4, offset = 0x4, fixed_abs, tag = 'smem constant byte address 0x4 - core index']
  #allocation1 [shape = 'u32[144,128]{1,0:T(1,128)}', space=vmem, size = 0x12000, scoped, tag = 'internal scratch']
  #allocation2 [shape = 's32[1]{0}', space=sflag, size = 0x4, scoped, tag = 'scoped memory for stn_small_forward.11']
  #allocation3 [shape = 'u8[1024]{0}', space=smem, size = 0x400, scoped, tag = 'prefetched SMEM operand 0']
  %s0 = inlined_call_operand.vmem [shape: f32[2,6], index: 0, kind: input, shape index: {}]
  %s1 = inlined_call_operand.vmem [shape: f32[2,2560], index: 1, kind: input, shape index: {}]
  %s2 = inlined_call_operand.vmem [shape: f32[2,144,48], index: 2, kind: input, shape index: {}]
  %s3 = inlined_call_operand.vmem [shape: f32[2,3,2560], index: 3, kind: output, shape index: {}]
  %s4 = sld [smem:[#allocation0]]
  $region41: #{stn_small_forward.11} parent=0
    _
  %s6 = ssub.s32 1, %s4
  %s7 = scalar_select 0, %s6, %s4
  %s8 = sshll.u32 %s0, 4
  %s9 = int_to_ptr.vmem [resolvable:$true] %s8
  %11 = dma.vmem_to_smem %s9, 32, [#allocation3], [#allocation2]
  %12 = dma.done [#allocation2], 32
  %13 = sfence
  loop: start=0, step=1, limit=12
  $region2: #{stn_small_forward.11} parent=0 // loop_pre_header
    _
  $region3: #{stn_small_forward.11} parent=0 // loop_header
    %s15 = sphi 0, %s19
    %p16 = scmp.ge.s32.totalorder %s15, 12
    %s22 = sphi 0, %s34
    %s23 = sphi 0, %s30
    %s24 = sphi 0, %s22
    %s25 = sphi 0, %s23
    %s26 = sphi 0, %s24
    %s27 = sphi 0, %s25
    %s37 = sphi 0, %s39
    %s40 = sphi 0, %s37
    %s41 = sphi 0, %s40
    %s57 = sphi 0, %s41
    %s63 = sphi 0, %s65
    %s66 = sphi 0, %s63
    %s67 = sphi 0, %s66
    %s83 = sphi 0, %s67
    %s91 = sphi 0, %s93
    %s94 = sphi 0, %s91
    %s95 = sphi 0, %s94
    %s111 = sphi 0, %s95
  $region4: #{stn_small_forward.11} parent=0 // loop_header_branch
    %18 = sbr.rel (%p16) target = $region8
  $region5: #{stn_small_forward.11} parent=0 // loop_body
    %s20 = ssub.s32 %s15, 1
    %s21 = ssub.s32 %s15, 2
    %s28 = sadd.s32 1, %s23
    %p29 = scmp.ge.s32.totalorder %s28, 5
    %s30 = scalar_select %p29, 0, %s28
    %s31 = sadd.s32 1, %s22
    %s32 = scalar_select %p29, %s31, %s22
    %p33 = scmp.ge.s32.totalorder %s32, 2
    %s34 = scalar_select %p33, 0, %s32
    %s35 = ssub.s32 %s23, %s30
    %p36 = scmp.eq.s32.totalorder %s35, 0
    %s38 = sadd.s32 %s37, 1
    %s39 = scalar_select %p36, %s37, %s38
    %p42 = pneg %p36
    %p43 = scmp.eq.s32.totalorder %s15, 9
    %p44 = por %p42, %p43
    %p45 = scmp.ne.s32.totalorder %s37, %s40
    %p46 = scmp.eq.s32.totalorder %s15, 0
    %p47 = por %p45, %p46
    %p48 = scmp.ne.s32.totalorder %s37, %s40
    %p49 = scmp.eq.s32.totalorder %s20, 9
    %p50 = por %p48, %p49
    %p51 = scmp.ne.s32.totalorder %s40, %s41
    %p52 = scmp.eq.s32.totalorder %s20, 0
    %p53 = por %p51, %p52
    %p54 = scmp.ne.s32.totalorder %s40, %s41
    %p55 = scmp.eq.s32.totalorder %s21, 9
    %p56 = por %p54, %p55
    %p58 = scmp.ne.s32.totalorder %s41, %s57
    %p59 = scmp.eq.s32.totalorder %s21, 0
    %p60 = por %p58, %p59
    %s61 = ssub.s32 %s22, %s34
    %p62 = scmp.eq.s32.totalorder %s61, 0
    %s64 = sadd.s32 %s63, 1
    %s65 = scalar_select %p62, %s63, %s64
    %p68 = pneg %p62
    %p69 = scmp.eq.s32.totalorder %s15, 9
    %p70 = por %p68, %p69
    %p71 = scmp.ne.s32.totalorder %s63, %s66
    %p72 = scmp.eq.s32.totalorder %s15, 0
    %p73 = por %p71, %p72
    %p74 = scmp.ne.s32.totalorder %s63, %s66
    %p75 = scmp.eq.s32.totalorder %s20, 9
    %p76 = por %p74, %p75
    %p77 = scmp.ne.s32.totalorder %s66, %s67
    %p78 = scmp.eq.s32.totalorder %s20, 0
    %p79 = por %p77, %p78
    %p80 = scmp.ne.s32.totalorder %s66, %s67
    %p81 = scmp.eq.s32.totalorder %s21, 9
    %p82 = por %p80, %p81
    %p84 = scmp.ne.s32.totalorder %s67, %s83
    %p85 = scmp.eq.s32.totalorder %s21, 0
    %p86 = por %p84, %p85
    %s87 = ssub.s32 %s22, %s34
    %s88 = ssub.s32 %s23, %s30
    %s89 = sor.u32 %s87, %s88
    %p90 = scmp.eq.s32.totalorder %s89, 0
    %s92 = sadd.s32 %s91, 1
    %s93 = scalar_select %p90, %s91, %s92
    %p96 = pneg %p90
    %p97 = scmp.eq.s32.totalorder %s15, 9
    %p98 = por %p96, %p97
    %p99 = scmp.ne.s32.totalorder %s91, %s94
    %p100 = scmp.eq.s32.totalorder %s15, 0
    %p101 = por %p99, %p100
    %p102 = scmp.ne.s32.totalorder %s91, %s94
    %p103 = scmp.eq.s32.totalorder %s20, 9
    %p104 = por %p102, %p103
    %p105 = scmp.ne.s32.totalorder %s94, %s95
    %p106 = scmp.eq.s32.totalorder %s20, 0
    %p107 = por %p105, %p106
    %p108 = scmp.ne.s32.totalorder %s94, %s95
    %p109 = scmp.eq.s32.totalorder %s21, 9
    %p110 = por %p108, %p109
    %p112 = scmp.ne.s32.totalorder %s95, %s111
    %p113 = scmp.eq.s32.totalorder %s21, 0
    %p114 = por %p112, %p113
    %p115 = scmp.le.s32.totalorder 1, %s15
    %p116 = scmp.lt.s32.totalorder %s15, 11
    %p117 = pnand %p115, %p116
    %p118 = pneg %p117
    // Predicated region
    $region9: #{stn_small_forward.11} parent=5 // pred_check
      _
    $region10: #{stn_small_forward.11} parent=5 // pred_check_branch
      %120 = sbr.rel (%p117) target = $region12
    $region11: #{stn_small_forward.11} parent=5 // pred_region
      %s121 = ssub.s32 %s15, 1
    $region12: #{stn_small_forward.11} parent=5 // pred_fallthru
      _
    %p122 = scmp.lt.s32.totalorder %s15, 10
    // Predicated region
    $region13: #{stn_small_forward.11} parent=5 // pred_check
      %p123 = pneg %p122
    $region14: #{stn_small_forward.11} parent=5 // pred_check_branch
      %125 = sbr.rel (%p123) target = $region16
    $region15: #{stn_small_forward.11} parent=5 // pred_region
      // Predicated region
      $region17: #{stn_small_forward.11} parent=15 // pred_check
        %p126 = pneg %p47
      $region18: #{stn_small_forward.11} parent=15 // pred_check_branch
        %128 = sbr.rel (%p126) target = $region20
      $region19: #{stn_small_forward.11} parent=15 // pred_region
        %s129 = smul.u32 4, %s23
        %p130 = scmp.lt.s32.totalorder %s129, 19
        %s131 = scalar_select %p130, %s129, 19
        %s132 = smul.addr %s131, 2
        %s133 = scalar_lea.vmem %s1, %s132
        %s134 = smul.u32 4, %s23
      $region20: #{stn_small_forward.11} parent=15 // pred_fallthru
        _
      // Predicated region
      $region21: #{stn_small_forward.11} parent=15 // pred_check
        %p135 = pneg %p73
      $region22: #{stn_small_forward.11} parent=15 // pred_check_branch
        %137 = sbr.rel (%p135) target = $region24
      $region23: #{stn_small_forward.11} parent=15 // pred_region
        %p138 = scmp.lt.s32.totalorder %s22, 1
        %s139 = scalar_select %p138, %s22, 1
        %s140 = smul.addr %s139, 18
        %s141 = smul.addr %s140, 8
        %s142 = scalar_lea.vmem %s2, %s141
      $region24: #{stn_small_forward.11} parent=15 // pred_fallthru
        _
    $region16: #{stn_small_forward.11} parent=5 // pred_fallthru
      _
    %p143 = scmp.le.s32.totalorder 1, %s15
    %p144 = scmp.lt.s32.totalorder %s15, 11
    %p145 = pnand %p143, %p144
    %p146 = pneg %p145
    // Predicated region
    $region25: #{stn_small_forward.11} parent=5 // pred_check
      _
    $region26: #{stn_small_forward.11} parent=5 // pred_check_branch
      %148 = sbr.rel (%p145) target = $region28
    $region27: #{stn_small_forward.11} parent=5 // pred_region
      %s149 = ssub.s32 %s15, 1
      %s150 = smul.u32 4, %s25
      %p151 = scmp.lt.s32.totalorder %s150, 19
      %s152 = scalar_select %p151, %s150, 19
      %s153 = smul.addr %s152, 2
      %s154 = scalar_lea.vmem %s1, %s153
      %p155 = pneg %p53
      %p156 = pneg %p50
      %p157 = scmp.lt.s32.totalorder %s24, 1
      %s158 = scalar_select %p157, %s24, 1
      %s159 = smul.addr %s158, 18
      %s160 = smul.addr %s159, 8
      %s161 = scalar_lea.vmem %s2, %s160
      %p162 = pneg %p79
      %p163 = pneg %p76
      %p164 = pneg %p107
      %p165 = pneg %p104
      %s166 = smul.u32 4, %s25
      %p167 = scmp.lt.s32.totalorder %s24, 1
      %s168 = scalar_select %p167, %s24, 1
      %p169 = scmp.lt.s32.totalorder %s166, 19
      %s170 = scalar_select %p169, %s166, 19
      %s171 = smul.addr %s168, 20
      %s172 = sadd.s32 %s170, %s171
      %s173 = smul.addr %s172, 4
      %s174 = scalar_lea.vmem %s3, %s173
      %s175 = smul.u32 4, %s25
      %p176 = scmp.lt.s32.totalorder %s175, 19
      %s177 = scalar_select %p176, %s175, 19
      %s178 = smul.addr %s177, 2
      %s179 = scalar_lea.vmem %s1, %s178
      %s180 = smul.u32 4, %s25
      %p181 = scmp.lt.s32.totalorder %s24, 1
      %s182 = scalar_select %p181, %s24, 1
      %s183 = smul.addr %s182, 18
      %s184 = smul.addr %s183, 8
      %s185 = scalar_lea.vmem %s2, %s184
      %s186 = smul.u32 4, %s25
      %p187 = scmp.lt.s32.totalorder %s24, 1
      %s188 = scalar_select %p187, %s24, 1
      %p189 = scmp.lt.s32.totalorder %s186, 19
      %s190 = scalar_select %p189, %s186, 19
      %s191 = smul.addr %s188, 20
      %s192 = sadd.s32 %s190, %s191
      %s193 = smul.addr %s192, 4
      %s194 = scalar_lea.vmem %s3, %s193
      %s195 = smul.u32 4, %s25
      %v196 = vld [vmem:[%s179] ss:$2 sm:$0xf]
      %s197 = scalar_lea.vmem %s179, 1
      %v198 = vld [vmem:[%s197] ss:$2 sm:$0xf]
      %s199 = smul.u32 %s24, 128
      %s200 = sld [smem:[#allocation3 + %s199]]
      %s201 = sadd.s32 %s199, 1
      %s202 = sld [smem:[#allocation3 + %s201]]
      %s203 = sadd.s32 %s199, 2
      %s204 = sld [smem:[#allocation3 + %s203]]
      %s205 = sadd.s32 %s199, 3
      %s206 = sld [smem:[#allocation3 + %s205]]
      %s207 = sadd.s32 %s199, 4
      %s208 = sld [smem:[#allocation3 + %s207]]
      %s209 = sadd.s32 %s199, 5
      %s210 = sld [smem:[#allocation3 + %s209]]
      %v211 = vstv %s200
      %v212 = vmul.f32 %v211, %v196
      %v213 = vstv %s202
      %v214 = vmul.f32 %v213, %v198
      %v215 = vadd.f32 %v212, %v214
      %v216 = vstv %s204
      %v217 = vadd.f32 %v215, %v216
      %v218 = vstv %s206
      %v219 = vmul.f32 %v218, %v196
      %v220 = vstv %s208
      %v221 = vmul.f32 %v220, %v198
      %v222 = vadd.f32 %v219, %v221
      %v223 = vstv %s210
      %v224 = vadd.f32 %v222, %v223
      %v225 = vadd.f32 %v217, 1.0
      %v226 = vmul.f32 %v225, 47.0
      %v227 = vsub.f32 %v226, 1.0
      %v228 = vmul.f32 %v227, 0.5
      %v229 = vadd.f32 %v224, 1.0
      %v230 = vmul.f32 %v229, 47.0
      %v231 = vsub.f32 %v230, 1.0
      %v232 = vmul.f32 %v231, 0.5
      %v233 = vfloor.f32 %v228
      %v234 = vfloor.f32 %v232
      %v235 = vsub.f32 %v228, %v233
      %v236 = vsub.f32 1.0, %v235
      %v237 = vsub.f32 %v232, %v234
      %v238 = vsub.f32 1.0, %v237
      %v239 = vcvt.f32.s32.to.zero.pseudo %v233
      %v240 = vcvt.f32.s32.to.zero.pseudo %v234
      %v241 = vlaneseq
      %v242 = vshrl.u32 %v241, 7
      %v243 = vadd.s32 %v242, 8
      %v244 = vadd.s32 %v242, 16
      %v245 = vadd.s32 %v242, 24
      %v246 = vadd.s32 %v242, 32
      %v247 = vadd.s32 %v242, 40
      %v248 = vlaneseq
      %v249 = vshrl.u32 %v248, 7
      %v250 = vsub.s32 0, %v249
      %v251 = vrot.slane %v239, %v250
      %v252 = vlaneseq
      %v253 = vshrl.u32 %v252, 7
      %v254 = vsub.s32 1, %v253
      %v255 = vrot.slane %v239, %v254
      %v256 = vlaneseq
      %v257 = vshrl.u32 %v256, 7
      %v258 = vsub.s32 2, %v257
      %v259 = vrot.slane %v239, %v258
      %v260 = vlaneseq
      %v261 = vshrl.u32 %v260, 7
      %v262 = vsub.s32 3, %v261
      %v263 = vrot.slane %v239, %v262
      %vm264 = vcmp.eq.s32.totalorder %v242, %v251
      %vm265 = vcmp.eq.s32.totalorder %v242, %v255
      %vm266 = vcmp.eq.s32.totalorder %v242, %v259
      %vm267 = vcmp.eq.s32.totalorder %v242, %v263
      %vm268 = vcmp.eq.s32.totalorder %v243, %v251
      %vm269 = vcmp.eq.s32.totalorder %v243, %v255
      %vm270 = vcmp.eq.s32.totalorder %v243, %v259
      %vm271 = vcmp.eq.s32.totalorder %v243, %v263
      %vm272 = vcmp.eq.s32.totalorder %v244, %v251
      %vm273 = vcmp.eq.s32.totalorder %v244, %v255
      %vm274 = vcmp.eq.s32.totalorder %v244, %v259
      %vm275 = vcmp.eq.s32.totalorder %v244, %v263
      %vm276 = vcmp.eq.s32.totalorder %v245, %v251
      %vm277 = vcmp.eq.s32.totalorder %v245, %v255
      %vm278 = vcmp.eq.s32.totalorder %v245, %v259
      %vm279 = vcmp.eq.s32.totalorder %v245, %v263
      %vm280 = vcmp.eq.s32.totalorder %v246, %v251
      %vm281 = vcmp.eq.s32.totalorder %v246, %v255
      %vm282 = vcmp.eq.s32.totalorder %v246, %v259
      %vm283 = vcmp.eq.s32.totalorder %v246, %v263
      %vm284 = vcmp.eq.s32.totalorder %v247, %v251
      %vm285 = vcmp.eq.s32.totalorder %v247, %v255
      %vm286 = vcmp.eq.s32.totalorder %v247, %v259
      %vm287 = vcmp.eq.s32.totalorder %v247, %v263
      %v288 = vsel %vm264, 1, 0
      %v289 = vsel %vm265, 1, 0
      %v290 = vsel %vm266, 1, 0
      %v291 = vsel %vm267, 1, 0
      %v292 = vsel %vm268, 1, 0
      %v293 = vsel %vm269, 1, 0
      %v294 = vsel %vm270, 1, 0
      %v295 = vsel %vm271, 1, 0
      %v296 = vsel %vm272, 1, 0
      %v297 = vsel %vm273, 1, 0
      %v298 = vsel %vm274, 1, 0
      %v299 = vsel %vm275, 1, 0
      %v300 = vsel %vm276, 1, 0
      %v301 = vsel %vm277, 1, 0
      %v302 = vsel %vm278, 1, 0
      %v303 = vsel %vm279, 1, 0
      %v304 = vsel %vm280, 1, 0
      %v305 = vsel %vm281, 1, 0
      %v306 = vsel %vm282, 1, 0
      %v307 = vsel %vm283, 1, 0
      %v308 = vsel %vm284, 1, 0
      %v309 = vsel %vm285, 1, 0
      %v310 = vsel %vm286, 1, 0
      %v311 = vsel %vm287, 1, 0
      %v312 = vcvt.s32.f32 %v288
      %v313 = vcvt.s32.f32 %v289
      %v314 = vcvt.s32.f32 %v290
      %v315 = vcvt.s32.f32 %v291
      %v316 = vcvt.s32.f32 %v292
      %v317 = vcvt.s32.f32 %v293
      %v318 = vcvt.s32.f32 %v294
      %v319 = vcvt.s32.f32 %v295
      %v320 = vcvt.s32.f32 %v296
      %v321 = vcvt.s32.f32 %v297
      %v322 = vcvt.s32.f32 %v298
      %v323 = vcvt.s32.f32 %v299
      %v324 = vcvt.s32.f32 %v300
      %v325 = vcvt.s32.f32 %v301
      %v326 = vcvt.s32.f32 %v302
      %v327 = vcvt.s32.f32 %v303
      %v328 = vcvt.s32.f32 %v304
      %v329 = vcvt.s32.f32 %v305
      %v330 = vcvt.s32.f32 %v306
      %v331 = vcvt.s32.f32 %v307
      %v332 = vcvt.s32.f32 %v308
      %v333 = vcvt.s32.f32 %v309
      %v334 = vcvt.s32.f32 %v310
      %v335 = vcvt.s32.f32 %v311
      %v337 = vlaneseq
      %v338 = vshrl.u32 %v337, 7
      %v339 = vsub.s32 0, %v338
      %v340 = vrot.slane %v236, %v339
      %v341 = vlaneseq
      %v342 = vshrl.u32 %v341, 7
      %v343 = vsub.s32 1, %v342
      %v344 = vrot.slane %v236, %v343
      %v345 = vlaneseq
      %v346 = vshrl.u32 %v345, 7
      %v347 = vsub.s32 2, %v346
      %v348 = vrot.slane %v236, %v347
      %v349 = vlaneseq
      %v350 = vshrl.u32 %v349, 7
      %v351 = vsub.s32 3, %v350
      %v352 = vrot.slane %v236, %v351
      %v357 = vmul.f32 %v340, %v312
      %v358 = vmul.f32 %v344, %v313
      %v359 = vmul.f32 %v348, %v314
      %v360 = vmul.f32 %v352, %v315
      %v361 = vmul.f32 %v340, %v316
      %v362 = vmul.f32 %v344, %v317
      %v363 = vmul.f32 %v348, %v318
      %v364 = vmul.f32 %v352, %v319
      %v365 = vmul.f32 %v340, %v320
      %v366 = vmul.f32 %v344, %v321
      %v367 = vmul.f32 %v348, %v322
      %v368 = vmul.f32 %v352, %v323
      %v369 = vmul.f32 %v340, %v324
      %v370 = vmul.f32 %v344, %v325
      %v371 = vmul.f32 %v348, %v326
      %v372 = vmul.f32 %v352, %v327
      %v373 = vmul.f32 %v340, %v328
      %v374 = vmul.f32 %v344, %v329
      %v375 = vmul.f32 %v348, %v330
      %v376 = vmul.f32 %v352, %v331
      %v377 = vmul.f32 %v340, %v332
      %v378 = vmul.f32 %v344, %v333
      %v379 = vmul.f32 %v348, %v334
      %v380 = vmul.f32 %v352, %v335
      %v381 = vadd.s32 %v239, 1
      %v382 = vlaneseq
      %v383 = vshrl.u32 %v382, 7
      %v384 = vsub.s32 0, %v383
      %v385 = vrot.slane %v381, %v384
      %v386 = vlaneseq
      %v387 = vshrl.u32 %v386, 7
      %v388 = vsub.s32 1, %v387
      %v389 = vrot.slane %v381, %v388
      %v390 = vlaneseq
      %v391 = vshrl.u32 %v390, 7
      %v392 = vsub.s32 2, %v391
      %v393 = vrot.slane %v381, %v392
      %v394 = vlaneseq
      %v395 = vshrl.u32 %v394, 7
      %v396 = vsub.s32 3, %v395
      %v397 = vrot.slane %v381, %v396
      %vm398 = vcmp.eq.s32.totalorder %v242, %v385
      %vm399 = vcmp.eq.s32.totalorder %v242, %v389
      %vm400 = vcmp.eq.s32.totalorder %v242, %v393
      %vm401 = vcmp.eq.s32.totalorder %v242, %v397
      %vm402 = vcmp.eq.s32.totalorder %v243, %v385
      %vm403 = vcmp.eq.s32.totalorder %v243, %v389
      %vm404 = vcmp.eq.s32.totalorder %v243, %v393
      %vm405 = vcmp.eq.s32.totalorder %v243, %v397
      %vm406 = vcmp.eq.s32.totalorder %v244, %v385
      %vm407 = vcmp.eq.s32.totalorder %v244, %v389
      %vm408 = vcmp.eq.s32.totalorder %v244, %v393
      %vm409 = vcmp.eq.s32.totalorder %v244, %v397
      %vm410 = vcmp.eq.s32.totalorder %v245, %v385
      %vm411 = vcmp.eq.s32.totalorder %v245, %v389
      %vm412 = vcmp.eq.s32.totalorder %v245, %v393
      %vm413 = vcmp.eq.s32.totalorder %v245, %v397
      %vm414 = vcmp.eq.s32.totalorder %v246, %v385
      %vm415 = vcmp.eq.s32.totalorder %v246, %v389
      %vm416 = vcmp.eq.s32.totalorder %v246, %v393
      %vm417 = vcmp.eq.s32.totalorder %v246, %v397
      %vm418 = vcmp.eq.s32.totalorder %v247, %v385
      %vm419 = vcmp.eq.s32.totalorder %v247, %v389
      %vm420 = vcmp.eq.s32.totalorder %v247, %v393
      %vm421 = vcmp.eq.s32.totalorder %v247, %v397
      %v422 = vsel %vm398, 1, 0
      %v423 = vsel %vm399, 1, 0
      %v424 = vsel %vm400, 1, 0
      %v425 = vsel %vm401, 1, 0
      %v426 = vsel %vm402, 1, 0
      %v427 = vsel %vm403, 1, 0
      %v428 = vsel %vm404, 1, 0
      %v429 = vsel %vm405, 1, 0
      %v430 = vsel %vm406, 1, 0
      %v431 = vsel %vm407, 1, 0
      %v432 = vsel %vm408, 1, 0
      %v433 = vsel %vm409, 1, 0
      %v434 = vsel %vm410, 1, 0
      %v435 = vsel %vm411, 1, 0
      %v436 = vsel %vm412, 1, 0
      %v437 = vsel %vm413, 1, 0
      %v438 = vsel %vm414, 1, 0
      %v439 = vsel %vm415, 1, 0
      %v440 = vsel %vm416, 1, 0
      %v441 = vsel %vm417, 1, 0
      %v442 = vsel %vm418, 1, 0
      %v443 = vsel %vm419, 1, 0
      %v444 = vsel %vm420, 1, 0
      %v445 = vsel %vm421, 1, 0
      %v446 = vcvt.s32.f32 %v422
      %v447 = vcvt.s32.f32 %v423
      %v448 = vcvt.s32.f32 %v424
      %v449 = vcvt.s32.f32 %v425
      %v450 = vcvt.s32.f32 %v426
      %v451 = vcvt.s32.f32 %v427
      %v452 = vcvt.s32.f32 %v428
      %v453 = vcvt.s32.f32 %v429
      %v454 = vcvt.s32.f32 %v430
      %v455 = vcvt.s32.f32 %v431
      %v456 = vcvt.s32.f32 %v432
      %v457 = vcvt.s32.f32 %v433
      %v458 = vcvt.s32.f32 %v434
      %v459 = vcvt.s32.f32 %v435
      %v460 = vcvt.s32.f32 %v436
      %v461 = vcvt.s32.f32 %v437
      %v462 = vcvt.s32.f32 %v438
      %v463 = vcvt.s32.f32 %v439
      %v464 = vcvt.s32.f32 %v440
      %v465 = vcvt.s32.f32 %v441
      %v466 = vcvt.s32.f32 %v442
      %v467 = vcvt.s32.f32 %v443
      %v468 = vcvt.s32.f32 %v444
      %v469 = vcvt.s32.f32 %v445
      %v471 = vlaneseq
      %v472 = vshrl.u32 %v471, 7
      %v473 = vsub.s32 0, %v472
      %v474 = vrot.slane %v235, %v473
      %v475 = vlaneseq
      %v476 = vshrl.u32 %v475, 7
      %v477 = vsub.s32 1, %v476
      %v478 = vrot.slane %v235, %v477
      %v479 = vlaneseq
      %v480 = vshrl.u32 %v479, 7
      %v481 = vsub.s32 2, %v480
      %v482 = vrot.slane %v235, %v481
      %v483 = vlaneseq
      %v484 = vshrl.u32 %v483, 7
      %v485 = vsub.s32 3, %v484
      %v486 = vrot.slane %v235, %v485
      %v491 = vmul.f32 %v474, %v446
      %v492 = vmul.f32 %v478, %v447
      %v493 = vmul.f32 %v482, %v448
      %v494 = vmul.f32 %v486, %v449
      %v495 = vmul.f32 %v474, %v450
      %v496 = vmul.f32 %v478, %v451
      %v497 = vmul.f32 %v482, %v452
      %v498 = vmul.f32 %v486, %v453
      %v499 = vmul.f32 %v474, %v454
      %v500 = vmul.f32 %v478, %v455
      %v501 = vmul.f32 %v482, %v456
      %v502 = vmul.f32 %v486, %v457
      %v503 = vmul.f32 %v474, %v458
      %v504 = vmul.f32 %v478, %v459
      %v505 = vmul.f32 %v482, %v460
      %v506 = vmul.f32 %v486, %v461
      %v507 = vmul.f32 %v474, %v462
      %v508 = vmul.f32 %v478, %v463
      %v509 = vmul.f32 %v482, %v464
      %v510 = vmul.f32 %v486, %v465
      %v511 = vmul.f32 %v474, %v466
      %v512 = vmul.f32 %v478, %v467
      %v513 = vmul.f32 %v482, %v468
      %v514 = vmul.f32 %v486, %v469
      %v515 = vadd.f32 %v357, %v491
      %v516 = vadd.f32 %v358, %v492
      %v517 = vadd.f32 %v359, %v493
      %v518 = vadd.f32 %v360, %v494
      %v519 = vadd.f32 %v361, %v495
      %v520 = vadd.f32 %v362, %v496
      %v521 = vadd.f32 %v363, %v497
      %v522 = vadd.f32 %v364, %v498
      %v523 = vadd.f32 %v365, %v499
      %v524 = vadd.f32 %v366, %v500
      %v525 = vadd.f32 %v367, %v501
      %v526 = vadd.f32 %v368, %v502
      %v527 = vadd.f32 %v369, %v503
      %v528 = vadd.f32 %v370, %v504
      %v529 = vadd.f32 %v371, %v505
      %v530 = vadd.f32 %v372, %v506
      %v531 = vadd.f32 %v373, %v507
      %v532 = vadd.f32 %v374, %v508
      %v533 = vadd.f32 %v375, %v509
      %v534 = vadd.f32 %v376, %v510
      %v535 = vadd.f32 %v377, %v511
      %v536 = vadd.f32 %v378, %v512
      %v537 = vadd.f32 %v379, %v513
      %v538 = vadd.f32 %v380, %v514
      %v539 = vlaneseq
      %v540 = vshrl.u32 %v539, 7
      %v541 = vsub.s32 0, %v540
      %v542 = vrot.slane %v240, %v541
      %v543 = vlaneseq
      %v544 = vshrl.u32 %v543, 7
      %v545 = vsub.s32 1, %v544
      %v546 = vrot.slane %v240, %v545
      %v547 = vlaneseq
      %v548 = vshrl.u32 %v547, 7
      %v549 = vsub.s32 2, %v548
      %v550 = vrot.slane %v240, %v549
      %v551 = vlaneseq
      %v552 = vshrl.u32 %v551, 7
      %v553 = vsub.s32 3, %v552
      %v554 = vrot.slane %v240, %v553
      %vm555 = vcmp.eq.s32.totalorder %v242, %v542
      %vm556 = vcmp.eq.s32.totalorder %v242, %v546
      %vm557 = vcmp.eq.s32.totalorder %v242, %v550
      %vm558 = vcmp.eq.s32.totalorder %v242, %v554
      %vm559 = vcmp.eq.s32.totalorder %v243, %v542
      %vm560 = vcmp.eq.s32.totalorder %v243, %v546
      %vm561 = vcmp.eq.s32.totalorder %v243, %v550
      %vm562 = vcmp.eq.s32.totalorder %v243, %v554
      %vm563 = vcmp.eq.s32.totalorder %v244, %v542
      %vm564 = vcmp.eq.s32.totalorder %v244, %v546
      %vm565 = vcmp.eq.s32.totalorder %v244, %v550
      %vm566 = vcmp.eq.s32.totalorder %v244, %v554
      %vm567 = vcmp.eq.s32.totalorder %v245, %v542
      %vm568 = vcmp.eq.s32.totalorder %v245, %v546
      %vm569 = vcmp.eq.s32.totalorder %v245, %v550
      %vm570 = vcmp.eq.s32.totalorder %v245, %v554
      %vm571 = vcmp.eq.s32.totalorder %v246, %v542
      %vm572 = vcmp.eq.s32.totalorder %v246, %v546
      %vm573 = vcmp.eq.s32.totalorder %v246, %v550
      %vm574 = vcmp.eq.s32.totalorder %v246, %v554
      %vm575 = vcmp.eq.s32.totalorder %v247, %v542
      %vm576 = vcmp.eq.s32.totalorder %v247, %v546
      %vm577 = vcmp.eq.s32.totalorder %v247, %v550
      %vm578 = vcmp.eq.s32.totalorder %v247, %v554
      %v579 = vsel %vm555, 1, 0
      %v580 = vsel %vm556, 1, 0
      %v581 = vsel %vm557, 1, 0
      %v582 = vsel %vm558, 1, 0
      %v583 = vsel %vm559, 1, 0
      %v584 = vsel %vm560, 1, 0
      %v585 = vsel %vm561, 1, 0
      %v586 = vsel %vm562, 1, 0
      %v587 = vsel %vm563, 1, 0
      %v588 = vsel %vm564, 1, 0
      %v589 = vsel %vm565, 1, 0
      %v590 = vsel %vm566, 1, 0
      %v591 = vsel %vm567, 1, 0
      %v592 = vsel %vm568, 1, 0
      %v593 = vsel %vm569, 1, 0
      %v594 = vsel %vm570, 1, 0
      %v595 = vsel %vm571, 1, 0
      %v596 = vsel %vm572, 1, 0
      %v597 = vsel %vm573, 1, 0
      %v598 = vsel %vm574, 1, 0
      %v599 = vsel %vm575, 1, 0
      %v600 = vsel %vm576, 1, 0
      %v601 = vsel %vm577, 1, 0
      %v602 = vsel %vm578, 1, 0
      %v603 = vcvt.s32.f32 %v579
      %v604 = vcvt.s32.f32 %v580
      %v605 = vcvt.s32.f32 %v581
      %v606 = vcvt.s32.f32 %v582
      %v607 = vcvt.s32.f32 %v583
      %v608 = vcvt.s32.f32 %v584
      %v609 = vcvt.s32.f32 %v585
      %v610 = vcvt.s32.f32 %v586
      %v611 = vcvt.s32.f32 %v587
      %v612 = vcvt.s32.f32 %v588
      %v613 = vcvt.s32.f32 %v589
      %v614 = vcvt.s32.f32 %v590
      %v615 = vcvt.s32.f32 %v591
      %v616 = vcvt.s32.f32 %v592
      %v617 = vcvt.s32.f32 %v593
      %v618 = vcvt.s32.f32 %v594
      %v619 = vcvt.s32.f32 %v595
      %v620 = vcvt.s32.f32 %v596
      %v621 = vcvt.s32.f32 %v597
      %v622 = vcvt.s32.f32 %v598
      %v623 = vcvt.s32.f32 %v599
      %v624 = vcvt.s32.f32 %v600
      %v625 = vcvt.s32.f32 %v601
      %v626 = vcvt.s32.f32 %v602
      %v628 = vlaneseq
      %v629 = vshrl.u32 %v628, 7
      %v630 = vsub.s32 0, %v629
      %v631 = vrot.slane %v238, %v630
      %v632 = vlaneseq
      %v633 = vshrl.u32 %v632, 7
      %v634 = vsub.s32 1, %v633
      %v635 = vrot.slane %v238, %v634
      %v636 = vlaneseq
      %v637 = vshrl.u32 %v636, 7
      %v638 = vsub.s32 2, %v637
      %v639 = vrot.slane %v238, %v638
      %v640 = vlaneseq
      %v641 = vshrl.u32 %v640, 7
      %v642 = vsub.s32 3, %v641
      %v643 = vrot.slane %v238, %v642
      %v648 = vmul.f32 %v631, %v603
      %v649 = vmul.f32 %v635, %v604
      %v650 = vmul.f32 %v639, %v605
      %v651 = vmul.f32 %v643, %v606
      %v652 = vmul.f32 %v631, %v607
      %v653 = vmul.f32 %v635, %v608
      %v654 = vmul.f32 %v639, %v609
      %v655 = vmul.f32 %v643, %v610
      %v656 = vmul.f32 %v631, %v611
      %v657 = vmul.f32 %v635, %v612
      %v658 = vmul.f32 %v639, %v613
      %v659 = vmul.f32 %v643, %v614
      %v660 = vmul.f32 %v631, %v615
      %v661 = vmul.f32 %v635, %v616
      %v662 = vmul.f32 %v639, %v617
      %v663 = vmul.f32 %v643, %v618
      %v664 = vmul.f32 %v631, %v619
      %v665 = vmul.f32 %v635, %v620
      %v666 = vmul.f32 %v639, %v621
      %v667 = vmul.f32 %v643, %v622
      %v668 = vmul.f32 %v631, %v623
      %v669 = vmul.f32 %v635, %v624
      %v670 = vmul.f32 %v639, %v625
      %v671 = vmul.f32 %v643, %v626
      %v672 = vadd.s32 %v240, 1
      %v673 = vlaneseq
      %v674 = vshrl.u32 %v673, 7
      %v675 = vsub.s32 0, %v674
      %v676 = vrot.slane %v672, %v675
      %v677 = vlaneseq
      %v678 = vshrl.u32 %v677, 7
      %v679 = vsub.s32 1, %v678
      %v680 = vrot.slane %v672, %v679
      %v681 = vlaneseq
      %v682 = vshrl.u32 %v681, 7
      %v683 = vsub.s32 2, %v682
      %v684 = vrot.slane %v672, %v683
      %v685 = vlaneseq
      %v686 = vshrl.u32 %v685, 7
      %v687 = vsub.s32 3, %v686
      %v688 = vrot.slane %v672, %v687
      %vm689 = vcmp.eq.s32.totalorder %v242, %v676
      %vm690 = vcmp.eq.s32.totalorder %v242, %v680
      %vm691 = vcmp.eq.s32.totalorder %v242, %v684
      %vm692 = vcmp.eq.s32.totalorder %v242, %v688
      %vm693 = vcmp.eq.s32.totalorder %v243, %v676
      %vm694 = vcmp.eq.s32.totalorder %v243, %v680
      %vm695 = vcmp.eq.s32.totalorder %v243, %v684
      %vm696 = vcmp.eq.s32.totalorder %v243, %v688
      %vm697 = vcmp.eq.s32.totalorder %v244, %v676
      %vm698 = vcmp.eq.s32.totalorder %v244, %v680
      %vm699 = vcmp.eq.s32.totalorder %v244, %v684
      %vm700 = vcmp.eq.s32.totalorder %v244, %v688
      %vm701 = vcmp.eq.s32.totalorder %v245, %v676
      %vm702 = vcmp.eq.s32.totalorder %v245, %v680
      %vm703 = vcmp.eq.s32.totalorder %v245, %v684
      %vm704 = vcmp.eq.s32.totalorder %v245, %v688
      %vm705 = vcmp.eq.s32.totalorder %v246, %v676
      %vm706 = vcmp.eq.s32.totalorder %v246, %v680
      %vm707 = vcmp.eq.s32.totalorder %v246, %v684
      %vm708 = vcmp.eq.s32.totalorder %v246, %v688
      %vm709 = vcmp.eq.s32.totalorder %v247, %v676
      %vm710 = vcmp.eq.s32.totalorder %v247, %v680
      %vm711 = vcmp.eq.s32.totalorder %v247, %v684
      %vm712 = vcmp.eq.s32.totalorder %v247, %v688
      %v713 = vsel %vm689, 1, 0
      %v714 = vsel %vm690, 1, 0
      %v715 = vsel %vm691, 1, 0
      %v716 = vsel %vm692, 1, 0
      %v717 = vsel %vm693, 1, 0
      %v718 = vsel %vm694, 1, 0
      %v719 = vsel %vm695, 1, 0
      %v720 = vsel %vm696, 1, 0
      %v721 = vsel %vm697, 1, 0
      %v722 = vsel %vm698, 1, 0
      %v723 = vsel %vm699, 1, 0
      %v724 = vsel %vm700, 1, 0
      %v725 = vsel %vm701, 1, 0
      %v726 = vsel %vm702, 1, 0
      %v727 = vsel %vm703, 1, 0
      %v728 = vsel %vm704, 1, 0
      %v729 = vsel %vm705, 1, 0
      %v730 = vsel %vm706, 1, 0
      %v731 = vsel %vm707, 1, 0
      %v732 = vsel %vm708, 1, 0
      %v733 = vsel %vm709, 1, 0
      %v734 = vsel %vm710, 1, 0
      %v735 = vsel %vm711, 1, 0
      %v736 = vsel %vm712, 1, 0
      %v737 = vcvt.s32.f32 %v713
      %v738 = vcvt.s32.f32 %v714
      %v739 = vcvt.s32.f32 %v715
      %v740 = vcvt.s32.f32 %v716
      %v741 = vcvt.s32.f32 %v717
      %v742 = vcvt.s32.f32 %v718
      %v743 = vcvt.s32.f32 %v719
      %v744 = vcvt.s32.f32 %v720
      %v745 = vcvt.s32.f32 %v721
      %v746 = vcvt.s32.f32 %v722
      %v747 = vcvt.s32.f32 %v723
      %v748 = vcvt.s32.f32 %v724
      %v749 = vcvt.s32.f32 %v725
      %v750 = vcvt.s32.f32 %v726
      %v751 = vcvt.s32.f32 %v727
      %v752 = vcvt.s32.f32 %v728
      %v753 = vcvt.s32.f32 %v729
      %v754 = vcvt.s32.f32 %v730
      %v755 = vcvt.s32.f32 %v731
      %v756 = vcvt.s32.f32 %v732
      %v757 = vcvt.s32.f32 %v733
      %v758 = vcvt.s32.f32 %v734
      %v759 = vcvt.s32.f32 %v735
      %v760 = vcvt.s32.f32 %v736
      %v762 = vlaneseq
      %v763 = vshrl.u32 %v762, 7
      %v764 = vsub.s32 0, %v763
      %v765 = vrot.slane %v237, %v764
      %v766 = vlaneseq
      %v767 = vshrl.u32 %v766, 7
      %v768 = vsub.s32 1, %v767
      %v769 = vrot.slane %v237, %v768
      %v770 = vlaneseq
      %v771 = vshrl.u32 %v770, 7
      %v772 = vsub.s32 2, %v771
      %v773 = vrot.slane %v237, %v772
      %v774 = vlaneseq
      %v775 = vshrl.u32 %v774, 7
      %v776 = vsub.s32 3, %v775
      %v777 = vrot.slane %v237, %v776
      %v782 = vmul.f32 %v765, %v737
      %v783 = vmul.f32 %v769, %v738
      %v784 = vmul.f32 %v773, %v739
      %v785 = vmul.f32 %v777, %v740
      %v786 = vmul.f32 %v765, %v741
      %v787 = vmul.f32 %v769, %v742
      %v788 = vmul.f32 %v773, %v743
      %v789 = vmul.f32 %v777, %v744
      %v790 = vmul.f32 %v765, %v745
      %v791 = vmul.f32 %v769, %v746
      %v792 = vmul.f32 %v773, %v747
      %v793 = vmul.f32 %v777, %v748
      %v794 = vmul.f32 %v765, %v749
      %v795 = vmul.f32 %v769, %v750
      %v796 = vmul.f32 %v773, %v751
      %v797 = vmul.f32 %v777, %v752
      %v798 = vmul.f32 %v765, %v753
      %v799 = vmul.f32 %v769, %v754
      %v800 = vmul.f32 %v773, %v755
      %v801 = vmul.f32 %v777, %v756
      %v802 = vmul.f32 %v765, %v757
      %v803 = vmul.f32 %v769, %v758
      %v804 = vmul.f32 %v773, %v759
      %v805 = vmul.f32 %v777, %v760
      %v806 = vadd.f32 %v648, %v782
      %v807 = vadd.f32 %v649, %v783
      %v808 = vadd.f32 %v650, %v784
      %v809 = vadd.f32 %v651, %v785
      %v810 = vadd.f32 %v652, %v786
      %v811 = vadd.f32 %v653, %v787
      %v812 = vadd.f32 %v654, %v788
      %v813 = vadd.f32 %v655, %v789
      %v814 = vadd.f32 %v656, %v790
      %v815 = vadd.f32 %v657, %v791
      %v816 = vadd.f32 %v658, %v792
      %v817 = vadd.f32 %v659, %v793
      %v818 = vadd.f32 %v660, %v794
      %v819 = vadd.f32 %v661, %v795
      %v820 = vadd.f32 %v662, %v796
      %v821 = vadd.f32 %v663, %v797
      %v822 = vadd.f32 %v664, %v798
      %v823 = vadd.f32 %v665, %v799
      %v824 = vadd.f32 %v666, %v800
      %v825 = vadd.f32 %v667, %v801
      %v826 = vadd.f32 %v668, %v802
      %v827 = vadd.f32 %v669, %v803
      %v828 = vadd.f32 %v670, %v804
      %v829 = vadd.f32 %v671, %v805
      %v830 = vld [vmem:[%s185] sm:$0xff]
      %v831 = vld [vmem:[%s185 + $0x8] sm:$0xff]
      %v832 = vld [vmem:[%s185 + $0x10] sm:$0xff]
      %v833 = vld [vmem:[%s185 + $0x18] sm:$0xff]
      %v834 = vld [vmem:[%s185 + $0x20] sm:$0xff]
      %v835 = vld [vmem:[%s185 + $0x28] sm:$0xff]
      %v836 = vld [vmem:[%s185 + $0x30] sm:$0xff]
      %v837 = vld [vmem:[%s185 + $0x38] sm:$0xff]
      %v838 = vld [vmem:[%s185 + $0x40] sm:$0xff]
      %v839 = vld [vmem:[%s185 + $0x48] sm:$0xff]
      %v840 = vld [vmem:[%s185 + $0x50] sm:$0xff]
      %v841 = vld [vmem:[%s185 + $0x58] sm:$0xff]
      %v842 = vld [vmem:[%s185 + $0x60] sm:$0xff]
      %v843 = vld [vmem:[%s185 + $0x68] sm:$0xff]
      %v844 = vld [vmem:[%s185 + $0x70] sm:$0xff]
      %v845 = vld [vmem:[%s185 + $0x78] sm:$0xff]
      %v846 = vld [vmem:[%s185 + $0x80] sm:$0xff]
      %v847 = vld [vmem:[%s185 + $0x88] sm:$0xff]
      %vm848 = vcmask 392192
      %v850 = vsel %vm848, %v830, 0
      %v853 = vsel %vm848, %v831, 0
      %v856 = vsel %vm848, %v832, 0
      %v859 = vsel %vm848, %v833, 0
      %v862 = vsel %vm848, %v834, 0
      %v865 = vsel %vm848, %v835, 0
      %v868 = vsel %vm848, %v836, 0
      %v871 = vsel %vm848, %v837, 0
      %v874 = vsel %vm848, %v838, 0
      %v877 = vsel %vm848, %v839, 0
      %v880 = vsel %vm848, %v840, 0
      %v883 = vsel %vm848, %v841, 0
      %v886 = vsel %vm848, %v842, 0
      %v889 = vsel %vm848, %v843, 0
      %v892 = vsel %vm848, %v844, 0
      %v895 = vsel %vm848, %v845, 0
      %v898 = vsel %vm848, %v846, 0
      %v901 = vsel %vm848, %v847, 0
      %903 = vmatprep.subr.mxu0 0.0
      %904 = vmatpush1.msra.mxu0 0.0
      %905 = vmatprep.subr.mxu0 0.0
      %906 = vmatpush1.msra.mxu0 0.0
      %907 = vmatprep.subr.mxu0 0.0
      %908 = vmatpush1.msra.mxu0 0.0
      %909 = vmatprep.subr.mxu0 0.0
      %910 = vmatpush1.msra.mxu0 0.0
      %911 = vmatprep.subr.mxu0 0.0
      %912 = vmatpush1.msra.mxu0 0.0
      %913 = vmatprep.subr.mxu0 0.0
      %914 = vmatpush1.msra.mxu0 0.0
      %915 = vmatprep.subr.mxu0 0.0
      %916 = vmatpush1.msra.mxu0 0.0
      %917 = vmatprep.subr.mxu0 0.0
      %918 = vmatpush1.msra.mxu0 0.0
      %919 = vmatprep.subr.mxu0 0.0
      %920 = vmatpush1.msra.mxu0 0.0
      %921 = vmatprep.subr.mxu0 0.0
      %922 = vmatpush1.msra.mxu0 0.0
      %923 = vmatprep.subr.mxu0 %v536
      %924 = vmatpush1.msra.mxu0 %v535
      %925 = vmatprep.subr.mxu0 %v532
      %926 = vmatpush1.msra.mxu0 %v531
      %927 = vmatprep.subr.mxu0 %v528
      %928 = vmatpush1.msra.mxu0 %v527
      %929 = vmatprep.subr.mxu0 %v524
      %930 = vmatpush1.msra.mxu0 %v523
      %931 = vmatprep.subr.mxu0 %v520
      %932 = vmatpush1.msra.mxu0 %v519
      %933 = vmatprep.subr.mxu0 %v516
      %934 = vmatpush1.msra.mxu0 %v515
      %935 = vmatprep.subr.mxu0 0.0
      %936 = vmatpush2.msra.mxu0 0.0
      %937 = vmatprep.subr.mxu0 0.0
      %938 = vmatpush2.msra.mxu0 0.0
      %939 = vmatprep.subr.mxu0 0.0
      %940 = vmatpush2.msra.mxu0 0.0
      %941 = vmatprep.subr.mxu0 0.0
      %942 = vmatpush2.msra.mxu0 0.0
      %943 = vmatprep.subr.mxu0 0.0
      %944 = vmatpush2.msra.mxu0 0.0
      %945 = vmatprep.subr.mxu0 0.0
      %946 = vmatpush2.msra.mxu0 0.0
      %947 = vmatprep.subr.mxu0 0.0
      %948 = vmatpush2.msra.mxu0 0.0
      %949 = vmatprep.subr.mxu0 0.0
      %950 = vmatpush2.msra.mxu0 0.0
      %951 = vmatprep.subr.mxu0 0.0
      %952 = vmatpush2.msra.mxu0 0.0
      %953 = vmatprep.subr.mxu0 0.0
      %954 = vmatpush2.msra.mxu0 0.0
      %955 = vmatprep.subr.mxu0 0.0
      %956 = vmatpush2.msra.mxu0 0.0
      %957 = vmatprep.subr.mxu0 0.0
      %958 = vmatpush2.msra.mxu0 0.0
      %959 = vmatprep.subr.mxu0 0.0
      %960 = vmatpush2.msra.mxu0 0.0
      %961 = vmatprep.subr.mxu0 0.0
      %962 = vmatpush2.msra.mxu0 0.0
      %963 = vmatprep.subr.mxu0 0.0
      %964 = vmatpush2.msra.mxu0 0.0
      %965 = vmatprep.subr.mxu0 0.0
      %966 = vmatpush2.msra.mxu0 0.0
      %967 = vmatprep.mubr.f32.mxu0 0.0
      %968 = vmatmul.mubr.f32.gmra.mxu0 %v850
      %v969 = vpop.f32.mrf.mxu0
      %v970 = vadd.f32 0.0, %v969
      %v971 = vpop.f32.mrf.mxu0
      %v972 = vadd.f32 0.0, %v971
      %973 = vmatprep.mubr.f32.mxu0 0.0
      %974 = vmatmul.mubr.f32.gmra.mxu0 %v853
      %v975 = vpop.f32.mrf.mxu0
      %v976 = vadd.f32 0.0, %v975
      %v977 = vpop.f32.mrf.mxu0
      %v978 = vadd.f32 0.0, %v977
      %979 = vmatprep.mubr.f32.mxu0 0.0
      %980 = vmatmul.mubr.f32.gmra.mxu0 %v856
      %v981 = vpop.f32.mrf.mxu0
      %v982 = vadd.f32 0.0, %v981
      %v983 = vpop.f32.mrf.mxu0
      %v984 = vadd.f32 0.0, %v983
      %985 = vmatprep.mubr.f32.mxu0 0.0
      %986 = vmatmul.mubr.f32.gmra.mxu0 %v859
      %v987 = vpop.f32.mrf.mxu0
      %v988 = vadd.f32 0.0, %v987
      %v989 = vpop.f32.mrf.mxu0
      %v990 = vadd.f32 0.0, %v989
      %991 = vmatprep.mubr.f32.mxu0 0.0
      %992 = vmatmul.mubr.f32.gmra.mxu0 %v862
      %v993 = vpop.f32.mrf.mxu0
      %v994 = vadd.f32 0.0, %v993
      %v995 = vpop.f32.mrf.mxu0
      %v996 = vadd.f32 0.0, %v995
      %997 = vmatprep.mubr.f32.mxu0 0.0
      %998 = vmatmul.mubr.f32.gmra.mxu0 %v865
      %v999 = vpop.f32.mrf.mxu0
      %v1000 = vadd.f32 0.0, %v999
      %v1001 = vpop.f32.mrf.mxu0
      %v1002 = vadd.f32 0.0, %v1001
      %1003 = vmatprep.mubr.f32.mxu0 0.0
      %1004 = vmatmul.mubr.f32.gmra.mxu0 %v868
      %v1005 = vpop.f32.mrf.mxu0
      %v1006 = vadd.f32 0.0, %v1005
      %v1007 = vpop.f32.mrf.mxu0
      %v1008 = vadd.f32 0.0, %v1007
      %1009 = vmatprep.mubr.f32.mxu0 0.0
      %1010 = vmatmul.mubr.f32.gmra.mxu0 %v871
      %v1011 = vpop.f32.mrf.mxu0
      %v1012 = vadd.f32 0.0, %v1011
      %v1013 = vpop.f32.mrf.mxu0
      %v1014 = vadd.f32 0.0, %v1013
      %1015 = vmatprep.mubr.f32.mxu0 0.0
      %1016 = vmatmul.mubr.f32.gmra.mxu0 %v874
      %v1017 = vpop.f32.mrf.mxu0
      %v1018 = vadd.f32 0.0, %v1017
      %v1019 = vpop.f32.mrf.mxu0
      %v1020 = vadd.f32 0.0, %v1019
      %1021 = vmatprep.mubr.f32.mxu0 0.0
      %1022 = vmatmul.mubr.f32.gmra.mxu0 %v877
      %v1023 = vpop.f32.mrf.mxu0
      %v1024 = vadd.f32 0.0, %v1023
      %v1025 = vpop.f32.mrf.mxu0
      %v1026 = vadd.f32 0.0, %v1025
      %1027 = vmatprep.mubr.f32.mxu0 0.0
      %1028 = vmatmul.mubr.f32.gmra.mxu0 %v880
      %v1029 = vpop.f32.mrf.mxu0
      %v1030 = vadd.f32 0.0, %v1029
      %v1031 = vpop.f32.mrf.mxu0
      %v1032 = vadd.f32 0.0, %v1031
      %1033 = vmatprep.mubr.f32.mxu0 0.0
      %1034 = vmatmul.mubr.f32.gmra.mxu0 %v883
      %v1035 = vpop.f32.mrf.mxu0
      %v1036 = vadd.f32 0.0, %v1035
      %v1037 = vpop.f32.mrf.mxu0
      %v1038 = vadd.f32 0.0, %v1037
      %1039 = vmatprep.mubr.f32.mxu0 0.0
      %1040 = vmatmul.mubr.f32.gmra.mxu0 %v886
      %v1041 = vpop.f32.mrf.mxu0
      %v1042 = vadd.f32 0.0, %v1041
      %v1043 = vpop.f32.mrf.mxu0
      %v1044 = vadd.f32 0.0, %v1043
      %1045 = vmatprep.mubr.f32.mxu0 0.0
      %1046 = vmatmul.mubr.f32.gmra.mxu0 %v889
      %v1047 = vpop.f32.mrf.mxu0
      %v1048 = vadd.f32 0.0, %v1047
      %v1049 = vpop.f32.mrf.mxu0
      %v1050 = vadd.f32 0.0, %v1049
      %1051 = vmatprep.mubr.f32.mxu0 0.0
      %1052 = vmatmul.mubr.f32.gmra.mxu0 %v892
      %v1053 = vpop.f32.mrf.mxu0
      %v1054 = vadd.f32 0.0, %v1053
      %v1055 = vpop.f32.mrf.mxu0
      %v1056 = vadd.f32 0.0, %v1055
      %1057 = vmatprep.mubr.f32.mxu0 0.0
      %1058 = vmatmul.mubr.f32.gmra.mxu0 %v895
      %v1059 = vpop.f32.mrf.mxu0
      %v1060 = vadd.f32 0.0, %v1059
      %v1061 = vpop.f32.mrf.mxu0
      %v1062 = vadd.f32 0.0, %v1061
      %1063 = vmatprep.mubr.f32.mxu0 0.0
      %1064 = vmatmul.mubr.f32.gmra.mxu0 %v898
      %v1065 = vpop.f32.mrf.mxu0
      %v1066 = vadd.f32 0.0, %v1065
      %v1067 = vpop.f32.mrf.mxu0
      %v1068 = vadd.f32 0.0, %v1067
      %1069 = vmatprep.mubr.f32.mxu0 0.0
      %1070 = vmatmul.mubr.f32.gmra.mxu0 %v901
      %v1071 = vpop.f32.mrf.mxu0
      %v1072 = vadd.f32 0.0, %v1071
      %v1073 = vpop.f32.mrf.mxu0
      %v1074 = vadd.f32 0.0, %v1073
      %1075 = vdwg.mxu0
      %1076 = vmatprep.subr.mxu0 0.0
      %1077 = vmatpush1.msra.mxu0 0.0
      %1078 = vmatprep.subr.mxu0 0.0
      %1079 = vmatpush1.msra.mxu0 0.0
      %1080 = vmatprep.subr.mxu0 0.0
      %1081 = vmatpush1.msra.mxu0 0.0
      %1082 = vmatprep.subr.mxu0 0.0
      %1083 = vmatpush1.msra.mxu0 0.0
      %1084 = vmatprep.subr.mxu0 0.0
      %1085 = vmatpush1.msra.mxu0 0.0
      %1086 = vmatprep.subr.mxu0 0.0
      %1087 = vmatpush1.msra.mxu0 0.0
      %1088 = vmatprep.subr.mxu0 0.0
      %1089 = vmatpush1.msra.mxu0 0.0
      %1090 = vmatprep.subr.mxu0 0.0
      %1091 = vmatpush1.msra.mxu0 0.0
      %1092 = vmatprep.subr.mxu0 0.0
      %1093 = vmatpush1.msra.mxu0 0.0
      %1094 = vmatprep.subr.mxu0 0.0
      %1095 = vmatpush1.msra.mxu0 0.0
      %1096 = vmatprep.subr.mxu0 %v538
      %1097 = vmatpush1.msra.mxu0 %v537
      %1098 = vmatprep.subr.mxu0 %v534
      %1099 = vmatpush1.msra.mxu0 %v533
      %1100 = vmatprep.subr.mxu0 %v530
      %1101 = vmatpush1.msra.mxu0 %v529
      %1102 = vmatprep.subr.mxu0 %v526
      %1103 = vmatpush1.msra.mxu0 %v525
      %1104 = vmatprep.subr.mxu0 %v522
      %1105 = vmatpush1.msra.mxu0 %v521
      %1106 = vmatprep.subr.mxu0 %v518
      %1107 = vmatpush1.msra.mxu0 %v517
      %1108 = vmatprep.subr.mxu0 0.0
      %1109 = vmatpush2.msra.mxu0 0.0
      %1110 = vmatprep.subr.mxu0 0.0
      %1111 = vmatpush2.msra.mxu0 0.0
      %1112 = vmatprep.subr.mxu0 0.0
      %1113 = vmatpush2.msra.mxu0 0.0
      %1114 = vmatprep.subr.mxu0 0.0
      %1115 = vmatpush2.msra.mxu0 0.0
      %1116 = vmatprep.subr.mxu0 0.0
      %1117 = vmatpush2.msra.mxu0 0.0
      %1118 = vmatprep.subr.mxu0 0.0
      %1119 = vmatpush2.msra.mxu0 0.0
      %1120 = vmatprep.subr.mxu0 0.0
      %1121 = vmatpush2.msra.mxu0 0.0
      %1122 = vmatprep.subr.mxu0 0.0
      %1123 = vmatpush2.msra.mxu0 0.0
      %1124 = vmatprep.subr.mxu0 0.0
      %1125 = vmatpush2.msra.mxu0 0.0
      %1126 = vmatprep.subr.mxu0 0.0
      %1127 = vmatpush2.msra.mxu0 0.0
      %1128 = vmatprep.subr.mxu0 0.0
      %1129 = vmatpush2.msra.mxu0 0.0
      %1130 = vmatprep.subr.mxu0 0.0
      %1131 = vmatpush2.msra.mxu0 0.0
      %1132 = vmatprep.subr.mxu0 0.0
      %1133 = vmatpush2.msra.mxu0 0.0
      %1134 = vmatprep.subr.mxu0 0.0
      %1135 = vmatpush2.msra.mxu0 0.0
      %1136 = vmatprep.subr.mxu0 0.0
      %1137 = vmatpush2.msra.mxu0 0.0
      %1138 = vmatprep.subr.mxu0 0.0
      %1139 = vmatpush2.msra.mxu0 0.0
      %1140 = vmatprep.mubr.f32.mxu0 0.0
      %1141 = vmatmul.mubr.f32.gmra.mxu0 %v850
      %v1142 = vpop.f32.mrf.mxu0
      %v1143 = vadd.f32 0.0, %v1142
      %v1144 = vpop.f32.mrf.mxu0
      %v1145 = vadd.f32 0.0, %v1144
      %1146 = vmatprep.mubr.f32.mxu0 0.0
      %1147 = vmatmul.mubr.f32.gmra.mxu0 %v853
      %v1148 = vpop.f32.mrf.mxu0
      %v1149 = vadd.f32 0.0, %v1148
      %v1150 = vpop.f32.mrf.mxu0
      %v1151 = vadd.f32 0.0, %v1150
      %1152 = vmatprep.mubr.f32.mxu0 0.0
      %1153 = vmatmul.mubr.f32.gmra.mxu0 %v856
      %v1154 = vpop.f32.mrf.mxu0
      %v1155 = vadd.f32 0.0, %v1154
      %v1156 = vpop.f32.mrf.mxu0
      %v1157 = vadd.f32 0.0, %v1156
      %1158 = vmatprep.mubr.f32.mxu0 0.0
      %1159 = vmatmul.mubr.f32.gmra.mxu0 %v859
      %v1160 = vpop.f32.mrf.mxu0
      %v1161 = vadd.f32 0.0, %v1160
      %v1162 = vpop.f32.mrf.mxu0
      %v1163 = vadd.f32 0.0, %v1162
      %1164 = vmatprep.mubr.f32.mxu0 0.0
      %1165 = vmatmul.mubr.f32.gmra.mxu0 %v862
      %v1166 = vpop.f32.mrf.mxu0
      %v1167 = vadd.f32 0.0, %v1166
      %v1168 = vpop.f32.mrf.mxu0
      %v1169 = vadd.f32 0.0, %v1168
      %1170 = vmatprep.mubr.f32.mxu0 0.0
      %1171 = vmatmul.mubr.f32.gmra.mxu0 %v865
      %v1172 = vpop.f32.mrf.mxu0
      %v1173 = vadd.f32 0.0, %v1172
      %v1174 = vpop.f32.mrf.mxu0
      %v1175 = vadd.f32 0.0, %v1174
      %1176 = vmatprep.mubr.f32.mxu0 0.0
      %1177 = vmatmul.mubr.f32.gmra.mxu0 %v868
      %v1178 = vpop.f32.mrf.mxu0
      %v1179 = vadd.f32 0.0, %v1178
      %v1180 = vpop.f32.mrf.mxu0
      %v1181 = vadd.f32 0.0, %v1180
      %1182 = vmatprep.mubr.f32.mxu0 0.0
      %1183 = vmatmul.mubr.f32.gmra.mxu0 %v871
      %v1184 = vpop.f32.mrf.mxu0
      %v1185 = vadd.f32 0.0, %v1184
      %v1186 = vpop.f32.mrf.mxu0
      %v1187 = vadd.f32 0.0, %v1186
      %1188 = vmatprep.mubr.f32.mxu0 0.0
      %1189 = vmatmul.mubr.f32.gmra.mxu0 %v874
      %v1190 = vpop.f32.mrf.mxu0
      %v1191 = vadd.f32 0.0, %v1190
      %v1192 = vpop.f32.mrf.mxu0
      %v1193 = vadd.f32 0.0, %v1192
      %1194 = vmatprep.mubr.f32.mxu0 0.0
      %1195 = vmatmul.mubr.f32.gmra.mxu0 %v877
      %v1196 = vpop.f32.mrf.mxu0
      %v1197 = vadd.f32 0.0, %v1196
      %v1198 = vpop.f32.mrf.mxu0
      %v1199 = vadd.f32 0.0, %v1198
      %1200 = vmatprep.mubr.f32.mxu0 0.0
      %1201 = vmatmul.mubr.f32.gmra.mxu0 %v880
      %v1202 = vpop.f32.mrf.mxu0
      %v1203 = vadd.f32 0.0, %v1202
      %v1204 = vpop.f32.mrf.mxu0
      %v1205 = vadd.f32 0.0, %v1204
      %1206 = vmatprep.mubr.f32.mxu0 0.0
      %1207 = vmatmul.mubr.f32.gmra.mxu0 %v883
      %v1208 = vpop.f32.mrf.mxu0
      %v1209 = vadd.f32 0.0, %v1208
      %v1210 = vpop.f32.mrf.mxu0
      %v1211 = vadd.f32 0.0, %v1210
      %1212 = vmatprep.mubr.f32.mxu0 0.0
      %1213 = vmatmul.mubr.f32.gmra.mxu0 %v886
      %v1214 = vpop.f32.mrf.mxu0
      %v1215 = vadd.f32 0.0, %v1214
      %v1216 = vpop.f32.mrf.mxu0
      %v1217 = vadd.f32 0.0, %v1216
      %1218 = vmatprep.mubr.f32.mxu0 0.0
      %1219 = vmatmul.mubr.f32.gmra.mxu0 %v889
      %v1220 = vpop.f32.mrf.mxu0
      %v1221 = vadd.f32 0.0, %v1220
      %v1222 = vpop.f32.mrf.mxu0
      %v1223 = vadd.f32 0.0, %v1222
      %1224 = vmatprep.mubr.f32.mxu0 0.0
      %1225 = vmatmul.mubr.f32.gmra.mxu0 %v892
      %v1226 = vpop.f32.mrf.mxu0
      %v1227 = vadd.f32 0.0, %v1226
      %v1228 = vpop.f32.mrf.mxu0
      %v1229 = vadd.f32 0.0, %v1228
      %1230 = vmatprep.mubr.f32.mxu0 0.0
      %1231 = vmatmul.mubr.f32.gmra.mxu0 %v895
      %v1232 = vpop.f32.mrf.mxu0
      %v1233 = vadd.f32 0.0, %v1232
      %v1234 = vpop.f32.mrf.mxu0
      %v1235 = vadd.f32 0.0, %v1234
      %1236 = vmatprep.mubr.f32.mxu0 0.0
      %1237 = vmatmul.mubr.f32.gmra.mxu0 %v898
      %v1238 = vpop.f32.mrf.mxu0
      %v1239 = vadd.f32 0.0, %v1238
      %v1240 = vpop.f32.mrf.mxu0
      %v1241 = vadd.f32 0.0, %v1240
      %1242 = vmatprep.mubr.f32.mxu0 0.0
      %1243 = vmatmul.mubr.f32.gmra.mxu0 %v901
      %v1244 = vpop.f32.mrf.mxu0
      %v1245 = vadd.f32 0.0, %v1244
      %v1246 = vpop.f32.mrf.mxu0
      %v1247 = vadd.f32 0.0, %v1246
      %1248 = vdwg.mxu0
      %v1249 = vmul.f32 %v970, %v806
      %v1250 = vmul.f32 %v972, %v807
      %v1251 = vmul.f32 %v1143, %v808
      %v1252 = vmul.f32 %v1145, %v809
      %v1253 = vmul.f32 %v976, %v810
      %v1254 = vmul.f32 %v978, %v811
      %v1255 = vmul.f32 %v1149, %v812
      %v1256 = vmul.f32 %v1151, %v813
      %v1257 = vmul.f32 %v982, %v814
      %v1258 = vmul.f32 %v984, %v815
      %v1259 = vmul.f32 %v1155, %v816
      %v1260 = vmul.f32 %v1157, %v817
      %v1261 = vmul.f32 %v988, %v818
      %v1262 = vmul.f32 %v990, %v819
      %v1263 = vmul.f32 %v1161, %v820
      %v1264 = vmul.f32 %v1163, %v821
      %v1265 = vmul.f32 %v994, %v822
      %v1266 = vmul.f32 %v996, %v823
      %v1267 = vmul.f32 %v1167, %v824
      %v1268 = vmul.f32 %v1169, %v825
      %v1269 = vmul.f32 %v1000, %v826
      %v1270 = vmul.f32 %v1002, %v827
      %v1271 = vmul.f32 %v1173, %v828
      %v1272 = vmul.f32 %v1175, %v829
      %v1273 = vadd.f32 %v1249, %v1253
      %v1274 = vadd.f32 %v1273, %v1257
      %v1275 = vadd.f32 %v1274, %v1261
      %v1276 = vadd.f32 %v1275, %v1265
      %v1277 = vadd.f32 %v1276, %v1269
      %v1278 = vrot.slane %v1277, 4
      %v1279 = vadd.f32 %v1277, %v1278
      %v1280 = vrot.slane %v1279, 2
      %v1281 = vadd.f32 %v1279, %v1280
      %v1282 = vrot.slane %v1281, 1
      %v1283 = vadd.f32 %v1281, %v1282
      %v1284 = vadd.f32 %v1250, %v1254
      %v1285 = vadd.f32 %v1284, %v1258
      %v1286 = vadd.f32 %v1285, %v1262
      %v1287 = vadd.f32 %v1286, %v1266
      %v1288 = vadd.f32 %v1287, %v1270
      %v1289 = vrot.slane %v1288, 4
      %v1290 = vadd.f32 %v1288, %v1289
      %v1291 = vrot.slane %v1290, 2
      %v1292 = vadd.f32 %v1290, %v1291
      %v1293 = vrot.slane %v1292, 1
      %v1294 = vadd.f32 %v1292, %v1293
      %v1295 = vadd.f32 %v1251, %v1255
      %v1296 = vadd.f32 %v1295, %v1259
      %v1297 = vadd.f32 %v1296, %v1263
      %v1298 = vadd.f32 %v1297, %v1267
      %v1299 = vadd.f32 %v1298, %v1271
      %v1300 = vrot.slane %v1299, 4
      %v1301 = vadd.f32 %v1299, %v1300
      %v1302 = vrot.slane %v1301, 2
      %v1303 = vadd.f32 %v1301, %v1302
      %v1304 = vrot.slane %v1303, 1
      %v1305 = vadd.f32 %v1303, %v1304
      %v1306 = vadd.f32 %v1252, %v1256
      %v1307 = vadd.f32 %v1306, %v1260
      %v1308 = vadd.f32 %v1307, %v1264
      %v1309 = vadd.f32 %v1308, %v1268
      %v1310 = vadd.f32 %v1309, %v1272
      %v1311 = vrot.slane %v1310, 4
      %v1312 = vadd.f32 %v1310, %v1311
      %v1313 = vrot.slane %v1312, 2
      %v1314 = vadd.f32 %v1312, %v1313
      %v1315 = vrot.slane %v1314, 1
      %v1316 = vadd.f32 %v1314, %v1315
      %v1321 = vcombine.low %v1283, %v1294
      %v1322 = vcombine.low %v1305, %v1316
      %v1324 = vunpack.c.l.s4 1966171168
      %v1325 = vunpack.c.0.s8 %v1324
      %v1326 = vlaneseq
      %v1327 = vshrl.u32 %v1326, 7
      %v1328 = vsub.s32 %v1325, %v1327
      %v1329 = vrot.slane %v1321, %v1328
      %v1331 = vunpack.c.l.s4 1966171168
      %v1332 = vunpack.c.0.s8 %v1331
      %v1333 = vlaneseq
      %v1334 = vshrl.u32 %v1333, 7
      %v1335 = vsub.s32 %v1332, %v1334
      %v1336 = vrot.slane %v1322, %v1335
      %v1337 = vcombine.low %v1329, %v1336
      %v1339 = vunpack.c.l.s4 1966171168
      %v1340 = vunpack.c.0.s8 %v1339
      %v1341 = vlaneseq
      %v1342 = vshrl.u32 %v1341, 7
      %v1343 = vsub.s32 %v1340, %v1342
      %v1344 = vrot.slane %v1337, %v1343
      %v1346 = vlaneseq
      %vm1347 = vcmp.ge.s32.totalorder %v1346, 0
      %vm1348 = vcmp.lt.s32.totalorder %v1346, 512
      %vm1349 = vmand %vm1347, %vm1348
      %1350 = vst.msk [vmem:[%s194] ss:$4 sm:$0xf] %vm1349, %v1344
      %v1351 = vmul.f32 %v1006, %v806
      %v1352 = vmul.f32 %v1008, %v807
      %v1353 = vmul.f32 %v1179, %v808
      %v1354 = vmul.f32 %v1181, %v809
      %v1355 = vmul.f32 %v1012, %v810
      %v1356 = vmul.f32 %v1014, %v811
      %v1357 = vmul.f32 %v1185, %v812
      %v1358 = vmul.f32 %v1187, %v813
      %v1359 = vmul.f32 %v1018, %v814
      %v1360 = vmul.f32 %v1020, %v815
      %v1361 = vmul.f32 %v1191, %v816
      %v1362 = vmul.f32 %v1193, %v817
      %v1363 = vmul.f32 %v1024, %v818
      %v1364 = vmul.f32 %v1026, %v819
      %v1365 = vmul.f32 %v1197, %v820
      %v1366 = vmul.f32 %v1199, %v821
      %v1367 = vmul.f32 %v1030, %v822
      %v1368 = vmul.f32 %v1032, %v823
      %v1369 = vmul.f32 %v1203, %v824
      %v1370 = vmul.f32 %v1205, %v825
      %v1371 = vmul.f32 %v1036, %v826
      %v1372 = vmul.f32 %v1038, %v827
      %v1373 = vmul.f32 %v1209, %v828
      %v1374 = vmul.f32 %v1211, %v829
      %v1375 = vadd.f32 %v1351, %v1355
      %v1376 = vadd.f32 %v1375, %v1359
      %v1377 = vadd.f32 %v1376, %v1363
      %v1378 = vadd.f32 %v1377, %v1367
      %v1379 = vadd.f32 %v1378, %v1371
      %v1380 = vrot.slane %v1379, 4
      %v1381 = vadd.f32 %v1379, %v1380
      %v1382 = vrot.slane %v1381, 2
      %v1383 = vadd.f32 %v1381, %v1382
      %v1384 = vrot.slane %v1383, 1
      %v1385 = vadd.f32 %v1383, %v1384
      %v1386 = vadd.f32 %v1352, %v1356
      %v1387 = vadd.f32 %v1386, %v1360
      %v1388 = vadd.f32 %v1387, %v1364
      %v1389 = vadd.f32 %v1388, %v1368
      %v1390 = vadd.f32 %v1389, %v1372
      %v1391 = vrot.slane %v1390, 4
      %v1392 = vadd.f32 %v1390, %v1391
      %v1393 = vrot.slane %v1392, 2
      %v1394 = vadd.f32 %v1392, %v1393
      %v1395 = vrot.slane %v1394, 1
      %v1396 = vadd.f32 %v1394, %v1395
      %v1397 = vadd.f32 %v1353, %v1357
      %v1398 = vadd.f32 %v1397, %v1361
      %v1399 = vadd.f32 %v1398, %v1365
      %v1400 = vadd.f32 %v1399, %v1369
      %v1401 = vadd.f32 %v1400, %v1373
      %v1402 = vrot.slane %v1401, 4
      %v1403 = vadd.f32 %v1401, %v1402
      %v1404 = vrot.slane %v1403, 2
      %v1405 = vadd.f32 %v1403, %v1404
      %v1406 = vrot.slane %v1405, 1
      %v1407 = vadd.f32 %v1405, %v1406
      %v1408 = vadd.f32 %v1354, %v1358
      %v1409 = vadd.f32 %v1408, %v1362
      %v1410 = vadd.f32 %v1409, %v1366
      %v1411 = vadd.f32 %v1410, %v1370
      %v1412 = vadd.f32 %v1411, %v1374
      %v1413 = vrot.slane %v1412, 4
      %v1414 = vadd.f32 %v1412, %v1413
      %v1415 = vrot.slane %v1414, 2
      %v1416 = vadd.f32 %v1414, %v1415
      %v1417 = vrot.slane %v1416, 1
      %v1418 = vadd.f32 %v1416, %v1417
      %v1423 = vcombine.low %v1385, %v1396
      %v1424 = vcombine.low %v1407, %v1418
      %v1426 = vunpack.c.l.s4 1966171168
      %v1427 = vunpack.c.0.s8 %v1426
      %v1428 = vlaneseq
      %v1429 = vshrl.u32 %v1428, 7
      %v1430 = vsub.s32 %v1427, %v1429
      %v1431 = vrot.slane %v1423, %v1430
      %v1433 = vunpack.c.l.s4 1966171168
      %v1434 = vunpack.c.0.s8 %v1433
      %v1435 = vlaneseq
      %v1436 = vshrl.u32 %v1435, 7
      %v1437 = vsub.s32 %v1434, %v1436
      %v1438 = vrot.slane %v1424, %v1437
      %v1439 = vcombine.low %v1431, %v1438
      %v1441 = vunpack.c.l.s4 1966171168
      %v1442 = vunpack.c.0.s8 %v1441
      %v1443 = vlaneseq
      %v1444 = vshrl.u32 %v1443, 7
      %v1445 = vsub.s32 %v1442, %v1444
      %v1446 = vrot.slane %v1439, %v1445
      %s1448 = scalar_lea.vmem %s194, 1
      %1449 = vst.msk [vmem:[%s1448] ss:$4 sm:$0xf] %vm1349, %v1446
      %v1450 = vmul.f32 %v1042, %v806
      %v1451 = vmul.f32 %v1044, %v807
      %v1452 = vmul.f32 %v1215, %v808
      %v1453 = vmul.f32 %v1217, %v809
      %v1454 = vmul.f32 %v1048, %v810
      %v1455 = vmul.f32 %v1050, %v811
      %v1456 = vmul.f32 %v1221, %v812
      %v1457 = vmul.f32 %v1223, %v813
      %v1458 = vmul.f32 %v1054, %v814
      %v1459 = vmul.f32 %v1056, %v815
      %v1460 = vmul.f32 %v1227, %v816
      %v1461 = vmul.f32 %v1229, %v817
      %v1462 = vmul.f32 %v1060, %v818
      %v1463 = vmul.f32 %v1062, %v819
      %v1464 = vmul.f32 %v1233, %v820
      %v1465 = vmul.f32 %v1235, %v821
      %v1466 = vmul.f32 %v1066, %v822
      %v1467 = vmul.f32 %v1068, %v823
      %v1468 = vmul.f32 %v1239, %v824
      %v1469 = vmul.f32 %v1241, %v825
      %v1470 = vmul.f32 %v1072, %v826
      %v1471 = vmul.f32 %v1074, %v827
      %v1472 = vmul.f32 %v1245, %v828
      %v1473 = vmul.f32 %v1247, %v829
      %v1474 = vadd.f32 %v1450, %v1454
      %v1475 = vadd.f32 %v1474, %v1458
      %v1476 = vadd.f32 %v1475, %v1462
      %v1477 = vadd.f32 %v1476, %v1466
      %v1478 = vadd.f32 %v1477, %v1470
      %v1479 = vrot.slane %v1478, 4
      %v1480 = vadd.f32 %v1478, %v1479
      %v1481 = vrot.slane %v1480, 2
      %v1482 = vadd.f32 %v1480, %v1481
      %v1483 = vrot.slane %v1482, 1
      %v1484 = vadd.f32 %v1482, %v1483
      %v1485 = vadd.f32 %v1451, %v1455
      %v1486 = vadd.f32 %v1485, %v1459
      %v1487 = vadd.f32 %v1486, %v1463
      %v1488 = vadd.f32 %v1487, %v1467
      %v1489 = vadd.f32 %v1488, %v1471
      %v1490 = vrot.slane %v1489, 4
      %v1491 = vadd.f32 %v1489, %v1490
      %v1492 = vrot.slane %v1491, 2
      %v1493 = vadd.f32 %v1491, %v1492
      %v1494 = vrot.slane %v1493, 1
      %v1495 = vadd.f32 %v1493, %v1494
      %v1496 = vadd.f32 %v1452, %v1456
      %v1497 = vadd.f32 %v1496, %v1460
      %v1498 = vadd.f32 %v1497, %v1464
      %v1499 = vadd.f32 %v1498, %v1468
      %v1500 = vadd.f32 %v1499, %v1472
      %v1501 = vrot.slane %v1500, 4
      %v1502 = vadd.f32 %v1500, %v1501
      %v1503 = vrot.slane %v1502, 2
      %v1504 = vadd.f32 %v1502, %v1503
      %v1505 = vrot.slane %v1504, 1
      %v1506 = vadd.f32 %v1504, %v1505
      %v1507 = vadd.f32 %v1453, %v1457
      %v1508 = vadd.f32 %v1507, %v1461
      %v1509 = vadd.f32 %v1508, %v1465
      %v1510 = vadd.f32 %v1509, %v1469
      %v1511 = vadd.f32 %v1510, %v1473
      %v1512 = vrot.slane %v1511, 4
      %v1513 = vadd.f32 %v1511, %v1512
      %v1514 = vrot.slane %v1513, 2
      %v1515 = vadd.f32 %v1513, %v1514
      %v1516 = vrot.slane %v1515, 1
      %v1517 = vadd.f32 %v1515, %v1516
      %v1522 = vcombine.low %v1484, %v1495
      %v1523 = vcombine.low %v1506, %v1517
      %v1525 = vunpack.c.l.s4 1966171168
      %v1526 = vunpack.c.0.s8 %v1525
      %v1527 = vlaneseq
      %v1528 = vshrl.u32 %v1527, 7
      %v1529 = vsub.s32 %v1526, %v1528
      %v1530 = vrot.slane %v1522, %v1529
      %v1532 = vunpack.c.l.s4 1966171168
      %v1533 = vunpack.c.0.s8 %v1532
      %v1534 = vlaneseq
      %v1535 = vshrl.u32 %v1534, 7
      %v1536 = vsub.s32 %v1533, %v1535
      %v1537 = vrot.slane %v1523, %v1536
      %v1538 = vcombine.low %v1530, %v1537
      %v1540 = vunpack.c.l.s4 1966171168
      %v1541 = vunpack.c.0.s8 %v1540
      %v1542 = vlaneseq
      %v1543 = vshrl.u32 %v1542, 7
      %v1544 = vsub.s32 %v1541, %v1543
      %v1545 = vrot.slane %v1538, %v1544
      %s1547 = scalar_lea.vmem %s194, 2
      %1548 = vst.msk [vmem:[%s1547] ss:$4 sm:$0xf] %vm1349, %v1545
      %s1549 = smul.u32 4, %s25
      %p1550 = scmp.lt.s32.totalorder %s24, 1
      %s1551 = scalar_select %p1550, %s24, 1
      %p1552 = scmp.lt.s32.totalorder %s1549, 19
      %s1553 = scalar_select %p1552, %s1549, 19
      %s1554 = smul.addr %s1551, 20
      %s1555 = sadd.s32 %s1553, %s1554
      %s1556 = smul.addr %s1555, 4
      %s1557 = scalar_lea.vmem %s3, %s1556
      // Predicated region
      $region29: #{stn_small_forward.11} parent=27 // pred_check
        %p1558 = pneg %p104
      $region30: #{stn_small_forward.11} parent=27 // pred_check_branch
        %1560 = sbr.rel (%p1558) target = $region32
      $region31: #{stn_small_forward.11} parent=27 // pred_region
        %s1561 = smul.u32 4, %s25
      $region32: #{stn_small_forward.11} parent=27 // pred_fallthru
        _
    $region28: #{stn_small_forward.11} parent=5 // pred_fallthru
      _
    %p1562 = scmp.le.s32.totalorder 2, %s15
    // Predicated region
    $region33: #{stn_small_forward.11} parent=5 // pred_check
      %p1563 = pneg %p1562
    $region34: #{stn_small_forward.11} parent=5 // pred_check_branch
      %1565 = sbr.rel (%p1563) target = $region36
    $region35: #{stn_small_forward.11} parent=5 // pred_region
      %s1566 = ssub.s32 %s15, 2
      // Predicated region
      $region37: #{stn_small_forward.11} parent=35 // pred_check
        %p1567 = pneg %p110
      $region38: #{stn_small_forward.11} parent=35 // pred_check_branch
        %1569 = sbr.rel (%p1567) target = $region40
      $region39: #{stn_small_forward.11} parent=35 // pred_region
        %s1570 = smul.u32 4, %s27
        %p1571 = scmp.lt.s32.totalorder %s26, 1
        %s1572 = scalar_select %p1571, %s26, 1
        %p1573 = scmp.lt.s32.totalorder %s1570, 19
        %s1574 = scalar_select %p1573, %s1570, 19
        %s1575 = smul.addr %s1572, 20
        %s1576 = sadd.s32 %s1574, %s1575
        %s1577 = smul.addr %s1576, 4
        %s1578 = scalar_lea.vmem %s3, %s1577
      $region40: #{stn_small_forward.11} parent=35 // pred_fallthru
        _
    $region36: #{stn_small_forward.11} parent=5 // pred_fallthru
      _
  $region6: #{stn_small_forward.11} parent=0 // loop_footer
    %s19 = sadd.s32 1, %s15
  $region7: #{stn_small_forward.11} parent=0 // loop_footer_branch
    %14 = sbr.rel target = $region3
  $region8: #{stn_small_forward.11} parent=0 // loop_exit
    _

</llo_original>
